<compile_context>
chip_gen: v7x
topology: tpu7x:2x2x1
jax: 0.10.0
libtpu: 0.0.40
codegen_flags: <defaults>
</compile_context>

<pallas_src>
import functools

import numpy as np
import jax
import jax.numpy as jnp
from jax import lax
from jax.experimental import pallas as pl
from jax.experimental.pallas import tpu as pltpu


def _taps(v, L):
    """Return (prev, cur, next) halo taps of v:(C, L) float32 along the length axis.

    prev[:, l] = v[:, l-1] (zero at l=0); next[:, l] = v[:, l+1] (zero at l=L-1).
    """
    C = v.shape[0]
    if L % 128 == 0:
        # Lane-aligned: XLU lane rotate (spare VLIW slot) + iota mask.  Rolls are
        # done in f32 (the best-supported rotate path); casts to the matmul compute
        # dtype happen at the dots.
        col = lax.broadcasted_iota(jnp.int32, (C, L), 1)
        prev = jnp.where(col > 0, pltpu.roll(v, 1, axis=1), 0.0)
        nxt = jnp.where(col < L - 1, pltpu.roll(v, L - 1, axis=1), 0.0)
    else:
        # Small / unaligned L: multiply by tiny 0/1 shift matrices built from iota.
        # The zero column at the boundary provides the conv zero-padding for free.
        row = lax.broadcasted_iota(jnp.int32, (L, L), 0)
        col = lax.broadcasted_iota(jnp.int32, (L, L), 1)
        s_prev = (row == col - 1).astype(jnp.float32)   # prev = v @ s_prev
        s_next = (row == col + 1).astype(jnp.float32)   # next = v @ s_next
        prev = jnp.dot(v, s_prev, preferred_element_type=jnp.float32)
        nxt = jnp.dot(v, s_next, preferred_element_type=jnp.float32)
    return prev, v, nxt


def _conv_bn_relu(v, w_ref, b_ref, L, cdtype):
    """One fused (Conv1d k=3 p=1 -> folded BN -> ReLU) step.

    v      : (Cin, L) float32 activations
    w_ref  : (3, Cout, Cin) per-tap folded weights (compute dtype)
    b_ref  : (Cout, 1) float32 effective bias
    returns: (Cout, L) float32
    """
    prev, cur, nxt = _taps(v, L)
    # Three accumulated MXU matmuls (one per tap) -- no materialized im2col temps.
    acc = jnp.dot(w_ref[0], prev.astype(cdtype), preferred_element_type=jnp.float32)
    acc += jnp.dot(w_ref[1], cur.astype(cdtype), preferred_element_type=jnp.float32)
    acc += jnp.dot(w_ref[2], nxt.astype(cdtype), preferred_element_type=jnp.float32)
    return jnp.maximum(acc + b_ref[...], 0.0)


def _double_conv_kernel(x_ref, w1_ref, b1_ref, w2_ref, b2_ref, o_ref, *, L, cdtype):
    """Fused double (conv k=3 pad=1 -> folded BN -> ReLU) for one batch element.

    x_ref  : (1, Cin, L)      compute-dtype input slab (length on lanes)
    w1_ref : (3, Cout, Cin)   conv1 per-tap weights (BN folded)
    b1_ref : (Cout, 1)        conv1 effective bias (f32)
    w2_ref : (3, Cout, Cout)  conv2 per-tap weights (BN folded)
    b2_ref : (Cout, 1)        conv2 effective bias (f32)
    o_ref  : (1, Cout, L)     f32 output slab
    """
    x = x_ref[0].astype(jnp.float32)
    h = _conv_bn_relu(x, w1_ref, b1_ref, L, cdtype)
    y = _conv_bn_relu(h, w2_ref, b2_ref, L, cdtype)
    o_ref[0] = y.astype(o_ref.dtype)


def _fold_bn(w_oik, b, gamma, beta, mean, var, eps, dtype):
    """Fold inference-mode BN into the conv; return per-tap weights + effective bias.

    w_oik: (Cout, Cin, 3) PyTorch Conv1d weight.  Returns w_taps:(3, Cout, Cin) in
    `dtype` (tap k multiplies x[l + k - 1]) and b_eff:(Cout, 1) float32.
    """
    scale = gamma / jnp.sqrt(var + eps)                       # (Cout,)
    w_eff = (w_oik * scale[:, None, None]).astype(dtype)      # scale output channels
    w_taps = jnp.transpose(w_eff, (2, 0, 1))                  # (3, Cout, Cin)
    b_eff = (b * scale + beta - mean * scale).reshape(-1, 1).astype(jnp.float32)
    return w_taps, b_eff


def _vmem_limit_bytes(per_step_bytes):
    """Generation-aware VMEM budget: at most ~75% of physical VMEM, and no more
    than ~2x what this kernel needs per grid step (never below the 16 MiB default)."""
    cap = 64 * 2 ** 20      # conservative default (v7x per-TensorCore VMEM)
    try:
        cap = int(getattr(pltpu.get_tpu_info(), "vmem_capacity_bytes", cap)) or cap
    except Exception:
        pass
    want = max(16 * 2 ** 20, 2 * per_step_bytes)
    return int(min(want, (3 * cap) // 4))


def double_conv_pallas(x_ncl, params, *, compute_dtype=jnp.bfloat16, eps=1e-5,
                       single_buffer_weights=True):
    """x_ncl: (N, Cin, L) float32, PyTorch Conv1d layout.  Returns (N, Cout, L) f32."""
    n, cin, L = x_ncl.shape
    cout = params["w1"].shape[0]

    w1, b1 = _fold_bn(params["w1"], params["b1"], params["g1"], params["beta1"],
                      params["m1"], params["v1"], eps, compute_dtype)
    w2, b2 = _fold_bn(params["w2"], params["b2"], params["g2"], params["beta2"],
                      params["m2"], params["v2"], eps, compute_dtype)
    x = x_ncl.astype(compute_dtype)   # only HBM-level change; no pad, no transpose

    # Per-grid-step VMEM estimate: double-buffered in/out slabs, resident weights,
    # plus f32 temporaries (halo taps, h, accumulators) with slack.
    isz = jnp.dtype(compute_dtype).itemsize
    per_step = (2 * cin * L * isz + 2 * cout * L * 4
                + 3 * cout * (cin + cout) * isz + 2 * cout * 4
                + (3 * cin + 5 * cout) * L * 4)
    vmem_limit = _vmem_limit_bytes(per_step)

    kernel = functools.partial(_double_conv_kernel, L=L, cdtype=compute_dtype)

    def make_call(single_buffer):
        # Grid-invariant weight/bias blocks: single buffering avoids the duplicate
        # VMEM copy that default double-buffering would allocate.
        wkw = dict(pipeline_mode=pl.Buffered(1)) if single_buffer else {}
        return pl.pallas_call(
            kernel,
            out_shape=jax.ShapeDtypeStruct((n, cout, L), jnp.float32),
            grid_spec=pltpu.PrefetchScalarGridSpec(
                num_scalar_prefetch=0,
                grid=(n,),   # one batch element per step; "parallel" -> v7x 2 TCs
                in_specs=[
                    pl.BlockSpec((1, cin, L), lambda b: (b, 0, 0)),
                    pl.BlockSpec((3, cout, cin), lambda b: (0, 0, 0), **wkw),
                    pl.BlockSpec((cout, 1), lambda b: (0, 0), **wkw),
                    pl.BlockSpec((3, cout, cout), lambda b: (0, 0, 0), **wkw),
                    pl.BlockSpec((cout, 1), lambda b: (0, 0), **wkw),
                ],
                out_specs=pl.BlockSpec((1, cout, L), lambda b: (b, 0, 0)),
            ),
            compiler_params=pltpu.CompilerParams(
                dimension_semantics=("parallel",),
                vmem_limit_bytes=vmem_limit,
            ),
        )

    if single_buffer_weights:
        try:
            return make_call(True)(x, w1, b1, w2, b2)
        except Exception:
            # Some Pallas versions reject pipeline_mode on a top-level pallas_call
            # BlockSpec; fall back to default double-buffered weight blocks.
            pass
    return make_call(False)(x, w1, b1, w2, b2)


def double_conv_reference(x_ncl, params, eps=1e-5):
    """Pure-JAX reference (Conv1d -> BN(eval) -> ReLU, twice), all in f32."""
    def conv_bn_relu(x, w, b, g, beta, m, v):
        y = lax.conv_general_dilated(
            x, w, window_strides=(1,), padding=[(1, 1)],
            dimension_numbers=("NCH", "OIH", "NCH"))
        y = y + b[None, :, None]
        y = (y - m[None, :, None]) / jnp.sqrt(v[None, :, None] + eps)
        y = y * g[None, :, None] + beta[None, :, None]
        return jnp.maximum(y, 0.0)

    h = conv_bn_relu(x_ncl, params["w1"], params["b1"], params["g1"],
                     params["beta1"], params["m1"], params["v1"])
    return conv_bn_relu(h, params["w2"], params["b2"], params["g2"],
                        params["beta2"], params["m2"], params["v2"])


def init_params(key, in_ch, out_ch):
    ks = jax.random.split(key, 8)
    return {
        "w1": 0.1 * jax.random.normal(ks[0], (out_ch, in_ch, 3), jnp.float32),
        "b1": 0.1 * jax.random.normal(ks[1], (out_ch,), jnp.float32),
        "g1": 1.0 + 0.1 * jax.random.normal(ks[2], (out_ch,), jnp.float32),
        "beta1": 0.1 * jax.random.normal(ks[3], (out_ch,), jnp.float32),
        "m1": 0.05 * jax.random.normal(ks[2], (out_ch,), jnp.float32),
        "v1": 1.0 + 0.1 * jnp.abs(jax.random.normal(ks[3], (out_ch,), jnp.float32)),
        "w2": 0.1 * jax.random.normal(ks[4], (out_ch, out_ch, 3), jnp.float32),
        "b2": 0.1 * jax.random.normal(ks[5], (out_ch,), jnp.float32),
        "g2": 1.0 + 0.1 * jax.random.normal(ks[6], (out_ch,), jnp.float32),
        "beta2": 0.1 * jax.random.normal(ks[7], (out_ch,), jnp.float32),
        "m2": 0.05 * jax.random.normal(ks[6], (out_ch,), jnp.float32),
        "v2": 1.0 + 0.1 * jnp.abs(jax.random.normal(ks[7], (out_ch,), jnp.float32)),
    }


if __name__ == "__main__":
    key = jax.random.PRNGKey(0)
    kx, kp = jax.random.split(key)

    # (N, in_ch, out_ch, L, compute_dtype, rtol, atol)
    configs = [
        (2, 4, 8, 16, jnp.float32, 1e-4, 1e-4),     # small unaligned L -> shift-matrix halo
        (2, 4, 8, 16, jnp.bfloat16, 2e-2, 3e-2),    # bf16 compute, same shape
        (2, 4, 8, 128, jnp.bfloat16, 2e-2, 3e-2),   # lane-aligned L -> pltpu.roll halo
    ]

    def run_check(i, cfg, single_buffer_weights):
        n, in_ch, out_ch, L, cdt, rtol, atol = cfg
        x = jax.random.normal(jax.random.fold_in(kx, i), (n, in_ch, L), jnp.float32)
        params = init_params(jax.random.fold_in(kp, i), in_ch, out_ch)
        out = jax.block_until_ready(
            double_conv_pallas(x, params, compute_dtype=cdt,
                               single_buffer_weights=single_buffer_weights))
        ref = double_conv_reference(x, params)
        np.testing.assert_allclose(np.asarray(out), np.asarray(ref),
                                   rtol=rtol, atol=atol)

    for i, cfg in enumerate(configs):
        try:
            run_check(i, cfg, True)
        except Exception:
            # Conservative retry without the single-buffered-weights request.
            run_check(i, cfg, False)

    print("KERNEL_OK")
</pallas_src>

<mosaic_0001>
module attributes {stable_mosaic.version = 11 : i64} {
  func.func @_double_conv_kernel(%arg0: i32, %arg1: memref<1x4x16xf32, #tpu.memory_space<vmem>>, %arg2: memref<3x8x4xf32, #tpu.memory_space<vmem>>, %arg3: memref<8x1xf32, #tpu.memory_space<vmem>>, %arg4: memref<3x8x8xf32, #tpu.memory_space<vmem>>, %arg5: memref<8x1xf32, #tpu.memory_space<vmem>>, %arg6: memref<1x8x16xf32, #tpu.memory_space<vmem>>) attributes {dimension_semantics = [#tpu.dimension_semantics<parallel>], iteration_bounds = array<i64: 2>, scalar_prefetch = 0 : i64, scratch_operands = 0 : i64, tpu.core_type = #tpu.core_type<tc>, window_params = [{transform_indices = @transform_0, window_bounds = array<i64: 1, 4, 16>}, {pipeline_mode = #tpu.pipeline_mode<synchronous>, transform_indices = @transform_1, window_bounds = array<i64: 3, 8, 4>}, {pipeline_mode = #tpu.pipeline_mode<synchronous>, transform_indices = @transform_2, window_bounds = array<i64: 8, 1>}, {pipeline_mode = #tpu.pipeline_mode<synchronous>, transform_indices = @transform_3, window_bounds = array<i64: 3, 8, 8>}, {pipeline_mode = #tpu.pipeline_mode<synchronous>, transform_indices = @transform_4, window_bounds = array<i64: 8, 1>}, {transform_indices = @transform_5, window_bounds = array<i64: 1, 8, 16>}]} {
    %c0 = arith.constant 0 : index
    %c0_0 = arith.constant 0 : index
    %c0_1 = arith.constant 0 : index
    %0 = vector.load %arg1[%c0, %c0_0, %c0_1] : memref<1x4x16xf32, #tpu.memory_space<vmem>>, vector<1x4x16xf32>
    %1 = vector.shape_cast %0 : vector<1x4x16xf32> to vector<4x16xf32>
    %2 = tpu.iota {dimensions = array<i32: 0>} : vector<16x16xi32>
    %3 = tpu.iota {dimensions = array<i32: 1>} : vector<16x16xi32>
    %c1_i32 = arith.constant 1 : i32
    %4 = vector.broadcast %c1_i32 : i32 to vector<16x16xi32>
    %5 = arith.subi %3, %4 : vector<16x16xi32>
    %6 = arith.cmpi eq, %2, %5 : vector<16x16xi32>
    %7 = arith.extui %6 : vector<16x16xi1> to vector<16x16xi32>
    %8 = arith.sitofp %7 : vector<16x16xi32> to vector<16x16xf32>
    %c1_i32_2 = arith.constant 1 : i32
    %9 = vector.broadcast %c1_i32_2 : i32 to vector<16x16xi32>
    %10 = arith.addi %3, %9 : vector<16x16xi32>
    %11 = arith.cmpi eq, %2, %10 : vector<16x16xi32>
    %12 = arith.extui %11 : vector<16x16xi1> to vector<16x16xi32>
    %13 = arith.sitofp %12 : vector<16x16xi32> to vector<16x16xf32>
    %cst = arith.constant dense<0.000000e+00> : vector<4x16xf32>
    %14 = tpu.matmul %1, %8, %cst {dimension_numbers = #tpu.dot_dimension_numbers<[1], [0], [0], [1], [0, 0, 1, 1], [], []>} : vector<4x16xf32>, vector<16x16xf32>, vector<4x16xf32> -> vector<4x16xf32>
    %cst_3 = arith.constant dense<0.000000e+00> : vector<4x16xf32>
    %15 = tpu.matmul %1, %13, %cst_3 {dimension_numbers = #tpu.dot_dimension_numbers<[1], [0], [0], [1], [0, 0, 1, 1], [], []>} : vector<4x16xf32>, vector<16x16xf32>, vector<4x16xf32> -> vector<4x16xf32>
    %c0_4 = arith.constant 0 : index
    %c0_5 = arith.constant 0 : index
    %c0_6 = arith.constant 0 : index
    %16 = vector.load %arg2[%c0_4, %c0_5, %c0_6] : memref<3x8x4xf32, #tpu.memory_space<vmem>>, vector<1x8x4xf32>
    %17 = vector.shape_cast %16 : vector<1x8x4xf32> to vector<8x4xf32>
    %cst_7 = arith.constant dense<0.000000e+00> : vector<8x16xf32>
    %18 = tpu.matmul %17, %14, %cst_7 {dimension_numbers = #tpu.dot_dimension_numbers<[1], [0], [0], [1], [0, 0, 1, 1], [], []>} : vector<8x4xf32>, vector<4x16xf32>, vector<8x16xf32> -> vector<8x16xf32>
    %c1 = arith.constant 1 : index
    %c0_8 = arith.constant 0 : index
    %c0_9 = arith.constant 0 : index
    %19 = vector.load %arg2[%c1, %c0_8, %c0_9] : memref<3x8x4xf32, #tpu.memory_space<vmem>>, vector<1x8x4xf32>
    %20 = vector.shape_cast %19 : vector<1x8x4xf32> to vector<8x4xf32>
    %cst_10 = arith.constant dense<0.000000e+00> : vector<8x16xf32>
    %21 = tpu.matmul %20, %1, %cst_10 {dimension_numbers = #tpu.dot_dimension_numbers<[1], [0], [0], [1], [0, 0, 1, 1], [], []>} : vector<8x4xf32>, vector<4x16xf32>, vector<8x16xf32> -> vector<8x16xf32>
    %22 = arith.addf %18, %21 : vector<8x16xf32>
    %c2 = arith.constant 2 : index
    %c0_11 = arith.constant 0 : index
    %c0_12 = arith.constant 0 : index
    %23 = vector.load %arg2[%c2, %c0_11, %c0_12] : memref<3x8x4xf32, #tpu.memory_space<vmem>>, vector<1x8x4xf32>
    %24 = vector.shape_cast %23 : vector<1x8x4xf32> to vector<8x4xf32>
    %cst_13 = arith.constant dense<0.000000e+00> : vector<8x16xf32>
    %25 = tpu.matmul %24, %15, %cst_13 {dimension_numbers = #tpu.dot_dimension_numbers<[1], [0], [0], [1], [0, 0, 1, 1], [], []>} : vector<8x4xf32>, vector<4x16xf32>, vector<8x16xf32> -> vector<8x16xf32>
    %26 = arith.addf %22, %25 : vector<8x16xf32>
    %c0_14 = arith.constant 0 : index
    %c0_15 = arith.constant 0 : index
    %27 = vector.load %arg3[%c0_14, %c0_15] : memref<8x1xf32, #tpu.memory_space<vmem>>, vector<8x1xf32>
    %28 = vector.broadcast %27 : vector<8x1xf32> to vector<8x16xf32>
    %29 = arith.addf %26, %28 : vector<8x16xf32>
    %cst_16 = arith.constant 0.000000e+00 : f32
    %30 = vector.broadcast %cst_16 : f32 to vector<8x16xf32>
    %31 = arith.maximumf %29, %30 : vector<8x16xf32>
    %32 = tpu.iota {dimensions = array<i32: 0>} : vector<16x16xi32>
    %33 = tpu.iota {dimensions = array<i32: 1>} : vector<16x16xi32>
    %c1_i32_17 = arith.constant 1 : i32
    %34 = vector.broadcast %c1_i32_17 : i32 to vector<16x16xi32>
    %35 = arith.subi %33, %34 : vector<16x16xi32>
    %36 = arith.cmpi eq, %32, %35 : vector<16x16xi32>
    %37 = arith.extui %36 : vector<16x16xi1> to vector<16x16xi32>
    %38 = arith.sitofp %37 : vector<16x16xi32> to vector<16x16xf32>
    %c1_i32_18 = arith.constant 1 : i32
    %39 = vector.broadcast %c1_i32_18 : i32 to vector<16x16xi32>
    %40 = arith.addi %33, %39 : vector<16x16xi32>
    %41 = arith.cmpi eq, %32, %40 : vector<16x16xi32>
    %42 = arith.extui %41 : vector<16x16xi1> to vector<16x16xi32>
    %43 = arith.sitofp %42 : vector<16x16xi32> to vector<16x16xf32>
    %cst_19 = arith.constant dense<0.000000e+00> : vector<8x16xf32>
    %44 = tpu.matmul %31, %38, %cst_19 {dimension_numbers = #tpu.dot_dimension_numbers<[1], [0], [0], [1], [0, 0, 1, 1], [], []>} : vector<8x16xf32>, vector<16x16xf32>, vector<8x16xf32> -> vector<8x16xf32>
    %cst_20 = arith.constant dense<0.000000e+00> : vector<8x16xf32>
    %45 = tpu.matmul %31, %43, %cst_20 {dimension_numbers = #tpu.dot_dimension_numbers<[1], [0], [0], [1], [0, 0, 1, 1], [], []>} : vector<8x16xf32>, vector<16x16xf32>, vector<8x16xf32> -> vector<8x16xf32>
    %c0_21 = arith.constant 0 : index
    %c0_22 = arith.constant 0 : index
    %c0_23 = arith.constant 0 : index
    %46 = vector.load %arg4[%c0_21, %c0_22, %c0_23] : memref<3x8x8xf32, #tpu.memory_space<vmem>>, vector<1x8x8xf32>
    %47 = vector.shape_cast %46 : vector<1x8x8xf32> to vector<8x8xf32>
    %cst_24 = arith.constant dense<0.000000e+00> : vector<8x16xf32>
    %48 = tpu.matmul %47, %44, %cst_24 {dimension_numbers = #tpu.dot_dimension_numbers<[1], [0], [0], [1], [0, 0, 1, 1], [], []>} : vector<8x8xf32>, vector<8x16xf32>, vector<8x16xf32> -> vector<8x16xf32>
    %c1_25 = arith.constant 1 : index
    %c0_26 = arith.constant 0 : index
    %c0_27 = arith.constant 0 : index
    %49 = vector.load %arg4[%c1_25, %c0_26, %c0_27] : memref<3x8x8xf32, #tpu.memory_space<vmem>>, vector<1x8x8xf32>
    %50 = vector.shape_cast %49 : vector<1x8x8xf32> to vector<8x8xf32>
    %cst_28 = arith.constant dense<0.000000e+00> : vector<8x16xf32>
    %51 = tpu.matmul %50, %31, %cst_28 {dimension_numbers = #tpu.dot_dimension_numbers<[1], [0], [0], [1], [0, 0, 1, 1], [], []>} : vector<8x8xf32>, vector<8x16xf32>, vector<8x16xf32> -> vector<8x16xf32>
    %52 = arith.addf %48, %51 : vector<8x16xf32>
    %c2_29 = arith.constant 2 : index
    %c0_30 = arith.constant 0 : index
    %c0_31 = arith.constant 0 : index
    %53 = vector.load %arg4[%c2_29, %c0_30, %c0_31] : memref<3x8x8xf32, #tpu.memory_space<vmem>>, vector<1x8x8xf32>
    %54 = vector.shape_cast %53 : vector<1x8x8xf32> to vector<8x8xf32>
    %cst_32 = arith.constant dense<0.000000e+00> : vector<8x16xf32>
    %55 = tpu.matmul %54, %45, %cst_32 {dimension_numbers = #tpu.dot_dimension_numbers<[1], [0], [0], [1], [0, 0, 1, 1], [], []>} : vector<8x8xf32>, vector<8x16xf32>, vector<8x16xf32> -> vector<8x16xf32>
    %56 = arith.addf %52, %55 : vector<8x16xf32>
    %c0_33 = arith.constant 0 : index
    %c0_34 = arith.constant 0 : index
    %57 = vector.load %arg5[%c0_33, %c0_34] : memref<8x1xf32, #tpu.memory_space<vmem>>, vector<8x1xf32>
    %58 = vector.broadcast %57 : vector<8x1xf32> to vector<8x16xf32>
    %59 = arith.addf %56, %58 : vector<8x16xf32>
    %cst_35 = arith.constant 0.000000e+00 : f32
    %60 = vector.broadcast %cst_35 : f32 to vector<8x16xf32>
    %61 = arith.maximumf %59, %60 : vector<8x16xf32>
    %c0_36 = arith.constant 0 : index
    %c0_37 = arith.constant 0 : index
    %c0_38 = arith.constant 0 : index
    %62 = vector.load %arg6[%c0_36, %c0_37, %c0_38] : memref<1x8x16xf32, #tpu.memory_space<vmem>>, vector<1x8x16xf32>
    %63 = vector.shape_cast %62 : vector<1x8x16xf32> to vector<8x16xf32>
    %64 = vector.shape_cast %61 : vector<8x16xf32> to vector<1x8x16xf32>
    tpu.vector_store %arg6[%c0_36, %c0_37, %c0_38], %64 {strides = array<i32>} : memref<1x8x16xf32, #tpu.memory_space<vmem>>, vector<1x8x16xf32>,
    return
  }
  func.func @transform_0(%arg0: i32) -> (i32, i32, i32) {
    %c0_i32 = arith.constant 0 : i32
    %c0_i32_0 = arith.constant 0 : i32
    %c0_i32_1 = arith.constant 0 : i32
    return %arg0, %c0_i32, %c0_i32_0 : i32, i32, i32
  }
  func.func @transform_1(%arg0: i32) -> (i32, i32, i32) {
    %c0_i32 = arith.constant 0 : i32
    %c0_i32_0 = arith.constant 0 : i32
    %c0_i32_1 = arith.constant 0 : i32
    %c0_i32_2 = arith.constant 0 : i32
    return %c0_i32, %c0_i32_0, %c0_i32_1 : i32, i32, i32
  }
  func.func @transform_2(%arg0: i32) -> (i32, i32) {
    %c0_i32 = arith.constant 0 : i32
    %c0_i32_0 = arith.constant 0 : i32
    %c0_i32_1 = arith.constant 0 : i32
    return %c0_i32, %c0_i32_0 : i32, i32
  }
  func.func @transform_3(%arg0: i32) -> (i32, i32, i32) {
    %c0_i32 = arith.constant 0 : i32
    %c0_i32_0 = arith.constant 0 : i32
    %c0_i32_1 = arith.constant 0 : i32
    %c0_i32_2 = arith.constant 0 : i32
    return %c0_i32, %c0_i32_0, %c0_i32_1 : i32, i32, i32
  }
  func.func @transform_4(%arg0: i32) -> (i32, i32) {
    %c0_i32 = arith.constant 0 : i32
    %c0_i32_0 = arith.constant 0 : i32
    %c0_i32_1 = arith.constant 0 : i32
    return %c0_i32, %c0_i32_0 : i32, i32
  }
  func.func @transform_5(%arg0: i32) -> (i32, i32, i32) {
    %c0_i32 = arith.constant 0 : i32
    %c0_i32_0 = arith.constant 0 : i32
    %c0_i32_1 = arith.constant 0 : i32
    return %arg0, %c0_i32, %c0_i32_0 : i32, i32, i32
  }
}

module attributes {stable_mosaic.version = 11 : i64} {
  func.func @_double_conv_kernel(%arg0: i32, %arg1: memref<1x4x16xf32, #tpu.memory_space<vmem>>, %arg2: memref<3x8x4xf32, #tpu.memory_space<vmem>>, %arg3: memref<8x1xf32, #tpu.memory_space<vmem>>, %arg4: memref<3x8x8xf32, #tpu.memory_space<vmem>>, %arg5: memref<8x1xf32, #tpu.memory_space<vmem>>, %arg6: memref<1x8x16xf32, #tpu.memory_space<vmem>>) attributes {dimension_semantics = [#tpu.dimension_semantics<parallel>], iteration_bounds = array<i64: 2>, scalar_prefetch = 0 : i64, scratch_operands = 0 : i64, tpu.core_type = #tpu.core_type<tc>, window_params = [{transform_indices = @transform_0, window_bounds = array<i64: 1, 4, 16>}, {pipeline_mode = #tpu.pipeline_mode<synchronous>, transform_indices = @transform_1, window_bounds = array<i64: 3, 8, 4>}, {pipeline_mode = #tpu.pipeline_mode<synchronous>, transform_indices = @transform_2, window_bounds = array<i64: 8, 1>}, {pipeline_mode = #tpu.pipeline_mode<synchronous>, transform_indices = @transform_3, window_bounds = array<i64: 3, 8, 8>}, {pipeline_mode = #tpu.pipeline_mode<synchronous>, transform_indices = @transform_4, window_bounds = array<i64: 8, 1>}, {transform_indices = @transform_5, window_bounds = array<i64: 1, 8, 16>}]} {
    %c0 = arith.constant 0 : index
    %c0_0 = arith.constant 0 : index
    %c0_1 = arith.constant 0 : index
    %0 = vector.load %arg1[%c0, %c0_0, %c0_1] : memref<1x4x16xf32, #tpu.memory_space<vmem>>, vector<1x4x16xf32>
    %1 = vector.shape_cast %0 : vector<1x4x16xf32> to vector<4x16xf32>
    %2 = tpu.iota {dimensions = array<i32: 0>} : vector<16x16xi32>
    %3 = tpu.iota {dimensions = array<i32: 1>} : vector<16x16xi32>
    %c1_i32 = arith.constant 1 : i32
    %4 = vector.broadcast %c1_i32 : i32 to vector<16x16xi32>
    %5 = arith.subi %3, %4 : vector<16x16xi32>
    %6 = arith.cmpi eq, %2, %5 : vector<16x16xi32>
    %7 = arith.extui %6 : vector<16x16xi1> to vector<16x16xi32>
    %8 = arith.sitofp %7 : vector<16x16xi32> to vector<16x16xf32>
    %c1_i32_2 = arith.constant 1 : i32
    %9 = vector.broadcast %c1_i32_2 : i32 to vector<16x16xi32>
    %10 = arith.addi %3, %9 : vector<16x16xi32>
    %11 = arith.cmpi eq, %2, %10 : vector<16x16xi32>
    %12 = arith.extui %11 : vector<16x16xi1> to vector<16x16xi32>
    %13 = arith.sitofp %12 : vector<16x16xi32> to vector<16x16xf32>
    %cst = arith.constant dense<0.000000e+00> : vector<4x16xf32>
    %14 = tpu.matmul %1, %8, %cst {dimension_numbers = #tpu.dot_dimension_numbers<[1], [0], [0], [1], [0, 0, 1, 1], [], []>} : vector<4x16xf32>, vector<16x16xf32>, vector<4x16xf32> -> vector<4x16xf32>
    %cst_3 = arith.constant dense<0.000000e+00> : vector<4x16xf32>
    %15 = tpu.matmul %1, %13, %cst_3 {dimension_numbers = #tpu.dot_dimension_numbers<[1], [0], [0], [1], [0, 0, 1, 1], [], []>} : vector<4x16xf32>, vector<16x16xf32>, vector<4x16xf32> -> vector<4x16xf32>
    %c0_4 = arith.constant 0 : index
    %c0_5 = arith.constant 0 : index
    %c0_6 = arith.constant 0 : index
    %16 = vector.load %arg2[%c0_4, %c0_5, %c0_6] : memref<3x8x4xf32, #tpu.memory_space<vmem>>, vector<1x8x4xf32>
    %17 = vector.shape_cast %16 : vector<1x8x4xf32> to vector<8x4xf32>
    %cst_7 = arith.constant dense<0.000000e+00> : vector<8x16xf32>
    %18 = tpu.matmul %17, %14, %cst_7 {dimension_numbers = #tpu.dot_dimension_numbers<[1], [0], [0], [1], [0, 0, 1, 1], [], []>} : vector<8x4xf32>, vector<4x16xf32>, vector<8x16xf32> -> vector<8x16xf32>
    %c1 = arith.constant 1 : index
    %c0_8 = arith.constant 0 : index
    %c0_9 = arith.constant 0 : index
    %19 = vector.load %arg2[%c1, %c0_8, %c0_9] : memref<3x8x4xf32, #tpu.memory_space<vmem>>, vector<1x8x4xf32>
    %20 = vector.shape_cast %19 : vector<1x8x4xf32> to vector<8x4xf32>
    %cst_10 = arith.constant dense<0.000000e+00> : vector<8x16xf32>
    %21 = tpu.matmul %20, %1, %cst_10 {dimension_numbers = #tpu.dot_dimension_numbers<[1], [0], [0], [1], [0, 0, 1, 1], [], []>} : vector<8x4xf32>, vector<4x16xf32>, vector<8x16xf32> -> vector<8x16xf32>
    %22 = arith.addf %18, %21 : vector<8x16xf32>
    %c2 = arith.constant 2 : index
    %c0_11 = arith.constant 0 : index
    %c0_12 = arith.constant 0 : index
    %23 = vector.load %arg2[%c2, %c0_11, %c0_12] : memref<3x8x4xf32, #tpu.memory_space<vmem>>, vector<1x8x4xf32>
    %24 = vector.shape_cast %23 : vector<1x8x4xf32> to vector<8x4xf32>
    %cst_13 = arith.constant dense<0.000000e+00> : vector<8x16xf32>
    %25 = tpu.matmul %24, %15, %cst_13 {dimension_numbers = #tpu.dot_dimension_numbers<[1], [0], [0], [1], [0, 0, 1, 1], [], []>} : vector<8x4xf32>, vector<4x16xf32>, vector<8x16xf32> -> vector<8x16xf32>
    %26 = arith.addf %22, %25 : vector<8x16xf32>
    %c0_14 = arith.constant 0 : index
    %c0_15 = arith.constant 0 : index
    %27 = vector.load %arg3[%c0_14, %c0_15] : memref<8x1xf32, #tpu.memory_space<vmem>>, vector<8x1xf32>
    %28 = vector.broadcast %27 : vector<8x1xf32> to vector<8x16xf32>
    %29 = arith.addf %26, %28 : vector<8x16xf32>
    %cst_16 = arith.constant 0.000000e+00 : f32
    %30 = vector.broadcast %cst_16 : f32 to vector<8x16xf32>
    %31 = arith.maximumf %29, %30 : vector<8x16xf32>
    %32 = tpu.iota {dimensions = array<i32: 0>} : vector<16x16xi32>
    %33 = tpu.iota {dimensions = array<i32: 1>} : vector<16x16xi32>
    %c1_i32_17 = arith.constant 1 : i32
    %34 = vector.broadcast %c1_i32_17 : i32 to vector<16x16xi32>
    %35 = arith.subi %33, %34 : vector<16x16xi32>
    %36 = arith.cmpi eq, %32, %35 : vector<16x16xi32>
    %37 = arith.extui %36 : vector<16x16xi1> to vector<16x16xi32>
    %38 = arith.sitofp %37 : vector<16x16xi32> to vector<16x16xf32>
    %c1_i32_18 = arith.constant 1 : i32
    %39 = vector.broadcast %c1_i32_18 : i32 to vector<16x16xi32>
    %40 = arith.addi %33, %39 : vector<16x16xi32>
    %41 = arith.cmpi eq, %32, %40 : vector<16x16xi32>
    %42 = arith.extui %41 : vector<16x16xi1> to vector<16x16xi32>
    %43 = arith.sitofp %42 : vector<16x16xi32> to vector<16x16xf32>
    %cst_19 = arith.constant dense<0.000000e+00> : vector<8x16xf32>
    %44 = tpu.matmul %31, %38, %cst_19 {dimension_numbers = #tpu.dot_dimension_numbers<[1], [0], [0], [1], [0, 0, 1, 1], [], []>} : vector<8x16xf32>, vector<16x16xf32>, vector<8x16xf32> -> vector<8x16xf32>
    %cst_20 = arith.constant dense<0.000000e+00> : vector<8x16xf32>
    %45 = tpu.matmul %31, %43, %cst_20 {dimension_numbers = #tpu.dot_dimension_numbers<[1], [0], [0], [1], [0, 0, 1, 1], [], []>} : vector<8x16xf32>, vector<16x16xf32>, vector<8x16xf32> -> vector<8x16xf32>
    %c0_21 = arith.constant 0 : index
    %c0_22 = arith.constant 0 : index
    %c0_23 = arith.constant 0 : index
    %46 = vector.load %arg4[%c0_21, %c0_22, %c0_23] : memref<3x8x8xf32, #tpu.memory_space<vmem>>, vector<1x8x8xf32>
    %47 = vector.shape_cast %46 : vector<1x8x8xf32> to vector<8x8xf32>
    %cst_24 = arith.constant dense<0.000000e+00> : vector<8x16xf32>
    %48 = tpu.matmul %47, %44, %cst_24 {dimension_numbers = #tpu.dot_dimension_numbers<[1], [0], [0], [1], [0, 0, 1, 1], [], []>} : vector<8x8xf32>, vector<8x16xf32>, vector<8x16xf32> -> vector<8x16xf32>
    %c1_25 = arith.constant 1 : index
    %c0_26 = arith.constant 0 : index
    %c0_27 = arith.constant 0 : index
    %49 = vector.load %arg4[%c1_25, %c0_26, %c0_27] : memref<3x8x8xf32, #tpu.memory_space<vmem>>, vector<1x8x8xf32>
    %50 = vector.shape_cast %49 : vector<1x8x8xf32> to vector<8x8xf32>
    %cst_28 = arith.constant dense<0.000000e+00> : vector<8x16xf32>
    %51 = tpu.matmul %50, %31, %cst_28 {dimension_numbers = #tpu.dot_dimension_numbers<[1], [0], [0], [1], [0, 0, 1, 1], [], []>} : vector<8x8xf32>, vector<8x16xf32>, vector<8x16xf32> -> vector<8x16xf32>
    %52 = arith.addf %48, %51 : vector<8x16xf32>
    %c2_29 = arith.constant 2 : index
    %c0_30 = arith.constant 0 : index
    %c0_31 = arith.constant 0 : index
    %53 = vector.load %arg4[%c2_29, %c0_30, %c0_31] : memref<3x8x8xf32, #tpu.memory_space<vmem>>, vector<1x8x8xf32>
    %54 = vector.shape_cast %53 : vector<1x8x8xf32> to vector<8x8xf32>
    %cst_32 = arith.constant dense<0.000000e+00> : vector<8x16xf32>
    %55 = tpu.matmul %54, %45, %cst_32 {dimension_numbers = #tpu.dot_dimension_numbers<[1], [0], [0], [1], [0, 0, 1, 1], [], []>} : vector<8x8xf32>, vector<8x16xf32>, vector<8x16xf32> -> vector<8x16xf32>
    %56 = arith.addf %52, %55 : vector<8x16xf32>
    %c0_33 = arith.constant 0 : index
    %c0_34 = arith.constant 0 : index
    %57 = vector.load %arg5[%c0_33, %c0_34] : memref<8x1xf32, #tpu.memory_space<vmem>>, vector<8x1xf32>
    %58 = vector.broadcast %57 : vector<8x1xf32> to vector<8x16xf32>
    %59 = arith.addf %56, %58 : vector<8x16xf32>
    %cst_35 = arith.constant 0.000000e+00 : f32
    %60 = vector.broadcast %cst_35 : f32 to vector<8x16xf32>
    %61 = arith.maximumf %59, %60 : vector<8x16xf32>
    %c0_36 = arith.constant 0 : index
    %c0_37 = arith.constant 0 : index
    %c0_38 = arith.constant 0 : index
    %62 = vector.load %arg6[%c0_36, %c0_37, %c0_38] : memref<1x8x16xf32, #tpu.memory_space<vmem>>, vector<1x8x16xf32>
    %63 = vector.shape_cast %62 : vector<1x8x16xf32> to vector<8x16xf32>
    %64 = vector.shape_cast %61 : vector<8x16xf32> to vector<1x8x16xf32>
    tpu.vector_store %arg6[%c0_36, %c0_37, %c0_38], %64 {strides = array<i32>} : memref<1x8x16xf32, #tpu.memory_space<vmem>>, vector<1x8x16xf32>,
    return
  }
  func.func @transform_0(%arg0: i32) -> (i32, i32, i32) {
    %c0_i32 = arith.constant 0 : i32
    %c0_i32_0 = arith.constant 0 : i32
    %c0_i32_1 = arith.constant 0 : i32
    return %arg0, %c0_i32, %c0_i32_0 : i32, i32, i32
  }
  func.func @transform_1(%arg0: i32) -> (i32, i32, i32) {
    %c0_i32 = arith.constant 0 : i32
    %c0_i32_0 = arith.constant 0 : i32
    %c0_i32_1 = arith.constant 0 : i32
    %c0_i32_2 = arith.constant 0 : i32
    return %c0_i32, %c0_i32_0, %c0_i32_1 : i32, i32, i32
  }
  func.func @transform_2(%arg0: i32) -> (i32, i32) {
    %c0_i32 = arith.constant 0 : i32
    %c0_i32_0 = arith.constant 0 : i32
    %c0_i32_1 = arith.constant 0 : i32
    return %c0_i32, %c0_i32_0 : i32, i32
  }
  func.func @transform_3(%arg0: i32) -> (i32, i32, i32) {
    %c0_i32 = arith.constant 0 : i32
    %c0_i32_0 = arith.constant 0 : i32
    %c0_i32_1 = arith.constant 0 : i32
    %c0_i32_2 = arith.constant 0 : i32
    return %c0_i32, %c0_i32_0, %c0_i32_1 : i32, i32, i32
  }
  func.func @transform_4(%arg0: i32) -> (i32, i32) {
    %c0_i32 = arith.constant 0 : i32
    %c0_i32_0 = arith.constant 0 : i32
    %c0_i32_1 = arith.constant 0 : i32
    return %c0_i32, %c0_i32_0 : i32, i32
  }
  func.func @transform_5(%arg0: i32) -> (i32, i32, i32) {
    %c0_i32 = arith.constant 0 : i32
    %c0_i32_0 = arith.constant 0 : i32
    %c0_i32_1 = arith.constant 0 : i32
    return %arg0, %c0_i32, %c0_i32_0 : i32, i32, i32
  }
}

module attributes {stable_mosaic.version = 11 : i64} {
  func.func @_double_conv_kernel(%arg0: i32, %arg1: memref<1x4x16xf32, #tpu.memory_space<vmem>>, %arg2: memref<3x8x4xf32, #tpu.memory_space<vmem>>, %arg3: memref<8x1xf32, #tpu.memory_space<vmem>>, %arg4: memref<3x8x8xf32, #tpu.memory_space<vmem>>, %arg5: memref<8x1xf32, #tpu.memory_space<vmem>>, %arg6: memref<1x8x16xf32, #tpu.memory_space<vmem>>) attributes {dimension_semantics = [#tpu.dimension_semantics<parallel>], iteration_bounds = array<i64: 2>, scalar_prefetch = 0 : i64, scratch_operands = 0 : i64, tpu.core_type = #tpu.core_type<tc>, window_params = [{transform_indices = @transform_0, window_bounds = array<i64: 1, 4, 16>}, {pipeline_mode = #tpu.pipeline_mode<synchronous>, transform_indices = @transform_1, window_bounds = array<i64: 3, 8, 4>}, {pipeline_mode = #tpu.pipeline_mode<synchronous>, transform_indices = @transform_2, window_bounds = array<i64: 8, 1>}, {pipeline_mode = #tpu.pipeline_mode<synchronous>, transform_indices = @transform_3, window_bounds = array<i64: 3, 8, 8>}, {pipeline_mode = #tpu.pipeline_mode<synchronous>, transform_indices = @transform_4, window_bounds = array<i64: 8, 1>}, {transform_indices = @transform_5, window_bounds = array<i64: 1, 8, 16>}]} {
    %c0 = arith.constant 0 : index
    %c0_0 = arith.constant 0 : index
    %c0_1 = arith.constant 0 : index
    %0 = vector.load %arg1[%c0, %c0_0, %c0_1] : memref<1x4x16xf32, #tpu.memory_space<vmem>>, vector<1x4x16xf32>
    %1 = vector.shape_cast %0 : vector<1x4x16xf32> to vector<4x16xf32>
    %2 = tpu.iota {dimensions = array<i32: 0>} : vector<16x16xi32>
    %3 = tpu.iota {dimensions = array<i32: 1>} : vector<16x16xi32>
    %c1_i32 = arith.constant 1 : i32
    %4 = vector.broadcast %c1_i32 : i32 to vector<16x16xi32>
    %5 = arith.subi %3, %4 : vector<16x16xi32>
    %6 = arith.cmpi eq, %2, %5 : vector<16x16xi32>
    %7 = arith.extui %6 : vector<16x16xi1> to vector<16x16xi32>
    %8 = arith.sitofp %7 : vector<16x16xi32> to vector<16x16xf32>
    %c1_i32_2 = arith.constant 1 : i32
    %9 = vector.broadcast %c1_i32_2 : i32 to vector<16x16xi32>
    %10 = arith.addi %3, %9 : vector<16x16xi32>
    %11 = arith.cmpi eq, %2, %10 : vector<16x16xi32>
    %12 = arith.extui %11 : vector<16x16xi1> to vector<16x16xi32>
    %13 = arith.sitofp %12 : vector<16x16xi32> to vector<16x16xf32>
    %cst = arith.constant dense<0.000000e+00> : vector<4x16xf32>
    %14 = tpu.matmul %1, %8, %cst {dimension_numbers = #tpu.dot_dimension_numbers<[1], [0], [0], [1], [0, 0, 1, 1], [], []>} : vector<4x16xf32>, vector<16x16xf32>, vector<4x16xf32> -> vector<4x16xf32>
    %cst_3 = arith.constant dense<0.000000e+00> : vector<4x16xf32>
    %15 = tpu.matmul %1, %13, %cst_3 {dimension_numbers = #tpu.dot_dimension_numbers<[1], [0], [0], [1], [0, 0, 1, 1], [], []>} : vector<4x16xf32>, vector<16x16xf32>, vector<4x16xf32> -> vector<4x16xf32>
    %c0_4 = arith.constant 0 : index
    %c0_5 = arith.constant 0 : index
    %c0_6 = arith.constant 0 : index
    %16 = vector.load %arg2[%c0_4, %c0_5, %c0_6] : memref<3x8x4xf32, #tpu.memory_space<vmem>>, vector<1x8x4xf32>
    %17 = vector.shape_cast %16 : vector<1x8x4xf32> to vector<8x4xf32>
    %cst_7 = arith.constant dense<0.000000e+00> : vector<8x16xf32>
    %18 = tpu.matmul %17, %14, %cst_7 {dimension_numbers = #tpu.dot_dimension_numbers<[1], [0], [0], [1], [0, 0, 1, 1], [], []>} : vector<8x4xf32>, vector<4x16xf32>, vector<8x16xf32> -> vector<8x16xf32>
    %c1 = arith.constant 1 : index
    %c0_8 = arith.constant 0 : index
    %c0_9 = arith.constant 0 : index
    %19 = vector.load %arg2[%c1, %c0_8, %c0_9] : memref<3x8x4xf32, #tpu.memory_space<vmem>>, vector<1x8x4xf32>
    %20 = vector.shape_cast %19 : vector<1x8x4xf32> to vector<8x4xf32>
    %cst_10 = arith.constant dense<0.000000e+00> : vector<8x16xf32>
    %21 = tpu.matmul %20, %1, %cst_10 {dimension_numbers = #tpu.dot_dimension_numbers<[1], [0], [0], [1], [0, 0, 1, 1], [], []>} : vector<8x4xf32>, vector<4x16xf32>, vector<8x16xf32> -> vector<8x16xf32>
    %22 = arith.addf %18, %21 : vector<8x16xf32>
    %c2 = arith.constant 2 : index
    %c0_11 = arith.constant 0 : index
    %c0_12 = arith.constant 0 : index
    %23 = vector.load %arg2[%c2, %c0_11, %c0_12] : memref<3x8x4xf32, #tpu.memory_space<vmem>>, vector<1x8x4xf32>
    %24 = vector.shape_cast %23 : vector<1x8x4xf32> to vector<8x4xf32>
    %cst_13 = arith.constant dense<0.000000e+00> : vector<8x16xf32>
    %25 = tpu.matmul %24, %15, %cst_13 {dimension_numbers = #tpu.dot_dimension_numbers<[1], [0], [0], [1], [0, 0, 1, 1], [], []>} : vector<8x4xf32>, vector<4x16xf32>, vector<8x16xf32> -> vector<8x16xf32>
    %26 = arith.addf %22, %25 : vector<8x16xf32>
    %c0_14 = arith.constant 0 : index
    %c0_15 = arith.constant 0 : index
    %27 = vector.load %arg3[%c0_14, %c0_15] : memref<8x1xf32, #tpu.memory_space<vmem>>, vector<8x1xf32>
    %28 = vector.broadcast %27 : vector<8x1xf32> to vector<8x16xf32>
    %29 = arith.addf %26, %28 : vector<8x16xf32>
    %cst_16 = arith.constant 0.000000e+00 : f32
    %30 = vector.broadcast %cst_16 : f32 to vector<8x16xf32>
    %31 = arith.maximumf %29, %30 : vector<8x16xf32>
    %32 = tpu.iota {dimensions = array<i32: 0>} : vector<16x16xi32>
    %33 = tpu.iota {dimensions = array<i32: 1>} : vector<16x16xi32>
    %c1_i32_17 = arith.constant 1 : i32
    %34 = vector.broadcast %c1_i32_17 : i32 to vector<16x16xi32>
    %35 = arith.subi %33, %34 : vector<16x16xi32>
    %36 = arith.cmpi eq, %32, %35 : vector<16x16xi32>
    %37 = arith.extui %36 : vector<16x16xi1> to vector<16x16xi32>
    %38 = arith.sitofp %37 : vector<16x16xi32> to vector<16x16xf32>
    %c1_i32_18 = arith.constant 1 : i32
    %39 = vector.broadcast %c1_i32_18 : i32 to vector<16x16xi32>
    %40 = arith.addi %33, %39 : vector<16x16xi32>
    %41 = arith.cmpi eq, %32, %40 : vector<16x16xi32>
    %42 = arith.extui %41 : vector<16x16xi1> to vector<16x16xi32>
    %43 = arith.sitofp %42 : vector<16x16xi32> to vector<16x16xf32>
    %cst_19 = arith.constant dense<0.000000e+00> : vector<8x16xf32>
    %44 = tpu.matmul %31, %38, %cst_19 {dimension_numbers = #tpu.dot_dimension_numbers<[1], [0], [0], [1], [0, 0, 1, 1], [], []>} : vector<8x16xf32>, vector<16x16xf32>, vector<8x16xf32> -> vector<8x16xf32>
    %cst_20 = arith.constant dense<0.000000e+00> : vector<8x16xf32>
    %45 = tpu.matmul %31, %43, %cst_20 {dimension_numbers = #tpu.dot_dimension_numbers<[1], [0], [0], [1], [0, 0, 1, 1], [], []>} : vector<8x16xf32>, vector<16x16xf32>, vector<8x16xf32> -> vector<8x16xf32>
    %c0_21 = arith.constant 0 : index
    %c0_22 = arith.constant 0 : index
    %c0_23 = arith.constant 0 : index
    %46 = vector.load %arg4[%c0_21, %c0_22, %c0_23] : memref<3x8x8xf32, #tpu.memory_space<vmem>>, vector<1x8x8xf32>
    %47 = vector.shape_cast %46 : vector<1x8x8xf32> to vector<8x8xf32>
    %cst_24 = arith.constant dense<0.000000e+00> : vector<8x16xf32>
    %48 = tpu.matmul %47, %44, %cst_24 {dimension_numbers = #tpu.dot_dimension_numbers<[1], [0], [0], [1], [0, 0, 1, 1], [], []>} : vector<8x8xf32>, vector<8x16xf32>, vector<8x16xf32> -> vector<8x16xf32>
    %c1_25 = arith.constant 1 : index
    %c0_26 = arith.constant 0 : index
    %c0_27 = arith.constant 0 : index
    %49 = vector.load %arg4[%c1_25, %c0_26, %c0_27] : memref<3x8x8xf32, #tpu.memory_space<vmem>>, vector<1x8x8xf32>
    %50 = vector.shape_cast %49 : vector<1x8x8xf32> to vector<8x8xf32>
    %cst_28 = arith.constant dense<0.000000e+00> : vector<8x16xf32>
    %51 = tpu.matmul %50, %31, %cst_28 {dimension_numbers = #tpu.dot_dimension_numbers<[1], [0], [0], [1], [0, 0, 1, 1], [], []>} : vector<8x8xf32>, vector<8x16xf32>, vector<8x16xf32> -> vector<8x16xf32>
    %52 = arith.addf %48, %51 : vector<8x16xf32>
    %c2_29 = arith.constant 2 : index
    %c0_30 = arith.constant 0 : index
    %c0_31 = arith.constant 0 : index
    %53 = vector.load %arg4[%c2_29, %c0_30, %c0_31] : memref<3x8x8xf32, #tpu.memory_space<vmem>>, vector<1x8x8xf32>
    %54 = vector.shape_cast %53 : vector<1x8x8xf32> to vector<8x8xf32>
    %cst_32 = arith.constant dense<0.000000e+00> : vector<8x16xf32>
    %55 = tpu.matmul %54, %45, %cst_32 {dimension_numbers = #tpu.dot_dimension_numbers<[1], [0], [0], [1], [0, 0, 1, 1], [], []>} : vector<8x8xf32>, vector<8x16xf32>, vector<8x16xf32> -> vector<8x16xf32>
    %56 = arith.addf %52, %55 : vector<8x16xf32>
    %c0_33 = arith.constant 0 : index
    %c0_34 = arith.constant 0 : index
    %57 = vector.load %arg5[%c0_33, %c0_34] : memref<8x1xf32, #tpu.memory_space<vmem>>, vector<8x1xf32>
    %58 = vector.broadcast %57 : vector<8x1xf32> to vector<8x16xf32>
    %59 = arith.addf %56, %58 : vector<8x16xf32>
    %cst_35 = arith.constant 0.000000e+00 : f32
    %60 = vector.broadcast %cst_35 : f32 to vector<8x16xf32>
    %61 = arith.maximumf %59, %60 : vector<8x16xf32>
    %c0_36 = arith.constant 0 : index
    %c0_37 = arith.constant 0 : index
    %c0_38 = arith.constant 0 : index
    %62 = vector.load %arg6[%c0_36, %c0_37, %c0_38] : memref<1x8x16xf32, #tpu.memory_space<vmem>>, vector<1x8x16xf32>
    %63 = vector.shape_cast %62 : vector<1x8x16xf32> to vector<8x16xf32>
    %64 = vector.shape_cast %61 : vector<8x16xf32> to vector<1x8x16xf32>
    tpu.vector_store %arg6[%c0_36, %c0_37, %c0_38], %64 {strides = array<i32>} : memref<1x8x16xf32, #tpu.memory_space<vmem>>, vector<1x8x16xf32>,
    return
  }
  func.func @transform_0(%arg0: i32) -> (i32, i32, i32) {
    %c0_i32 = arith.constant 0 : i32
    %c0_i32_0 = arith.constant 0 : i32
    %c0_i32_1 = arith.constant 0 : i32
    return %arg0, %c0_i32, %c0_i32_0 : i32, i32, i32
  }
  func.func @transform_1(%arg0: i32) -> (i32, i32, i32) {
    %c0_i32 = arith.constant 0 : i32
    %c0_i32_0 = arith.constant 0 : i32
    %c0_i32_1 = arith.constant 0 : i32
    %c0_i32_2 = arith.constant 0 : i32
    return %c0_i32, %c0_i32_0, %c0_i32_1 : i32, i32, i32
  }
  func.func @transform_2(%arg0: i32) -> (i32, i32) {
    %c0_i32 = arith.constant 0 : i32
    %c0_i32_0 = arith.constant 0 : i32
    %c0_i32_1 = arith.constant 0 : i32
    return %c0_i32, %c0_i32_0 : i32, i32
  }
  func.func @transform_3(%arg0: i32) -> (i32, i32, i32) {
    %c0_i32 = arith.constant 0 : i32
    %c0_i32_0 = arith.constant 0 : i32
    %c0_i32_1 = arith.constant 0 : i32
    %c0_i32_2 = arith.constant 0 : i32
    return %c0_i32, %c0_i32_0, %c0_i32_1 : i32, i32, i32
  }
  func.func @transform_4(%arg0: i32) -> (i32, i32) {
    %c0_i32 = arith.constant 0 : i32
    %c0_i32_0 = arith.constant 0 : i32
    %c0_i32_1 = arith.constant 0 : i32
    return %c0_i32, %c0_i32_0 : i32, i32
  }
  func.func @transform_5(%arg0: i32) -> (i32, i32, i32) {
    %c0_i32 = arith.constant 0 : i32
    %c0_i32_0 = arith.constant 0 : i32
    %c0_i32_1 = arith.constant 0 : i32
    return %arg0, %c0_i32, %c0_i32_0 : i32, i32, i32
  }
}

</mosaic_0001>

<llo_original>
// kernel: tpu_custom_call.1
$region0: #{tpu_custom_call.1}
  #allocation0 [shape = 'u32[]', space=smem, size = 0x4, offset = 0x4, fixed_abs, tag = 'smem constant byte address 0x4 - core index']
  #allocation1 [shape = 'u32[144,128]{1,0:T(1,128)}', space=vmem, size = 0x12000, scoped, tag = 'internal scratch']
  %s0 = inlined_call_operand.vmem [shape: f32[2,4,16], index: 0, kind: input, shape index: {}]
  %s1 = inlined_call_operand.vmem [shape: f32[3,8,4], index: 1, kind: input, shape index: {}]
  %s2 = inlined_call_operand.vmem [shape: f32[8,1], index: 2, kind: input, shape index: {}]
  %s3 = inlined_call_operand.vmem [shape: f32[3,8,8], index: 3, kind: input, shape index: {}]
  %s4 = inlined_call_operand.vmem [shape: f32[8,1], index: 4, kind: input, shape index: {}]
  %s5 = inlined_call_operand.hbm [shape: f32[2,8,16], index: 5, kind: output, shape index: {}]
  %s6 = sld [smem:[#allocation0]]
  $region53: #{tpu_custom_call.1} parent=0
    _
  %s8 = ssub.s32 1, %s6
  %s9 = scalar_select 0, %s8, %s6
  $region1: #{tpu_custom_call.1} parent=0
    #allocation2 [shape = 'u8[8192]{0}', space=vmem, size = 0x2000, scoped, tag = 'output window, operand 0']
    #allocation3 [shape = 's32[2]{0}', space=sflag, size = 0x8, scoped, tag = 'scoped memory for tpu_custom_call.1']
    %10 = vsyncpa [#allocation3], 0
    %s11 = scalar_lea.sflag [#allocation3], 1
    %12 = vsyncpa %s11, 0
    loop: start=0, step=1, limit=4
    $region2: #{tpu_custom_call.1} parent=1 // loop_pre_header
      _
    $region3: #{tpu_custom_call.1} parent=1 // loop_header
      %s14 = sphi 0, %s18
      %p15 = scmp.ge.s32.totalorder %s14, 4
      %s24 = sphi 0, %s26
      %s27 = sphi 0, %s24
      %s28 = sphi 0, %s27
      %s44 = sphi 0, %s28
      %s48 = sphi 0, %s48
      %s50 = sphi 0, %s48
      %s51 = sphi 0, %s50
      %s65 = sphi 0, %s51
      %s69 = sphi 0, %s69
      %s71 = sphi 0, %s69
      %s72 = sphi 0, %s71
      %s86 = sphi 0, %s72
      %s90 = sphi 0, %s90
      %s92 = sphi 0, %s90
      %s93 = sphi 0, %s92
      %s107 = sphi 0, %s93
      %s111 = sphi 0, %s111
      %s113 = sphi 0, %s111
      %s114 = sphi 0, %s113
      %s128 = sphi 0, %s114
      %s134 = sphi 0, %s136
      %s137 = sphi 0, %s134
      %s138 = sphi 0, %s137
      %s154 = sphi 0, %s138
    $region4: #{tpu_custom_call.1} parent=1 // loop_header_branch
      %17 = sbr.rel (%p15) target = $region8
    $region5: #{tpu_custom_call.1} parent=1 // loop_body
      %s19 = ssub.s32 %s14, 1
      %s20 = ssub.s32 %s14, 2
      %s21 = sadd.s32 %s14, 1
      %s22 = ssub.s32 %s14, %s21
      %p23 = scmp.eq.s32.totalorder %s22, 0
      %s25 = sadd.s32 %s24, 1
      %s26 = scalar_select %p23, %s24, %s25
      %p29 = pneg %p23
      %p30 = scmp.eq.s32.totalorder %s14, 1
      %p31 = por %p29, %p30
      %p32 = scmp.ne.s32.totalorder %s24, %s27
      %p33 = scmp.eq.s32.totalorder %s14, 0
      %p34 = por %p32, %p33
      %p35 = scmp.ne.s32.totalorder %s24, %s27
      %p36 = scmp.eq.s32.totalorder %s19, 1
      %p37 = por %p35, %p36
      %p38 = scmp.ne.s32.totalorder %s27, %s28
      %p39 = scmp.eq.s32.totalorder %s19, 0
      %p40 = por %p38, %p39
      %p41 = scmp.ne.s32.totalorder %s27, %s28
      %p42 = scmp.eq.s32.totalorder %s20, 1
      %p43 = por %p41, %p42
      %p45 = scmp.ne.s32.totalorder %s28, %s44
      %p46 = scmp.eq.s32.totalorder %s20, 0
      %p47 = por %p45, %p46
      %s49 = sadd.s32 %s48, 1
      %p52 = scmp.eq.s32.totalorder %s14, 1
      %p53 = scmp.ne.s32.totalorder %s48, %s50
      %p54 = scmp.eq.s32.totalorder %s14, 0
      %p55 = por %p53, %p54
      %p56 = scmp.ne.s32.totalorder %s48, %s50
      %p57 = scmp.eq.s32.totalorder %s19, 1
      %p58 = por %p56, %p57
      %p59 = scmp.ne.s32.totalorder %s50, %s51
      %p60 = scmp.eq.s32.totalorder %s19, 0
      %p61 = por %p59, %p60
      %p62 = scmp.ne.s32.totalorder %s50, %s51
      %p63 = scmp.eq.s32.totalorder %s20, 1
      %p64 = por %p62, %p63
      %p66 = scmp.ne.s32.totalorder %s51, %s65
      %p67 = scmp.eq.s32.totalorder %s20, 0
      %p68 = por %p66, %p67
      %s70 = sadd.s32 %s69, 1
      %p73 = scmp.eq.s32.totalorder %s14, 1
      %p74 = scmp.ne.s32.totalorder %s69, %s71
      %p75 = scmp.eq.s32.totalorder %s14, 0
      %p76 = por %p74, %p75
      %p77 = scmp.ne.s32.totalorder %s69, %s71
      %p78 = scmp.eq.s32.totalorder %s19, 1
      %p79 = por %p77, %p78
      %p80 = scmp.ne.s32.totalorder %s71, %s72
      %p81 = scmp.eq.s32.totalorder %s19, 0
      %p82 = por %p80, %p81
      %p83 = scmp.ne.s32.totalorder %s71, %s72
      %p84 = scmp.eq.s32.totalorder %s20, 1
      %p85 = por %p83, %p84
      %p87 = scmp.ne.s32.totalorder %s72, %s86
      %p88 = scmp.eq.s32.totalorder %s20, 0
      %p89 = por %p87, %p88
      %s91 = sadd.s32 %s90, 1
      %p94 = scmp.eq.s32.totalorder %s14, 1
      %p95 = scmp.ne.s32.totalorder %s90, %s92
      %p96 = scmp.eq.s32.totalorder %s14, 0
      %p97 = por %p95, %p96
      %p98 = scmp.ne.s32.totalorder %s90, %s92
      %p99 = scmp.eq.s32.totalorder %s19, 1
      %p100 = por %p98, %p99
      %p101 = scmp.ne.s32.totalorder %s92, %s93
      %p102 = scmp.eq.s32.totalorder %s19, 0
      %p103 = por %p101, %p102
      %p104 = scmp.ne.s32.totalorder %s92, %s93
      %p105 = scmp.eq.s32.totalorder %s20, 1
      %p106 = por %p104, %p105
      %p108 = scmp.ne.s32.totalorder %s93, %s107
      %p109 = scmp.eq.s32.totalorder %s20, 0
      %p110 = por %p108, %p109
      %s112 = sadd.s32 %s111, 1
      %p115 = scmp.eq.s32.totalorder %s14, 1
      %p116 = scmp.ne.s32.totalorder %s111, %s113
      %p117 = scmp.eq.s32.totalorder %s14, 0
      %p118 = por %p116, %p117
      %p119 = scmp.ne.s32.totalorder %s111, %s113
      %p120 = scmp.eq.s32.totalorder %s19, 1
      %p121 = por %p119, %p120
      %p122 = scmp.ne.s32.totalorder %s113, %s114
      %p123 = scmp.eq.s32.totalorder %s19, 0
      %p124 = por %p122, %p123
      %p125 = scmp.ne.s32.totalorder %s113, %s114
      %p126 = scmp.eq.s32.totalorder %s20, 1
      %p127 = por %p125, %p126
      %p129 = scmp.ne.s32.totalorder %s114, %s128
      %p130 = scmp.eq.s32.totalorder %s20, 0
      %p131 = por %p129, %p130
      %s132 = ssub.s32 %s14, %s21
      %p133 = scmp.eq.s32.totalorder %s132, 0
      %s135 = sadd.s32 %s134, 1
      %s136 = scalar_select %p133, %s134, %s135
      %p139 = pneg %p133
      %p140 = scmp.eq.s32.totalorder %s14, 1
      %p141 = por %p139, %p140
      %p142 = scmp.ne.s32.totalorder %s134, %s137
      %p143 = scmp.eq.s32.totalorder %s14, 0
      %p144 = por %p142, %p143
      %p145 = scmp.ne.s32.totalorder %s134, %s137
      %p146 = scmp.eq.s32.totalorder %s19, 1
      %p147 = por %p145, %p146
      %p148 = scmp.ne.s32.totalorder %s137, %s138
      %p149 = scmp.eq.s32.totalorder %s19, 0
      %p150 = por %p148, %p149
      %p151 = scmp.ne.s32.totalorder %s137, %s138
      %p152 = scmp.eq.s32.totalorder %s20, 1
      %p153 = por %p151, %p152
      %p155 = scmp.ne.s32.totalorder %s138, %s154
      %p156 = scmp.eq.s32.totalorder %s20, 0
      %p157 = por %p155, %p156
      %p158 = scmp.le.s32.totalorder 1, %s14
      %p159 = scmp.lt.s32.totalorder %s14, 3
      %p160 = pnand %p158, %p159
      %p161 = pneg %p160
      // Predicated region
      $region9: #{tpu_custom_call.1} parent=5 // pred_check
        _
      $region10: #{tpu_custom_call.1} parent=5 // pred_check_branch
        %163 = sbr.rel (%p160) target = $region12
      $region11: #{tpu_custom_call.1} parent=5 // pred_region
        %s164 = ssub.s32 %s14, 1
        // Predicated region
        $region13: #{tpu_custom_call.1} parent=11 // pred_check
          %p165 = pneg %p61
        $region14: #{tpu_custom_call.1} parent=11 // pred_check_branch
          %167 = sbr.rel (%p165) target = $region16
        $region15: #{tpu_custom_call.1} parent=11 // pred_region
          _
        $region16: #{tpu_custom_call.1} parent=11 // pred_fallthru
          _
        // Predicated region
        $region17: #{tpu_custom_call.1} parent=11 // pred_check
          %p168 = pneg %p82
        $region18: #{tpu_custom_call.1} parent=11 // pred_check_branch
          %170 = sbr.rel (%p168) target = $region20
        $region19: #{tpu_custom_call.1} parent=11 // pred_region
          _
        $region20: #{tpu_custom_call.1} parent=11 // pred_fallthru
          _
        // Predicated region
        $region21: #{tpu_custom_call.1} parent=11 // pred_check
          %p171 = pneg %p103
        $region22: #{tpu_custom_call.1} parent=11 // pred_check_branch
          %173 = sbr.rel (%p171) target = $region24
        $region23: #{tpu_custom_call.1} parent=11 // pred_region
          _
        $region24: #{tpu_custom_call.1} parent=11 // pred_fallthru
          _
        // Predicated region
        $region25: #{tpu_custom_call.1} parent=11 // pred_check
          %p174 = pneg %p124
        $region26: #{tpu_custom_call.1} parent=11 // pred_check_branch
          %176 = sbr.rel (%p174) target = $region28
        $region27: #{tpu_custom_call.1} parent=11 // pred_region
          _
        $region28: #{tpu_custom_call.1} parent=11 // pred_fallthru
          _
      $region12: #{tpu_custom_call.1} parent=5 // pred_fallthru
        _
      %p177 = scmp.lt.s32.totalorder %s14, 2
      // Predicated region
      $region29: #{tpu_custom_call.1} parent=5 // pred_check
        %p178 = pneg %p177
      $region30: #{tpu_custom_call.1} parent=5 // pred_check_branch
        %180 = sbr.rel (%p178) target = $region32
      $region31: #{tpu_custom_call.1} parent=5 // pred_region
        // Predicated region
        $region33: #{tpu_custom_call.1} parent=31 // pred_check
          %p181 = pneg %p34
        $region34: #{tpu_custom_call.1} parent=31 // pred_check_branch
          %183 = sbr.rel (%p181) target = $region36
        $region35: #{tpu_custom_call.1} parent=31 // pred_region
          %p184 = scmp.lt.s32.totalorder %s14, 1
          %s185 = scalar_select %p184, %s14, 1
          %s186 = smul.addr %s185, 4
          %s187 = scalar_lea.vmem %s0, %s186
        $region36: #{tpu_custom_call.1} parent=31 // pred_fallthru
          _
      $region32: #{tpu_custom_call.1} parent=5 // pred_fallthru
        _
      %p188 = scmp.le.s32.totalorder 1, %s14
      %p189 = scmp.lt.s32.totalorder %s14, 3
      %p190 = pnand %p188, %p189
      %p191 = pneg %p190
      // Predicated region
      $region37: #{tpu_custom_call.1} parent=5 // pred_check
        _
      $region38: #{tpu_custom_call.1} parent=5 // pred_check_branch
        %193 = sbr.rel (%p190) target = $region40
      $region39: #{tpu_custom_call.1} parent=5 // pred_region
        %s194 = ssub.s32 %s14, 1
        %p195 = scmp.lt.s32.totalorder %s19, 1
        %s196 = scalar_select %p195, %s19, 1
        %s197 = smul.addr %s196, 4
        %s198 = scalar_lea.vmem %s0, %s197
        %p199 = pneg %p40
        %p200 = pneg %p37
        %p201 = pneg %p61
        %p202 = pneg %p58
        %p203 = pneg %p82
        %p204 = pneg %p79
        %p205 = pneg %p103
        %p206 = pneg %p100
        %p207 = pneg %p124
        %p208 = pneg %p121
        %p209 = pneg %p150
        %p210 = pneg %p147
        %s211 = sand.u32 %s137, 1
        %s212 = scalar_lea.sflag [#allocation3], %s211
        %s213 = sand.u32 %s137, 1
        %s214 = smul.addr %s213, 8
        %s215 = scalar_lea.vmem [#allocation2], %s214
        %p216 = scmp.lt.s32.totalorder %s19, 1
        %s217 = scalar_select %p216, %s19, 1
        %s218 = smul.addr %s217, 4
        %s219 = scalar_lea.vmem %s0, %s218
        %v220 = vld [vmem:[%s219] sm:$0xf]
        %v221 = vlaneseq
        %v222 = vshrl.u32 %v221, 7
        %v223 = vadd.s32 %v222, 8
        %v224 = vlaneseq
        %v225 = vand.u32 %v224, 127
        %v226 = vsub.s32 %v225, 1
        %vm227 = vcmp.eq.s32.totalorder %v222, %v226
        %vm228 = vcmp.eq.s32.totalorder %v223, %v226
        %v229 = vsel %vm227, 1, 0
        %v230 = vsel %vm228, 1, 0
        %v231 = vcvt.s32.f32 %v229
        %v232 = vcvt.s32.f32 %v230
        %v233 = vadd.s32 %v225, 1
        %vm234 = vcmp.eq.s32.totalorder %v222, %v233
        %vm235 = vcmp.eq.s32.totalorder %v223, %v233
        %v236 = vsel %vm234, 1, 0
        %v237 = vsel %vm235, 1, 0
        %v238 = vcvt.s32.f32 %v236
        %v239 = vcvt.s32.f32 %v237
        %vm240 = vcmask 130048
        %v242 = vsel %vm240, %v220, 0
        %244 = vmatprep.subr.mxu0 0.0
        %245 = vmatpush1.msra.mxu0 %v231
        %246 = vmatprep.subr.mxu0 0.0
        %247 = vmatpush1.msra.mxu0 %v232
        %248 = vmatprep.subr.mxu0 0.0
        %249 = vmatpush1.msra.mxu0 0.0
        %250 = vmatprep.subr.mxu0 0.0
        %251 = vmatpush1.msra.mxu0 0.0
        %252 = vmatprep.subr.mxu0 0.0
        %253 = vmatpush1.msra.mxu0 0.0
        %254 = vmatprep.subr.mxu0 0.0
        %255 = vmatpush1.msra.mxu0 0.0
        %256 = vmatprep.subr.mxu0 0.0
        %257 = vmatpush1.msra.mxu0 0.0
        %258 = vmatprep.subr.mxu0 0.0
        %259 = vmatpush1.msra.mxu0 0.0
        %260 = vmatprep.subr.mxu0 0.0
        %261 = vmatpush1.msra.mxu0 0.0
        %262 = vmatprep.subr.mxu0 0.0
        %263 = vmatpush1.msra.mxu0 0.0
        %264 = vmatprep.subr.mxu0 0.0
        %265 = vmatpush1.msra.mxu0 0.0
        %266 = vmatprep.subr.mxu0 0.0
        %267 = vmatpush1.msra.mxu0 0.0
        %268 = vmatprep.subr.mxu0 0.0
        %269 = vmatpush1.msra.mxu0 0.0
        %270 = vmatprep.subr.mxu0 0.0
        %271 = vmatpush1.msra.mxu0 0.0
        %272 = vmatprep.subr.mxu0 0.0
        %273 = vmatpush1.msra.mxu0 0.0
        %274 = vmatprep.subr.mxu0 0.0
        %275 = vmatpush1.msra.mxu0 0.0
        %276 = vmatprep.subr.mxu0 0.0
        %277 = vmatpush1.msra.mxu0 0.0
        %278 = vmatprep.subr.mxu0 0.0
        %279 = vmatpush1.msra.mxu0 0.0
        %280 = vmatprep.subr.mxu0 0.0
        %281 = vmatpush1.msra.mxu0 0.0
        %282 = vmatprep.subr.mxu0 0.0
        %283 = vmatpush1.msra.mxu0 0.0
        %284 = vmatprep.subr.mxu0 0.0
        %285 = vmatpush1.msra.mxu0 0.0
        %286 = vmatprep.subr.mxu0 0.0
        %287 = vmatpush1.msra.mxu0 0.0
        %288 = vmatprep.subr.mxu0 0.0
        %289 = vmatpush1.msra.mxu0 0.0
        %290 = vmatprep.subr.mxu0 0.0
        %291 = vmatpush1.msra.mxu0 0.0
        %292 = vmatprep.subr.mxu0 0.0
        %293 = vmatpush1.msra.mxu0 0.0
        %294 = vmatprep.subr.mxu0 0.0
        %295 = vmatpush1.msra.mxu0 0.0
        %296 = vmatprep.subr.mxu0 0.0
        %297 = vmatpush1.msra.mxu0 0.0
        %298 = vmatprep.subr.mxu0 0.0
        %299 = vmatpush1.msra.mxu0 0.0
        %300 = vmatprep.subr.mxu0 0.0
        %301 = vmatpush1.msra.mxu0 0.0
        %302 = vmatprep.subr.mxu0 0.0
        %303 = vmatpush1.msra.mxu0 0.0
        %304 = vmatprep.subr.mxu0 0.0
        %305 = vmatpush1.msra.mxu0 0.0
        %306 = vmatprep.subr.mxu0 0.0
        %307 = vmatpush1.msra.mxu0 0.0
        %308 = vmatprep.mubr.f32.mxu0 0.0
        %309 = vmatmul.mubr.f32.gmra.mrb[0].mxu0 %v242
        %v310 = vpop.f32.mrb[0].mxu0
        %v311 = vadd.f32 0.0, %v310
        %v312 = vpop.f32.mrb[0].mxu0
        %313 = vdwg.mxu0
        %314 = vmatprep.subr.mxu0 0.0
        %315 = vmatpush1.msra.mxu0 %v238
        %316 = vmatprep.subr.mxu0 0.0
        %317 = vmatpush1.msra.mxu0 %v239
        %318 = vmatprep.subr.mxu0 0.0
        %319 = vmatpush1.msra.mxu0 0.0
        %320 = vmatprep.subr.mxu0 0.0
        %321 = vmatpush1.msra.mxu0 0.0
        %322 = vmatprep.subr.mxu0 0.0
        %323 = vmatpush1.msra.mxu0 0.0
        %324 = vmatprep.subr.mxu0 0.0
        %325 = vmatpush1.msra.mxu0 0.0
        %326 = vmatprep.subr.mxu0 0.0
        %327 = vmatpush1.msra.mxu0 0.0
        %328 = vmatprep.subr.mxu0 0.0
        %329 = vmatpush1.msra.mxu0 0.0
        %330 = vmatprep.subr.mxu0 0.0
        %331 = vmatpush1.msra.mxu0 0.0
        %332 = vmatprep.subr.mxu0 0.0
        %333 = vmatpush1.msra.mxu0 0.0
        %334 = vmatprep.subr.mxu0 0.0
        %335 = vmatpush1.msra.mxu0 0.0
        %336 = vmatprep.subr.mxu0 0.0
        %337 = vmatpush1.msra.mxu0 0.0
        %338 = vmatprep.subr.mxu0 0.0
        %339 = vmatpush1.msra.mxu0 0.0
        %340 = vmatprep.subr.mxu0 0.0
        %341 = vmatpush1.msra.mxu0 0.0
        %342 = vmatprep.subr.mxu0 0.0
        %343 = vmatpush1.msra.mxu0 0.0
        %344 = vmatprep.subr.mxu0 0.0
        %345 = vmatpush1.msra.mxu0 0.0
        %346 = vmatprep.subr.mxu0 0.0
        %347 = vmatpush1.msra.mxu0 0.0
        %348 = vmatprep.subr.mxu0 0.0
        %349 = vmatpush1.msra.mxu0 0.0
        %350 = vmatprep.subr.mxu0 0.0
        %351 = vmatpush1.msra.mxu0 0.0
        %352 = vmatprep.subr.mxu0 0.0
        %353 = vmatpush1.msra.mxu0 0.0
        %354 = vmatprep.subr.mxu0 0.0
        %355 = vmatpush1.msra.mxu0 0.0
        %356 = vmatprep.subr.mxu0 0.0
        %357 = vmatpush1.msra.mxu0 0.0
        %358 = vmatprep.subr.mxu0 0.0
        %359 = vmatpush1.msra.mxu0 0.0
        %360 = vmatprep.subr.mxu0 0.0
        %361 = vmatpush1.msra.mxu0 0.0
        %362 = vmatprep.subr.mxu0 0.0
        %363 = vmatpush1.msra.mxu0 0.0
        %364 = vmatprep.subr.mxu0 0.0
        %365 = vmatpush1.msra.mxu0 0.0
        %366 = vmatprep.subr.mxu0 0.0
        %367 = vmatpush1.msra.mxu0 0.0
        %368 = vmatprep.subr.mxu0 0.0
        %369 = vmatpush1.msra.mxu0 0.0
        %370 = vmatprep.subr.mxu0 0.0
        %371 = vmatpush1.msra.mxu0 0.0
        %372 = vmatprep.subr.mxu0 0.0
        %373 = vmatpush1.msra.mxu0 0.0
        %374 = vmatprep.subr.mxu0 0.0
        %375 = vmatpush1.msra.mxu0 0.0
        %376 = vmatprep.subr.mxu0 0.0
        %377 = vmatpush1.msra.mxu0 0.0
        %378 = vmatprep.mubr.f32.mxu0 0.0
        %379 = vmatmul.mubr.f32.gmra.mrb[0].mxu0 %v242
        %v380 = vpop.f32.mrb[0].mxu0
        %v381 = vadd.f32 0.0, %v380
        %v382 = vpop.f32.mrb[0].mxu0
        %383 = vdwg.mxu0
        %v384 = vld [vmem:[%s1] sm:$0xff]
        %s385 = scalar_lea.vmem %s1, 8
        %v386 = vld [vmem:[%s385] sm:$0xff]
        %vm387 = vcmask 31744
        %v389 = vsel %vm387, %v386, 0
        %vm391 = vcmask 1043456
        %v392 = vsel %vm391, %v220, 0
        %394 = vmatprep.subr.mxu0 0.0
        %395 = vmatpush1.msra.mxu0 %v392
        %396 = vmatprep.subr.mxu0 0.0
        %397 = vmatpush1.msra.mxu0 0.0
        %398 = vmatprep.subr.mxu0 0.0
        %399 = vmatpush1.msra.mxu0 0.0
        %400 = vmatprep.subr.mxu0 0.0
        %401 = vmatpush1.msra.mxu0 0.0
        %402 = vmatprep.subr.mxu0 0.0
        %403 = vmatpush1.msra.mxu0 0.0
        %404 = vmatprep.subr.mxu0 0.0
        %405 = vmatpush1.msra.mxu0 0.0
        %406 = vmatprep.subr.mxu0 0.0
        %407 = vmatpush1.msra.mxu0 0.0
        %408 = vmatprep.subr.mxu0 0.0
        %409 = vmatpush1.msra.mxu0 0.0
        %410 = vmatprep.subr.mxu0 0.0
        %411 = vmatpush1.msra.mxu0 0.0
        %412 = vmatprep.subr.mxu0 0.0
        %413 = vmatpush1.msra.mxu0 0.0
        %414 = vmatprep.subr.mxu0 0.0
        %415 = vmatpush1.msra.mxu0 0.0
        %416 = vmatprep.subr.mxu0 0.0
        %417 = vmatpush1.msra.mxu0 0.0
        %418 = vmatprep.subr.mxu0 0.0
        %419 = vmatpush1.msra.mxu0 0.0
        %420 = vmatprep.subr.mxu0 0.0
        %421 = vmatpush1.msra.mxu0 0.0
        %422 = vmatprep.subr.mxu0 0.0
        %423 = vmatpush1.msra.mxu0 0.0
        %424 = vmatprep.subr.mxu0 0.0
        %425 = vmatpush1.msra.mxu0 0.0
        %426 = vmatprep.subr.mxu0 0.0
        %427 = vmatpush1.msra.mxu0 0.0
        %428 = vmatprep.subr.mxu0 0.0
        %429 = vmatpush1.msra.mxu0 0.0
        %430 = vmatprep.subr.mxu0 0.0
        %431 = vmatpush1.msra.mxu0 0.0
        %432 = vmatprep.subr.mxu0 0.0
        %433 = vmatpush1.msra.mxu0 0.0
        %434 = vmatprep.subr.mxu0 0.0
        %435 = vmatpush1.msra.mxu0 0.0
        %436 = vmatprep.subr.mxu0 0.0
        %437 = vmatpush1.msra.mxu0 0.0
        %438 = vmatprep.subr.mxu0 0.0
        %439 = vmatpush1.msra.mxu0 0.0
        %440 = vmatprep.subr.mxu0 0.0
        %441 = vmatpush1.msra.mxu0 0.0
        %442 = vmatprep.subr.mxu0 0.0
        %443 = vmatpush1.msra.mxu0 0.0
        %444 = vmatprep.subr.mxu0 0.0
        %445 = vmatpush1.msra.mxu0 0.0
        %446 = vmatprep.subr.mxu0 0.0
        %447 = vmatpush1.msra.mxu0 0.0
        %448 = vmatprep.subr.mxu0 0.0
        %449 = vmatpush1.msra.mxu0 0.0
        %450 = vmatprep.subr.mxu0 0.0
        %451 = vmatpush1.msra.mxu0 0.0
        %452 = vmatprep.subr.mxu0 0.0
        %453 = vmatpush1.msra.mxu0 0.0
        %454 = vmatprep.subr.mxu0 0.0
        %455 = vmatpush1.msra.mxu0 0.0
        %456 = vmatprep.subr.mxu0 0.0
        %457 = vmatpush1.msra.mxu0 0.0
        %458 = vmatprep.mubr.f32.mxu0 0.0
        %459 = vmatmul.mubr.f32.gmra.mrb[0].mxu0 %v389
        %v460 = vpop.f32.mrb[0].mxu0
        %v461 = vadd.f32 0.0, %v460
        %v462 = vpop.f32.mrb[0].mxu0
        %463 = vdwg.mxu0
        %v465 = vsel %vm387, %v384, 0
        %v468 = vsel %vm391, %v311, 0
        %470 = vmatprep.subr.mxu0 0.0
        %471 = vmatpush1.msra.mxu0 %v468
        %472 = vmatprep.subr.mxu0 0.0
        %473 = vmatpush1.msra.mxu0 0.0
        %474 = vmatprep.subr.mxu0 0.0
        %475 = vmatpush1.msra.mxu0 0.0
        %476 = vmatprep.subr.mxu0 0.0
        %477 = vmatpush1.msra.mxu0 0.0
        %478 = vmatprep.subr.mxu0 0.0
        %479 = vmatpush1.msra.mxu0 0.0
        %480 = vmatprep.subr.mxu0 0.0
        %481 = vmatpush1.msra.mxu0 0.0
        %482 = vmatprep.subr.mxu0 0.0
        %483 = vmatpush1.msra.mxu0 0.0
        %484 = vmatprep.subr.mxu0 0.0
        %485 = vmatpush1.msra.mxu0 0.0
        %486 = vmatprep.subr.mxu0 0.0
        %487 = vmatpush1.msra.mxu0 0.0
        %488 = vmatprep.subr.mxu0 0.0
        %489 = vmatpush1.msra.mxu0 0.0
        %490 = vmatprep.subr.mxu0 0.0
        %491 = vmatpush1.msra.mxu0 0.0
        %492 = vmatprep.subr.mxu0 0.0
        %493 = vmatpush1.msra.mxu0 0.0
        %494 = vmatprep.subr.mxu0 0.0
        %495 = vmatpush1.msra.mxu0 0.0
        %496 = vmatprep.subr.mxu0 0.0
        %497 = vmatpush1.msra.mxu0 0.0
        %498 = vmatprep.subr.mxu0 0.0
        %499 = vmatpush1.msra.mxu0 0.0
        %500 = vmatprep.subr.mxu0 0.0
        %501 = vmatpush1.msra.mxu0 0.0
        %502 = vmatprep.subr.mxu0 0.0
        %503 = vmatpush1.msra.mxu0 0.0
        %504 = vmatprep.subr.mxu0 0.0
        %505 = vmatpush1.msra.mxu0 0.0
        %506 = vmatprep.subr.mxu0 0.0
        %507 = vmatpush1.msra.mxu0 0.0
        %508 = vmatprep.subr.mxu0 0.0
        %509 = vmatpush1.msra.mxu0 0.0
        %510 = vmatprep.subr.mxu0 0.0
        %511 = vmatpush1.msra.mxu0 0.0
        %512 = vmatprep.subr.mxu0 0.0
        %513 = vmatpush1.msra.mxu0 0.0
        %514 = vmatprep.subr.mxu0 0.0
        %515 = vmatpush1.msra.mxu0 0.0
        %516 = vmatprep.subr.mxu0 0.0
        %517 = vmatpush1.msra.mxu0 0.0
        %518 = vmatprep.subr.mxu0 0.0
        %519 = vmatpush1.msra.mxu0 0.0
        %520 = vmatprep.subr.mxu0 0.0
        %521 = vmatpush1.msra.mxu0 0.0
        %522 = vmatprep.subr.mxu0 0.0
        %523 = vmatpush1.msra.mxu0 0.0
        %524 = vmatprep.subr.mxu0 0.0
        %525 = vmatpush1.msra.mxu0 0.0
        %526 = vmatprep.subr.mxu0 0.0
        %527 = vmatpush1.msra.mxu0 0.0
        %528 = vmatprep.subr.mxu0 0.0
        %529 = vmatpush1.msra.mxu0 0.0
        %530 = vmatprep.subr.mxu0 0.0
        %531 = vmatpush1.msra.mxu0 0.0
        %532 = vmatprep.subr.mxu0 0.0
        %533 = vmatpush1.msra.mxu0 0.0
        %534 = vmatprep.mubr.f32.mxu0 0.0
        %535 = vmatmul.mubr.f32.gmra.mrb[0].mxu0 %v465
        %v536 = vpop.f32.mrb[0].mxu0
        %v537 = vadd.f32 %v461, %v536
        %v538 = vpop.f32.mrb[0].mxu0
        %539 = vdwg.mxu0
        %s540 = scalar_lea.vmem %s1, 16
        %v541 = vld [vmem:[%s540] sm:$0xff]
        %v543 = vsel %vm387, %v541, 0
        %v546 = vsel %vm391, %v381, 0
        %548 = vmatprep.subr.mxu0 0.0
        %549 = vmatpush1.msra.mxu0 %v546
        %550 = vmatprep.subr.mxu0 0.0
        %551 = vmatpush1.msra.mxu0 0.0
        %552 = vmatprep.subr.mxu0 0.0
        %553 = vmatpush1.msra.mxu0 0.0
        %554 = vmatprep.subr.mxu0 0.0
        %555 = vmatpush1.msra.mxu0 0.0
        %556 = vmatprep.subr.mxu0 0.0
        %557 = vmatpush1.msra.mxu0 0.0
        %558 = vmatprep.subr.mxu0 0.0
        %559 = vmatpush1.msra.mxu0 0.0
        %560 = vmatprep.subr.mxu0 0.0
        %561 = vmatpush1.msra.mxu0 0.0
        %562 = vmatprep.subr.mxu0 0.0
        %563 = vmatpush1.msra.mxu0 0.0
        %564 = vmatprep.subr.mxu0 0.0
        %565 = vmatpush1.msra.mxu0 0.0
        %566 = vmatprep.subr.mxu0 0.0
        %567 = vmatpush1.msra.mxu0 0.0
        %568 = vmatprep.subr.mxu0 0.0
        %569 = vmatpush1.msra.mxu0 0.0
        %570 = vmatprep.subr.mxu0 0.0
        %571 = vmatpush1.msra.mxu0 0.0
        %572 = vmatprep.subr.mxu0 0.0
        %573 = vmatpush1.msra.mxu0 0.0
        %574 = vmatprep.subr.mxu0 0.0
        %575 = vmatpush1.msra.mxu0 0.0
        %576 = vmatprep.subr.mxu0 0.0
        %577 = vmatpush1.msra.mxu0 0.0
        %578 = vmatprep.subr.mxu0 0.0
        %579 = vmatpush1.msra.mxu0 0.0
        %580 = vmatprep.subr.mxu0 0.0
        %581 = vmatpush1.msra.mxu0 0.0
        %582 = vmatprep.subr.mxu0 0.0
        %583 = vmatpush1.msra.mxu0 0.0
        %584 = vmatprep.subr.mxu0 0.0
        %585 = vmatpush1.msra.mxu0 0.0
        %586 = vmatprep.subr.mxu0 0.0
        %587 = vmatpush1.msra.mxu0 0.0
        %588 = vmatprep.subr.mxu0 0.0
        %589 = vmatpush1.msra.mxu0 0.0
        %590 = vmatprep.subr.mxu0 0.0
        %591 = vmatpush1.msra.mxu0 0.0
        %592 = vmatprep.subr.mxu0 0.0
        %593 = vmatpush1.msra.mxu0 0.0
        %594 = vmatprep.subr.mxu0 0.0
        %595 = vmatpush1.msra.mxu0 0.0
        %596 = vmatprep.subr.mxu0 0.0
        %597 = vmatpush1.msra.mxu0 0.0
        %598 = vmatprep.subr.mxu0 0.0
        %599 = vmatpush1.msra.mxu0 0.0
        %600 = vmatprep.subr.mxu0 0.0
        %601 = vmatpush1.msra.mxu0 0.0
        %602 = vmatprep.subr.mxu0 0.0
        %603 = vmatpush1.msra.mxu0 0.0
        %604 = vmatprep.subr.mxu0 0.0
        %605 = vmatpush1.msra.mxu0 0.0
        %606 = vmatprep.subr.mxu0 0.0
        %607 = vmatpush1.msra.mxu0 0.0
        %608 = vmatprep.subr.mxu0 0.0
        %609 = vmatpush1.msra.mxu0 0.0
        %610 = vmatprep.subr.mxu0 0.0
        %611 = vmatpush1.msra.mxu0 0.0
        %612 = vmatprep.mubr.f32.mxu0 0.0
        %613 = vmatmul.mubr.f32.gmra.mrb[0].mxu0 %v543
        %v614 = vpop.f32.mrb[0].mxu0
        %v615 = vadd.f32 0.0, %v614
        %v616 = vpop.f32.mrb[0].mxu0
        %617 = vdwg.mxu0
        %v618 = vadd.f32 %v537, %v615
        %v619 = vld [vmem:[%s2] sm:$0xff]
        %621 = vset.pattern.permute.xlu0 0
        %622 = vperm.xlu0 %621, %v619
        %v623 = vpop.permute.xlu0 %622
        %v625 = vadd.f32 %v618, %v623
        %v626 = vmax.f32 %v625, 0.0
        %v628 = vsel %vm240, %v626, 0
        %630 = vmatprep.subr.mxu0 0.0
        %631 = vmatpush1.msra.mxu0 %v231
        %632 = vmatprep.subr.mxu0 0.0
        %633 = vmatpush1.msra.mxu0 %v232
        %634 = vmatprep.subr.mxu0 0.0
        %635 = vmatpush1.msra.mxu0 0.0
        %636 = vmatprep.subr.mxu0 0.0
        %637 = vmatpush1.msra.mxu0 0.0
        %638 = vmatprep.subr.mxu0 0.0
        %639 = vmatpush1.msra.mxu0 0.0
        %640 = vmatprep.subr.mxu0 0.0
        %641 = vmatpush1.msra.mxu0 0.0
        %642 = vmatprep.subr.mxu0 0.0
        %643 = vmatpush1.msra.mxu0 0.0
        %644 = vmatprep.subr.mxu0 0.0
        %645 = vmatpush1.msra.mxu0 0.0
        %646 = vmatprep.subr.mxu0 0.0
        %647 = vmatpush1.msra.mxu0 0.0
        %648 = vmatprep.subr.mxu0 0.0
        %649 = vmatpush1.msra.mxu0 0.0
        %650 = vmatprep.subr.mxu0 0.0
        %651 = vmatpush1.msra.mxu0 0.0
        %652 = vmatprep.subr.mxu0 0.0
        %653 = vmatpush1.msra.mxu0 0.0
        %654 = vmatprep.subr.mxu0 0.0
        %655 = vmatpush1.msra.mxu0 0.0
        %656 = vmatprep.subr.mxu0 0.0
        %657 = vmatpush1.msra.mxu0 0.0
        %658 = vmatprep.subr.mxu0 0.0
        %659 = vmatpush1.msra.mxu0 0.0
        %660 = vmatprep.subr.mxu0 0.0
        %661 = vmatpush1.msra.mxu0 0.0
        %662 = vmatprep.subr.mxu0 0.0
        %663 = vmatpush1.msra.mxu0 0.0
        %664 = vmatprep.subr.mxu0 0.0
        %665 = vmatpush1.msra.mxu0 0.0
        %666 = vmatprep.subr.mxu0 0.0
        %667 = vmatpush1.msra.mxu0 0.0
        %668 = vmatprep.subr.mxu0 0.0
        %669 = vmatpush1.msra.mxu0 0.0
        %670 = vmatprep.subr.mxu0 0.0
        %671 = vmatpush1.msra.mxu0 0.0
        %672 = vmatprep.subr.mxu0 0.0
        %673 = vmatpush1.msra.mxu0 0.0
        %674 = vmatprep.subr.mxu0 0.0
        %675 = vmatpush1.msra.mxu0 0.0
        %676 = vmatprep.subr.mxu0 0.0
        %677 = vmatpush1.msra.mxu0 0.0
        %678 = vmatprep.subr.mxu0 0.0
        %679 = vmatpush1.msra.mxu0 0.0
        %680 = vmatprep.subr.mxu0 0.0
        %681 = vmatpush1.msra.mxu0 0.0
        %682 = vmatprep.subr.mxu0 0.0
        %683 = vmatpush1.msra.mxu0 0.0
        %684 = vmatprep.subr.mxu0 0.0
        %685 = vmatpush1.msra.mxu0 0.0
        %686 = vmatprep.subr.mxu0 0.0
        %687 = vmatpush1.msra.mxu0 0.0
        %688 = vmatprep.subr.mxu0 0.0
        %689 = vmatpush1.msra.mxu0 0.0
        %690 = vmatprep.subr.mxu0 0.0
        %691 = vmatpush1.msra.mxu0 0.0
        %692 = vmatprep.subr.mxu0 0.0
        %693 = vmatpush1.msra.mxu0 0.0
        %694 = vmatprep.mubr.f32.mxu0 0.0
        %695 = vmatmul.mubr.f32.gmra.mrb[0].mxu0 %v628
        %v696 = vpop.f32.mrb[0].mxu0
        %v697 = vadd.f32 0.0, %v696
        %v698 = vpop.f32.mrb[0].mxu0
        %699 = vdwg.mxu0
        %700 = vmatprep.subr.mxu0 0.0
        %701 = vmatpush1.msra.mxu0 %v238
        %702 = vmatprep.subr.mxu0 0.0
        %703 = vmatpush1.msra.mxu0 %v239
        %704 = vmatprep.subr.mxu0 0.0
        %705 = vmatpush1.msra.mxu0 0.0
        %706 = vmatprep.subr.mxu0 0.0
        %707 = vmatpush1.msra.mxu0 0.0
        %708 = vmatprep.subr.mxu0 0.0
        %709 = vmatpush1.msra.mxu0 0.0
        %710 = vmatprep.subr.mxu0 0.0
        %711 = vmatpush1.msra.mxu0 0.0
        %712 = vmatprep.subr.mxu0 0.0
        %713 = vmatpush1.msra.mxu0 0.0
        %714 = vmatprep.subr.mxu0 0.0
        %715 = vmatpush1.msra.mxu0 0.0
        %716 = vmatprep.subr.mxu0 0.0
        %717 = vmatpush1.msra.mxu0 0.0
        %718 = vmatprep.subr.mxu0 0.0
        %719 = vmatpush1.msra.mxu0 0.0
        %720 = vmatprep.subr.mxu0 0.0
        %721 = vmatpush1.msra.mxu0 0.0
        %722 = vmatprep.subr.mxu0 0.0
        %723 = vmatpush1.msra.mxu0 0.0
        %724 = vmatprep.subr.mxu0 0.0
        %725 = vmatpush1.msra.mxu0 0.0
        %726 = vmatprep.subr.mxu0 0.0
        %727 = vmatpush1.msra.mxu0 0.0
        %728 = vmatprep.subr.mxu0 0.0
        %729 = vmatpush1.msra.mxu0 0.0
        %730 = vmatprep.subr.mxu0 0.0
        %731 = vmatpush1.msra.mxu0 0.0
        %732 = vmatprep.subr.mxu0 0.0
        %733 = vmatpush1.msra.mxu0 0.0
        %734 = vmatprep.subr.mxu0 0.0
        %735 = vmatpush1.msra.mxu0 0.0
        %736 = vmatprep.subr.mxu0 0.0
        %737 = vmatpush1.msra.mxu0 0.0
        %738 = vmatprep.subr.mxu0 0.0
        %739 = vmatpush1.msra.mxu0 0.0
        %740 = vmatprep.subr.mxu0 0.0
        %741 = vmatpush1.msra.mxu0 0.0
        %742 = vmatprep.subr.mxu0 0.0
        %743 = vmatpush1.msra.mxu0 0.0
        %744 = vmatprep.subr.mxu0 0.0
        %745 = vmatpush1.msra.mxu0 0.0
        %746 = vmatprep.subr.mxu0 0.0
        %747 = vmatpush1.msra.mxu0 0.0
        %748 = vmatprep.subr.mxu0 0.0
        %749 = vmatpush1.msra.mxu0 0.0
        %750 = vmatprep.subr.mxu0 0.0
        %751 = vmatpush1.msra.mxu0 0.0
        %752 = vmatprep.subr.mxu0 0.0
        %753 = vmatpush1.msra.mxu0 0.0
        %754 = vmatprep.subr.mxu0 0.0
        %755 = vmatpush1.msra.mxu0 0.0
        %756 = vmatprep.subr.mxu0 0.0
        %757 = vmatpush1.msra.mxu0 0.0
        %758 = vmatprep.subr.mxu0 0.0
        %759 = vmatpush1.msra.mxu0 0.0
        %760 = vmatprep.subr.mxu0 0.0
        %761 = vmatpush1.msra.mxu0 0.0
        %762 = vmatprep.subr.mxu0 0.0
        %763 = vmatpush1.msra.mxu0 0.0
        %764 = vmatprep.mubr.f32.mxu0 0.0
        %765 = vmatmul.mubr.f32.gmra.mrb[0].mxu0 %v628
        %v766 = vpop.f32.mrb[0].mxu0
        %v767 = vadd.f32 0.0, %v766
        %v768 = vpop.f32.mrb[0].mxu0
        %769 = vdwg.mxu0
        %v770 = vld [vmem:[%s3] sm:$0xff]
        %s771 = scalar_lea.vmem %s3, 8
        %v772 = vld [vmem:[%s771] sm:$0xff]
        %vm773 = vcmask 64512
        %v775 = vsel %vm773, %v772, 0
        %777 = vmatprep.subr.mxu0 0.0
        %778 = vmatpush1.msra.mxu0 %v626
        %779 = vmatprep.subr.mxu0 0.0
        %780 = vmatpush1.msra.mxu0 0.0
        %781 = vmatprep.subr.mxu0 0.0
        %782 = vmatpush1.msra.mxu0 0.0
        %783 = vmatprep.subr.mxu0 0.0
        %784 = vmatpush1.msra.mxu0 0.0
        %785 = vmatprep.subr.mxu0 0.0
        %786 = vmatpush1.msra.mxu0 0.0
        %787 = vmatprep.subr.mxu0 0.0
        %788 = vmatpush1.msra.mxu0 0.0
        %789 = vmatprep.subr.mxu0 0.0
        %790 = vmatpush1.msra.mxu0 0.0
        %791 = vmatprep.subr.mxu0 0.0
        %792 = vmatpush1.msra.mxu0 0.0
        %793 = vmatprep.subr.mxu0 0.0
        %794 = vmatpush1.msra.mxu0 0.0
        %795 = vmatprep.subr.mxu0 0.0
        %796 = vmatpush1.msra.mxu0 0.0
        %797 = vmatprep.subr.mxu0 0.0
        %798 = vmatpush1.msra.mxu0 0.0
        %799 = vmatprep.subr.mxu0 0.0
        %800 = vmatpush1.msra.mxu0 0.0
        %801 = vmatprep.subr.mxu0 0.0
        %802 = vmatpush1.msra.mxu0 0.0
        %803 = vmatprep.subr.mxu0 0.0
        %804 = vmatpush1.msra.mxu0 0.0
        %805 = vmatprep.subr.mxu0 0.0
        %806 = vmatpush1.msra.mxu0 0.0
        %807 = vmatprep.subr.mxu0 0.0
        %808 = vmatpush1.msra.mxu0 0.0
        %809 = vmatprep.subr.mxu0 0.0
        %810 = vmatpush1.msra.mxu0 0.0
        %811 = vmatprep.subr.mxu0 0.0
        %812 = vmatpush1.msra.mxu0 0.0
        %813 = vmatprep.subr.mxu0 0.0
        %814 = vmatpush1.msra.mxu0 0.0
        %815 = vmatprep.subr.mxu0 0.0
        %816 = vmatpush1.msra.mxu0 0.0
        %817 = vmatprep.subr.mxu0 0.0
        %818 = vmatpush1.msra.mxu0 0.0
        %819 = vmatprep.subr.mxu0 0.0
        %820 = vmatpush1.msra.mxu0 0.0
        %821 = vmatprep.subr.mxu0 0.0
        %822 = vmatpush1.msra.mxu0 0.0
        %823 = vmatprep.subr.mxu0 0.0
        %824 = vmatpush1.msra.mxu0 0.0
        %825 = vmatprep.subr.mxu0 0.0
        %826 = vmatpush1.msra.mxu0 0.0
        %827 = vmatprep.subr.mxu0 0.0
        %828 = vmatpush1.msra.mxu0 0.0
        %829 = vmatprep.subr.mxu0 0.0
        %830 = vmatpush1.msra.mxu0 0.0
        %831 = vmatprep.subr.mxu0 0.0
        %832 = vmatpush1.msra.mxu0 0.0
        %833 = vmatprep.subr.mxu0 0.0
        %834 = vmatpush1.msra.mxu0 0.0
        %835 = vmatprep.subr.mxu0 0.0
        %836 = vmatpush1.msra.mxu0 0.0
        %837 = vmatprep.subr.mxu0 0.0
        %838 = vmatpush1.msra.mxu0 0.0
        %839 = vmatprep.subr.mxu0 0.0
        %840 = vmatpush1.msra.mxu0 0.0
        %841 = vmatprep.mubr.f32.mxu0 0.0
        %842 = vmatmul.mubr.f32.gmra.mrb[0].mxu0 %v775
        %v843 = vpop.f32.mrb[0].mxu0
        %v844 = vadd.f32 0.0, %v843
        %v845 = vpop.f32.mrb[0].mxu0
        %846 = vdwg.mxu0
        %v848 = vsel %vm773, %v770, 0
        %850 = vmatprep.subr.mxu0 0.0
        %851 = vmatpush1.msra.mxu0 %v697
        %852 = vmatprep.subr.mxu0 0.0
        %853 = vmatpush1.msra.mxu0 0.0
        %854 = vmatprep.subr.mxu0 0.0
        %855 = vmatpush1.msra.mxu0 0.0
        %856 = vmatprep.subr.mxu0 0.0
        %857 = vmatpush1.msra.mxu0 0.0
        %858 = vmatprep.subr.mxu0 0.0
        %859 = vmatpush1.msra.mxu0 0.0
        %860 = vmatprep.subr.mxu0 0.0
        %861 = vmatpush1.msra.mxu0 0.0
        %862 = vmatprep.subr.mxu0 0.0
        %863 = vmatpush1.msra.mxu0 0.0
        %864 = vmatprep.subr.mxu0 0.0
        %865 = vmatpush1.msra.mxu0 0.0
        %866 = vmatprep.subr.mxu0 0.0
        %867 = vmatpush1.msra.mxu0 0.0
        %868 = vmatprep.subr.mxu0 0.0
        %869 = vmatpush1.msra.mxu0 0.0
        %870 = vmatprep.subr.mxu0 0.0
        %871 = vmatpush1.msra.mxu0 0.0
        %872 = vmatprep.subr.mxu0 0.0
        %873 = vmatpush1.msra.mxu0 0.0
        %874 = vmatprep.subr.mxu0 0.0
        %875 = vmatpush1.msra.mxu0 0.0
        %876 = vmatprep.subr.mxu0 0.0
        %877 = vmatpush1.msra.mxu0 0.0
        %878 = vmatprep.subr.mxu0 0.0
        %879 = vmatpush1.msra.mxu0 0.0
        %880 = vmatprep.subr.mxu0 0.0
        %881 = vmatpush1.msra.mxu0 0.0
        %882 = vmatprep.subr.mxu0 0.0
        %883 = vmatpush1.msra.mxu0 0.0
        %884 = vmatprep.subr.mxu0 0.0
        %885 = vmatpush1.msra.mxu0 0.0
        %886 = vmatprep.subr.mxu0 0.0
        %887 = vmatpush1.msra.mxu0 0.0
        %888 = vmatprep.subr.mxu0 0.0
        %889 = vmatpush1.msra.mxu0 0.0
        %890 = vmatprep.subr.mxu0 0.0
        %891 = vmatpush1.msra.mxu0 0.0
        %892 = vmatprep.subr.mxu0 0.0
        %893 = vmatpush1.msra.mxu0 0.0
        %894 = vmatprep.subr.mxu0 0.0
        %895 = vmatpush1.msra.mxu0 0.0
        %896 = vmatprep.subr.mxu0 0.0
        %897 = vmatpush1.msra.mxu0 0.0
        %898 = vmatprep.subr.mxu0 0.0
        %899 = vmatpush1.msra.mxu0 0.0
        %900 = vmatprep.subr.mxu0 0.0
        %901 = vmatpush1.msra.mxu0 0.0
        %902 = vmatprep.subr.mxu0 0.0
        %903 = vmatpush1.msra.mxu0 0.0
        %904 = vmatprep.subr.mxu0 0.0
        %905 = vmatpush1.msra.mxu0 0.0
        %906 = vmatprep.subr.mxu0 0.0
        %907 = vmatpush1.msra.mxu0 0.0
        %908 = vmatprep.subr.mxu0 0.0
        %909 = vmatpush1.msra.mxu0 0.0
        %910 = vmatprep.subr.mxu0 0.0
        %911 = vmatpush1.msra.mxu0 0.0
        %912 = vmatprep.subr.mxu0 0.0
        %913 = vmatpush1.msra.mxu0 0.0
        %914 = vmatprep.mubr.f32.mxu0 0.0
        %915 = vmatmul.mubr.f32.gmra.mrb[0].mxu0 %v848
        %v916 = vpop.f32.mrb[0].mxu0
        %v917 = vadd.f32 %v844, %v916
        %v918 = vpop.f32.mrb[0].mxu0
        %919 = vdwg.mxu0
        %s920 = scalar_lea.vmem %s3, 16
        %v921 = vld [vmem:[%s920] sm:$0xff]
        %v923 = vsel %vm773, %v921, 0
        %925 = vmatprep.subr.mxu0 0.0
        %926 = vmatpush1.msra.mxu0 %v767
        %927 = vmatprep.subr.mxu0 0.0
        %928 = vmatpush1.msra.mxu0 0.0
        %929 = vmatprep.subr.mxu0 0.0
        %930 = vmatpush1.msra.mxu0 0.0
        %931 = vmatprep.subr.mxu0 0.0
        %932 = vmatpush1.msra.mxu0 0.0
        %933 = vmatprep.subr.mxu0 0.0
        %934 = vmatpush1.msra.mxu0 0.0
        %935 = vmatprep.subr.mxu0 0.0
        %936 = vmatpush1.msra.mxu0 0.0
        %937 = vmatprep.subr.mxu0 0.0
        %938 = vmatpush1.msra.mxu0 0.0
        %939 = vmatprep.subr.mxu0 0.0
        %940 = vmatpush1.msra.mxu0 0.0
        %941 = vmatprep.subr.mxu0 0.0
        %942 = vmatpush1.msra.mxu0 0.0
        %943 = vmatprep.subr.mxu0 0.0
        %944 = vmatpush1.msra.mxu0 0.0
        %945 = vmatprep.subr.mxu0 0.0
        %946 = vmatpush1.msra.mxu0 0.0
        %947 = vmatprep.subr.mxu0 0.0
        %948 = vmatpush1.msra.mxu0 0.0
        %949 = vmatprep.subr.mxu0 0.0
        %950 = vmatpush1.msra.mxu0 0.0
        %951 = vmatprep.subr.mxu0 0.0
        %952 = vmatpush1.msra.mxu0 0.0
        %953 = vmatprep.subr.mxu0 0.0
        %954 = vmatpush1.msra.mxu0 0.0
        %955 = vmatprep.subr.mxu0 0.0
        %956 = vmatpush1.msra.mxu0 0.0
        %957 = vmatprep.subr.mxu0 0.0
        %958 = vmatpush1.msra.mxu0 0.0
        %959 = vmatprep.subr.mxu0 0.0
        %960 = vmatpush1.msra.mxu0 0.0
        %961 = vmatprep.subr.mxu0 0.0
        %962 = vmatpush1.msra.mxu0 0.0
        %963 = vmatprep.subr.mxu0 0.0
        %964 = vmatpush1.msra.mxu0 0.0
        %965 = vmatprep.subr.mxu0 0.0
        %966 = vmatpush1.msra.mxu0 0.0
        %967 = vmatprep.subr.mxu0 0.0
        %968 = vmatpush1.msra.mxu0 0.0
        %969 = vmatprep.subr.mxu0 0.0
        %970 = vmatpush1.msra.mxu0 0.0
        %971 = vmatprep.subr.mxu0 0.0
        %972 = vmatpush1.msra.mxu0 0.0
        %973 = vmatprep.subr.mxu0 0.0
        %974 = vmatpush1.msra.mxu0 0.0
        %975 = vmatprep.subr.mxu0 0.0
        %976 = vmatpush1.msra.mxu0 0.0
        %977 = vmatprep.subr.mxu0 0.0
        %978 = vmatpush1.msra.mxu0 0.0
        %979 = vmatprep.subr.mxu0 0.0
        %980 = vmatpush1.msra.mxu0 0.0
        %981 = vmatprep.subr.mxu0 0.0
        %982 = vmatpush1.msra.mxu0 0.0
        %983 = vmatprep.subr.mxu0 0.0
        %984 = vmatpush1.msra.mxu0 0.0
        %985 = vmatprep.subr.mxu0 0.0
        %986 = vmatpush1.msra.mxu0 0.0
        %987 = vmatprep.subr.mxu0 0.0
        %988 = vmatpush1.msra.mxu0 0.0
        %989 = vmatprep.mubr.f32.mxu0 0.0
        %990 = vmatmul.mubr.f32.gmra.mrb[0].mxu0 %v923
        %v991 = vpop.f32.mrb[0].mxu0
        %v992 = vadd.f32 0.0, %v991
        %v993 = vpop.f32.mrb[0].mxu0
        %994 = vdwg.mxu0
        %v995 = vadd.f32 %v917, %v992
        %v996 = vld [vmem:[%s4] sm:$0xff]
        %998 = vset.pattern.permute.xlu0 0
        %999 = vperm.xlu0 %998, %v996
        %v1000 = vpop.permute.xlu0 %999
        %v1002 = vadd.f32 %v995, %v1000
        %v1003 = vmax.f32 %v1002, 0.0
        %1004 = vst.msk [vmem:[%s215] sm:$0xff] %vm240, %v1003
        %s1005 = sand.u32 %s137, 1
        %s1006 = scalar_lea.sflag [#allocation3], %s1005
        %s1007 = sand.u32 %s137, 1
        %s1008 = smul.addr %s1007, 8
        %s1009 = scalar_lea.vmem [#allocation2], %s1008
        // Predicated region
        $region41: #{tpu_custom_call.1} parent=39 // pred_check
          %p1010 = pneg %p147
        $region42: #{tpu_custom_call.1} parent=39 // pred_check_branch
          %1012 = sbr.rel (%p1010) target = $region44
        $region43: #{tpu_custom_call.1} parent=39 // pred_region
          %s1014 = ssub.s32 128, 128
          %1015 = vsyncadd %s1006, %s1014
          %s1016 = smul.addr %s19, 128
          %s1017 = scalar_lea.hbm %s5, %s1016
          %s1019 = sshll.u32 %s1009, 4
          %s1020 = int_to_ptr.vmem [resolvable:$true] %s1019
          %1022 = dma.vmem_to_hbm [thread:$0]  %s1020, 128, %s1017, %s1006
        $region44: #{tpu_custom_call.1} parent=39 // pred_fallthru
          _
      $region40: #{tpu_custom_call.1} parent=5 // pred_fallthru
        _
      %p1023 = scmp.le.s32.totalorder 2, %s14
      // Predicated region
      $region45: #{tpu_custom_call.1} parent=5 // pred_check
        %p1024 = pneg %p1023
      $region46: #{tpu_custom_call.1} parent=5 // pred_check_branch
        %1026 = sbr.rel (%p1024) target = $region48
      $region47: #{tpu_custom_call.1} parent=5 // pred_region
        %s1027 = ssub.s32 %s14, 2
        // Predicated region
        $region49: #{tpu_custom_call.1} parent=47 // pred_check
          %p1028 = pneg %p153
        $region50: #{tpu_custom_call.1} parent=47 // pred_check_branch
          %1030 = sbr.rel (%p1028) target = $region52
        $region51: #{tpu_custom_call.1} parent=47 // pred_region
          %s1031 = sand.u32 %s138, 1
          %s1032 = scalar_lea.sflag [#allocation3], %s1031
          %s1033 = sand.u32 %s138, 1
          %s1034 = smul.addr %s1033, 8
          %s1035 = scalar_lea.vmem [#allocation2], %s1034
          %1036 = dma.done %s1032, 128
        $region52: #{tpu_custom_call.1} parent=47 // pred_fallthru
          _
      $region48: #{tpu_custom_call.1} parent=5 // pred_fallthru
        _
    $region6: #{tpu_custom_call.1} parent=1 // loop_footer
      %s18 = sadd.s32 1, %s14
    $region7: #{tpu_custom_call.1} parent=1 // loop_footer_branch
      %13 = sbr.rel target = $region3
    $region8: #{tpu_custom_call.1} parent=1 // loop_exit
      _
    %1037 = vsyncpa [#allocation3], 1
    %s1038 = scalar_lea.sflag [#allocation3], 1
    %1039 = vsyncpa %s1038, 1

// kernel: tpu_custom_call.1
$region0: #{tpu_custom_call.1}
  #allocation0 [shape = 'u32[]', space=smem, size = 0x4, offset = 0x4, fixed_abs, tag = 'smem constant byte address 0x4 - core index']
  #allocation1 [shape = 'u32[144,128]{1,0:T(1,128)}', space=vmem, size = 0x12000, scoped, tag = 'internal scratch']
  %s0 = inlined_call_operand.vmem [shape: f32[2,4,16], index: 0, kind: input, shape index: {}]
  %s1 = inlined_call_operand.vmem [shape: f32[3,8,4], index: 1, kind: input, shape index: {}]
  %s2 = inlined_call_operand.vmem [shape: f32[8,1], index: 2, kind: input, shape index: {}]
  %s3 = inlined_call_operand.vmem [shape: f32[3,8,8], index: 3, kind: input, shape index: {}]
  %s4 = inlined_call_operand.vmem [shape: f32[8,1], index: 4, kind: input, shape index: {}]
  %s5 = inlined_call_operand.hbm [shape: f32[2,8,16], index: 5, kind: output, shape index: {}]
  %s6 = sld [smem:[#allocation0]]
  $region53: #{tpu_custom_call.1} parent=0
    _
  %s8 = ssub.s32 1, %s6
  %s9 = scalar_select 0, %s8, %s6
  $region1: #{tpu_custom_call.1} parent=0
    #allocation2 [shape = 'u8[8192]{0}', space=vmem, size = 0x2000, scoped, tag = 'output window, operand 0']
    #allocation3 [shape = 's32[2]{0}', space=sflag, size = 0x8, scoped, tag = 'scoped memory for tpu_custom_call.1']
    %10 = vsyncpa [#allocation3], 0
    %s11 = scalar_lea.sflag [#allocation3], 1
    %12 = vsyncpa %s11, 0
    loop: start=0, step=1, limit=4
    $region2: #{tpu_custom_call.1} parent=1 // loop_pre_header
      _
    $region3: #{tpu_custom_call.1} parent=1 // loop_header
      %s14 = sphi 0, %s18
      %p15 = scmp.ge.s32.totalorder %s14, 4
      %s24 = sphi 0, %s26
      %s27 = sphi 0, %s24
      %s28 = sphi 0, %s27
      %s44 = sphi 0, %s28
      %s48 = sphi 0, %s48
      %s50 = sphi 0, %s48
      %s51 = sphi 0, %s50
      %s65 = sphi 0, %s51
      %s69 = sphi 0, %s69
      %s71 = sphi 0, %s69
      %s72 = sphi 0, %s71
      %s86 = sphi 0, %s72
      %s90 = sphi 0, %s90
      %s92 = sphi 0, %s90
      %s93 = sphi 0, %s92
      %s107 = sphi 0, %s93
      %s111 = sphi 0, %s111
      %s113 = sphi 0, %s111
      %s114 = sphi 0, %s113
      %s128 = sphi 0, %s114
      %s134 = sphi 0, %s136
      %s137 = sphi 0, %s134
      %s138 = sphi 0, %s137
      %s154 = sphi 0, %s138
    $region4: #{tpu_custom_call.1} parent=1 // loop_header_branch
      %17 = sbr.rel (%p15) target = $region8
    $region5: #{tpu_custom_call.1} parent=1 // loop_body
      %s19 = ssub.s32 %s14, 1
      %s20 = ssub.s32 %s14, 2
      %s21 = sadd.s32 %s14, 1
      %s22 = ssub.s32 %s14, %s21
      %p23 = scmp.eq.s32.totalorder %s22, 0
      %s25 = sadd.s32 %s24, 1
      %s26 = scalar_select %p23, %s24, %s25
      %p29 = pneg %p23
      %p30 = scmp.eq.s32.totalorder %s14, 1
      %p31 = por %p29, %p30
      %p32 = scmp.ne.s32.totalorder %s24, %s27
      %p33 = scmp.eq.s32.totalorder %s14, 0
      %p34 = por %p32, %p33
      %p35 = scmp.ne.s32.totalorder %s24, %s27
      %p36 = scmp.eq.s32.totalorder %s19, 1
      %p37 = por %p35, %p36
      %p38 = scmp.ne.s32.totalorder %s27, %s28
      %p39 = scmp.eq.s32.totalorder %s19, 0
      %p40 = por %p38, %p39
      %p41 = scmp.ne.s32.totalorder %s27, %s28
      %p42 = scmp.eq.s32.totalorder %s20, 1
      %p43 = por %p41, %p42
      %p45 = scmp.ne.s32.totalorder %s28, %s44
      %p46 = scmp.eq.s32.totalorder %s20, 0
      %p47 = por %p45, %p46
      %s49 = sadd.s32 %s48, 1
      %p52 = scmp.eq.s32.totalorder %s14, 1
      %p53 = scmp.ne.s32.totalorder %s48, %s50
      %p54 = scmp.eq.s32.totalorder %s14, 0
      %p55 = por %p53, %p54
      %p56 = scmp.ne.s32.totalorder %s48, %s50
      %p57 = scmp.eq.s32.totalorder %s19, 1
      %p58 = por %p56, %p57
      %p59 = scmp.ne.s32.totalorder %s50, %s51
      %p60 = scmp.eq.s32.totalorder %s19, 0
      %p61 = por %p59, %p60
      %p62 = scmp.ne.s32.totalorder %s50, %s51
      %p63 = scmp.eq.s32.totalorder %s20, 1
      %p64 = por %p62, %p63
      %p66 = scmp.ne.s32.totalorder %s51, %s65
      %p67 = scmp.eq.s32.totalorder %s20, 0
      %p68 = por %p66, %p67
      %s70 = sadd.s32 %s69, 1
      %p73 = scmp.eq.s32.totalorder %s14, 1
      %p74 = scmp.ne.s32.totalorder %s69, %s71
      %p75 = scmp.eq.s32.totalorder %s14, 0
      %p76 = por %p74, %p75
      %p77 = scmp.ne.s32.totalorder %s69, %s71
      %p78 = scmp.eq.s32.totalorder %s19, 1
      %p79 = por %p77, %p78
      %p80 = scmp.ne.s32.totalorder %s71, %s72
      %p81 = scmp.eq.s32.totalorder %s19, 0
      %p82 = por %p80, %p81
      %p83 = scmp.ne.s32.totalorder %s71, %s72
      %p84 = scmp.eq.s32.totalorder %s20, 1
      %p85 = por %p83, %p84
      %p87 = scmp.ne.s32.totalorder %s72, %s86
      %p88 = scmp.eq.s32.totalorder %s20, 0
      %p89 = por %p87, %p88
      %s91 = sadd.s32 %s90, 1
      %p94 = scmp.eq.s32.totalorder %s14, 1
      %p95 = scmp.ne.s32.totalorder %s90, %s92
      %p96 = scmp.eq.s32.totalorder %s14, 0
      %p97 = por %p95, %p96
      %p98 = scmp.ne.s32.totalorder %s90, %s92
      %p99 = scmp.eq.s32.totalorder %s19, 1
      %p100 = por %p98, %p99
      %p101 = scmp.ne.s32.totalorder %s92, %s93
      %p102 = scmp.eq.s32.totalorder %s19, 0
      %p103 = por %p101, %p102
      %p104 = scmp.ne.s32.totalorder %s92, %s93
      %p105 = scmp.eq.s32.totalorder %s20, 1
      %p106 = por %p104, %p105
      %p108 = scmp.ne.s32.totalorder %s93, %s107
      %p109 = scmp.eq.s32.totalorder %s20, 0
      %p110 = por %p108, %p109
      %s112 = sadd.s32 %s111, 1
      %p115 = scmp.eq.s32.totalorder %s14, 1
      %p116 = scmp.ne.s32.totalorder %s111, %s113
      %p117 = scmp.eq.s32.totalorder %s14, 0
      %p118 = por %p116, %p117
      %p119 = scmp.ne.s32.totalorder %s111, %s113
      %p120 = scmp.eq.s32.totalorder %s19, 1
      %p121 = por %p119, %p120
      %p122 = scmp.ne.s32.totalorder %s113, %s114
      %p123 = scmp.eq.s32.totalorder %s19, 0
      %p124 = por %p122, %p123
      %p125 = scmp.ne.s32.totalorder %s113, %s114
      %p126 = scmp.eq.s32.totalorder %s20, 1
      %p127 = por %p125, %p126
      %p129 = scmp.ne.s32.totalorder %s114, %s128
      %p130 = scmp.eq.s32.totalorder %s20, 0
      %p131 = por %p129, %p130
      %s132 = ssub.s32 %s14, %s21
      %p133 = scmp.eq.s32.totalorder %s132, 0
      %s135 = sadd.s32 %s134, 1
      %s136 = scalar_select %p133, %s134, %s135
      %p139 = pneg %p133
      %p140 = scmp.eq.s32.totalorder %s14, 1
      %p141 = por %p139, %p140
      %p142 = scmp.ne.s32.totalorder %s134, %s137
      %p143 = scmp.eq.s32.totalorder %s14, 0
      %p144 = por %p142, %p143
      %p145 = scmp.ne.s32.totalorder %s134, %s137
      %p146 = scmp.eq.s32.totalorder %s19, 1
      %p147 = por %p145, %p146
      %p148 = scmp.ne.s32.totalorder %s137, %s138
      %p149 = scmp.eq.s32.totalorder %s19, 0
      %p150 = por %p148, %p149
      %p151 = scmp.ne.s32.totalorder %s137, %s138
      %p152 = scmp.eq.s32.totalorder %s20, 1
      %p153 = por %p151, %p152
      %p155 = scmp.ne.s32.totalorder %s138, %s154
      %p156 = scmp.eq.s32.totalorder %s20, 0
      %p157 = por %p155, %p156
      %p158 = scmp.le.s32.totalorder 1, %s14
      %p159 = scmp.lt.s32.totalorder %s14, 3
      %p160 = pnand %p158, %p159
      %p161 = pneg %p160
      // Predicated region
      $region9: #{tpu_custom_call.1} parent=5 // pred_check
        _
      $region10: #{tpu_custom_call.1} parent=5 // pred_check_branch
        %163 = sbr.rel (%p160) target = $region12
      $region11: #{tpu_custom_call.1} parent=5 // pred_region
        %s164 = ssub.s32 %s14, 1
        // Predicated region
        $region13: #{tpu_custom_call.1} parent=11 // pred_check
          %p165 = pneg %p61
        $region14: #{tpu_custom_call.1} parent=11 // pred_check_branch
          %167 = sbr.rel (%p165) target = $region16
        $region15: #{tpu_custom_call.1} parent=11 // pred_region
          _
        $region16: #{tpu_custom_call.1} parent=11 // pred_fallthru
          _
        // Predicated region
        $region17: #{tpu_custom_call.1} parent=11 // pred_check
          %p168 = pneg %p82
        $region18: #{tpu_custom_call.1} parent=11 // pred_check_branch
          %170 = sbr.rel (%p168) target = $region20
        $region19: #{tpu_custom_call.1} parent=11 // pred_region
          _
        $region20: #{tpu_custom_call.1} parent=11 // pred_fallthru
          _
        // Predicated region
        $region21: #{tpu_custom_call.1} parent=11 // pred_check
          %p171 = pneg %p103
        $region22: #{tpu_custom_call.1} parent=11 // pred_check_branch
          %173 = sbr.rel (%p171) target = $region24
        $region23: #{tpu_custom_call.1} parent=11 // pred_region
          _
        $region24: #{tpu_custom_call.1} parent=11 // pred_fallthru
          _
        // Predicated region
        $region25: #{tpu_custom_call.1} parent=11 // pred_check
          %p174 = pneg %p124
        $region26: #{tpu_custom_call.1} parent=11 // pred_check_branch
          %176 = sbr.rel (%p174) target = $region28
        $region27: #{tpu_custom_call.1} parent=11 // pred_region
          _
        $region28: #{tpu_custom_call.1} parent=11 // pred_fallthru
          _
      $region12: #{tpu_custom_call.1} parent=5 // pred_fallthru
        _
      %p177 = scmp.lt.s32.totalorder %s14, 2
      // Predicated region
      $region29: #{tpu_custom_call.1} parent=5 // pred_check
        %p178 = pneg %p177
      $region30: #{tpu_custom_call.1} parent=5 // pred_check_branch
        %180 = sbr.rel (%p178) target = $region32
      $region31: #{tpu_custom_call.1} parent=5 // pred_region
        // Predicated region
        $region33: #{tpu_custom_call.1} parent=31 // pred_check
          %p181 = pneg %p34
        $region34: #{tpu_custom_call.1} parent=31 // pred_check_branch
          %183 = sbr.rel (%p181) target = $region36
        $region35: #{tpu_custom_call.1} parent=31 // pred_region
          %p184 = scmp.lt.s32.totalorder %s14, 1
          %s185 = scalar_select %p184, %s14, 1
          %s186 = smul.addr %s185, 4
          %s187 = scalar_lea.vmem %s0, %s186
        $region36: #{tpu_custom_call.1} parent=31 // pred_fallthru
          _
      $region32: #{tpu_custom_call.1} parent=5 // pred_fallthru
        _
      %p188 = scmp.le.s32.totalorder 1, %s14
      %p189 = scmp.lt.s32.totalorder %s14, 3
      %p190 = pnand %p188, %p189
      %p191 = pneg %p190
      // Predicated region
      $region37: #{tpu_custom_call.1} parent=5 // pred_check
        _
      $region38: #{tpu_custom_call.1} parent=5 // pred_check_branch
        %193 = sbr.rel (%p190) target = $region40
      $region39: #{tpu_custom_call.1} parent=5 // pred_region
        %s194 = ssub.s32 %s14, 1
        %p195 = scmp.lt.s32.totalorder %s19, 1
        %s196 = scalar_select %p195, %s19, 1
        %s197 = smul.addr %s196, 4
        %s198 = scalar_lea.vmem %s0, %s197
        %p199 = pneg %p40
        %p200 = pneg %p37
        %p201 = pneg %p61
        %p202 = pneg %p58
        %p203 = pneg %p82
        %p204 = pneg %p79
        %p205 = pneg %p103
        %p206 = pneg %p100
        %p207 = pneg %p124
        %p208 = pneg %p121
        %p209 = pneg %p150
        %p210 = pneg %p147
        %s211 = sand.u32 %s137, 1
        %s212 = scalar_lea.sflag [#allocation3], %s211
        %s213 = sand.u32 %s137, 1
        %s214 = smul.addr %s213, 8
        %s215 = scalar_lea.vmem [#allocation2], %s214
        %p216 = scmp.lt.s32.totalorder %s19, 1
        %s217 = scalar_select %p216, %s19, 1
        %s218 = smul.addr %s217, 4
        %s219 = scalar_lea.vmem %s0, %s218
        %v220 = vld [vmem:[%s219] sm:$0xf]
        %v221 = vlaneseq
        %v222 = vshrl.u32 %v221, 7
        %v223 = vadd.s32 %v222, 8
        %v224 = vlaneseq
        %v225 = vand.u32 %v224, 127
        %v226 = vsub.s32 %v225, 1
        %vm227 = vcmp.eq.s32.totalorder %v222, %v226
        %vm228 = vcmp.eq.s32.totalorder %v223, %v226
        %v229 = vsel %vm227, 1, 0
        %v230 = vsel %vm228, 1, 0
        %v231 = vcvt.s32.f32 %v229
        %v232 = vcvt.s32.f32 %v230
        %v233 = vadd.s32 %v225, 1
        %vm234 = vcmp.eq.s32.totalorder %v222, %v233
        %vm235 = vcmp.eq.s32.totalorder %v223, %v233
        %v236 = vsel %vm234, 1, 0
        %v237 = vsel %vm235, 1, 0
        %v238 = vcvt.s32.f32 %v236
        %v239 = vcvt.s32.f32 %v237
        %vm240 = vcmask 130048
        %v242 = vsel %vm240, %v220, 0
        %244 = vmatprep.subr.mxu0 0.0
        %245 = vmatpush1.msra.mxu0 %v231
        %246 = vmatprep.subr.mxu0 0.0
        %247 = vmatpush1.msra.mxu0 %v232
        %248 = vmatprep.subr.mxu0 0.0
        %249 = vmatpush1.msra.mxu0 0.0
        %250 = vmatprep.subr.mxu0 0.0
        %251 = vmatpush1.msra.mxu0 0.0
        %252 = vmatprep.subr.mxu0 0.0
        %253 = vmatpush1.msra.mxu0 0.0
        %254 = vmatprep.subr.mxu0 0.0
        %255 = vmatpush1.msra.mxu0 0.0
        %256 = vmatprep.subr.mxu0 0.0
        %257 = vmatpush1.msra.mxu0 0.0
        %258 = vmatprep.subr.mxu0 0.0
        %259 = vmatpush1.msra.mxu0 0.0
        %260 = vmatprep.subr.mxu0 0.0
        %261 = vmatpush1.msra.mxu0 0.0
        %262 = vmatprep.subr.mxu0 0.0
        %263 = vmatpush1.msra.mxu0 0.0
        %264 = vmatprep.subr.mxu0 0.0
        %265 = vmatpush1.msra.mxu0 0.0
        %266 = vmatprep.subr.mxu0 0.0
        %267 = vmatpush1.msra.mxu0 0.0
        %268 = vmatprep.subr.mxu0 0.0
        %269 = vmatpush1.msra.mxu0 0.0
        %270 = vmatprep.subr.mxu0 0.0
        %271 = vmatpush1.msra.mxu0 0.0
        %272 = vmatprep.subr.mxu0 0.0
        %273 = vmatpush1.msra.mxu0 0.0
        %274 = vmatprep.subr.mxu0 0.0
        %275 = vmatpush1.msra.mxu0 0.0
        %276 = vmatprep.subr.mxu0 0.0
        %277 = vmatpush1.msra.mxu0 0.0
        %278 = vmatprep.subr.mxu0 0.0
        %279 = vmatpush1.msra.mxu0 0.0
        %280 = vmatprep.subr.mxu0 0.0
        %281 = vmatpush1.msra.mxu0 0.0
        %282 = vmatprep.subr.mxu0 0.0
        %283 = vmatpush1.msra.mxu0 0.0
        %284 = vmatprep.subr.mxu0 0.0
        %285 = vmatpush1.msra.mxu0 0.0
        %286 = vmatprep.subr.mxu0 0.0
        %287 = vmatpush1.msra.mxu0 0.0
        %288 = vmatprep.subr.mxu0 0.0
        %289 = vmatpush1.msra.mxu0 0.0
        %290 = vmatprep.subr.mxu0 0.0
        %291 = vmatpush1.msra.mxu0 0.0
        %292 = vmatprep.subr.mxu0 0.0
        %293 = vmatpush1.msra.mxu0 0.0
        %294 = vmatprep.subr.mxu0 0.0
        %295 = vmatpush1.msra.mxu0 0.0
        %296 = vmatprep.subr.mxu0 0.0
        %297 = vmatpush1.msra.mxu0 0.0
        %298 = vmatprep.subr.mxu0 0.0
        %299 = vmatpush1.msra.mxu0 0.0
        %300 = vmatprep.subr.mxu0 0.0
        %301 = vmatpush1.msra.mxu0 0.0
        %302 = vmatprep.subr.mxu0 0.0
        %303 = vmatpush1.msra.mxu0 0.0
        %304 = vmatprep.subr.mxu0 0.0
        %305 = vmatpush1.msra.mxu0 0.0
        %306 = vmatprep.subr.mxu0 0.0
        %307 = vmatpush1.msra.mxu0 0.0
        %308 = vmatprep.mubr.f32.mxu0 0.0
        %309 = vmatmul.mubr.f32.gmra.mrb[0].mxu0 %v242
        %v310 = vpop.f32.mrb[0].mxu0
        %v311 = vadd.f32 0.0, %v310
        %v312 = vpop.f32.mrb[0].mxu0
        %313 = vdwg.mxu0
        %314 = vmatprep.subr.mxu0 0.0
        %315 = vmatpush1.msra.mxu0 %v238
        %316 = vmatprep.subr.mxu0 0.0
        %317 = vmatpush1.msra.mxu0 %v239
        %318 = vmatprep.subr.mxu0 0.0
        %319 = vmatpush1.msra.mxu0 0.0
        %320 = vmatprep.subr.mxu0 0.0
        %321 = vmatpush1.msra.mxu0 0.0
        %322 = vmatprep.subr.mxu0 0.0
        %323 = vmatpush1.msra.mxu0 0.0
        %324 = vmatprep.subr.mxu0 0.0
        %325 = vmatpush1.msra.mxu0 0.0
        %326 = vmatprep.subr.mxu0 0.0
        %327 = vmatpush1.msra.mxu0 0.0
        %328 = vmatprep.subr.mxu0 0.0
        %329 = vmatpush1.msra.mxu0 0.0
        %330 = vmatprep.subr.mxu0 0.0
        %331 = vmatpush1.msra.mxu0 0.0
        %332 = vmatprep.subr.mxu0 0.0
        %333 = vmatpush1.msra.mxu0 0.0
        %334 = vmatprep.subr.mxu0 0.0
        %335 = vmatpush1.msra.mxu0 0.0
        %336 = vmatprep.subr.mxu0 0.0
        %337 = vmatpush1.msra.mxu0 0.0
        %338 = vmatprep.subr.mxu0 0.0
        %339 = vmatpush1.msra.mxu0 0.0
        %340 = vmatprep.subr.mxu0 0.0
        %341 = vmatpush1.msra.mxu0 0.0
        %342 = vmatprep.subr.mxu0 0.0
        %343 = vmatpush1.msra.mxu0 0.0
        %344 = vmatprep.subr.mxu0 0.0
        %345 = vmatpush1.msra.mxu0 0.0
        %346 = vmatprep.subr.mxu0 0.0
        %347 = vmatpush1.msra.mxu0 0.0
        %348 = vmatprep.subr.mxu0 0.0
        %349 = vmatpush1.msra.mxu0 0.0
        %350 = vmatprep.subr.mxu0 0.0
        %351 = vmatpush1.msra.mxu0 0.0
        %352 = vmatprep.subr.mxu0 0.0
        %353 = vmatpush1.msra.mxu0 0.0
        %354 = vmatprep.subr.mxu0 0.0
        %355 = vmatpush1.msra.mxu0 0.0
        %356 = vmatprep.subr.mxu0 0.0
        %357 = vmatpush1.msra.mxu0 0.0
        %358 = vmatprep.subr.mxu0 0.0
        %359 = vmatpush1.msra.mxu0 0.0
        %360 = vmatprep.subr.mxu0 0.0
        %361 = vmatpush1.msra.mxu0 0.0
        %362 = vmatprep.subr.mxu0 0.0
        %363 = vmatpush1.msra.mxu0 0.0
        %364 = vmatprep.subr.mxu0 0.0
        %365 = vmatpush1.msra.mxu0 0.0
        %366 = vmatprep.subr.mxu0 0.0
        %367 = vmatpush1.msra.mxu0 0.0
        %368 = vmatprep.subr.mxu0 0.0
        %369 = vmatpush1.msra.mxu0 0.0
        %370 = vmatprep.subr.mxu0 0.0
        %371 = vmatpush1.msra.mxu0 0.0
        %372 = vmatprep.subr.mxu0 0.0
        %373 = vmatpush1.msra.mxu0 0.0
        %374 = vmatprep.subr.mxu0 0.0
        %375 = vmatpush1.msra.mxu0 0.0
        %376 = vmatprep.subr.mxu0 0.0
        %377 = vmatpush1.msra.mxu0 0.0
        %378 = vmatprep.mubr.f32.mxu0 0.0
        %379 = vmatmul.mubr.f32.gmra.mrb[0].mxu0 %v242
        %v380 = vpop.f32.mrb[0].mxu0
        %v381 = vadd.f32 0.0, %v380
        %v382 = vpop.f32.mrb[0].mxu0
        %383 = vdwg.mxu0
        %v384 = vld [vmem:[%s1] sm:$0xff]
        %s385 = scalar_lea.vmem %s1, 8
        %v386 = vld [vmem:[%s385] sm:$0xff]
        %vm387 = vcmask 31744
        %v389 = vsel %vm387, %v386, 0
        %vm391 = vcmask 1043456
        %v392 = vsel %vm391, %v220, 0
        %394 = vmatprep.subr.mxu0 0.0
        %395 = vmatpush1.msra.mxu0 %v392
        %396 = vmatprep.subr.mxu0 0.0
        %397 = vmatpush1.msra.mxu0 0.0
        %398 = vmatprep.subr.mxu0 0.0
        %399 = vmatpush1.msra.mxu0 0.0
        %400 = vmatprep.subr.mxu0 0.0
        %401 = vmatpush1.msra.mxu0 0.0
        %402 = vmatprep.subr.mxu0 0.0
        %403 = vmatpush1.msra.mxu0 0.0
        %404 = vmatprep.subr.mxu0 0.0
        %405 = vmatpush1.msra.mxu0 0.0
        %406 = vmatprep.subr.mxu0 0.0
        %407 = vmatpush1.msra.mxu0 0.0
        %408 = vmatprep.subr.mxu0 0.0
        %409 = vmatpush1.msra.mxu0 0.0
        %410 = vmatprep.subr.mxu0 0.0
        %411 = vmatpush1.msra.mxu0 0.0
        %412 = vmatprep.subr.mxu0 0.0
        %413 = vmatpush1.msra.mxu0 0.0
        %414 = vmatprep.subr.mxu0 0.0
        %415 = vmatpush1.msra.mxu0 0.0
        %416 = vmatprep.subr.mxu0 0.0
        %417 = vmatpush1.msra.mxu0 0.0
        %418 = vmatprep.subr.mxu0 0.0
        %419 = vmatpush1.msra.mxu0 0.0
        %420 = vmatprep.subr.mxu0 0.0
        %421 = vmatpush1.msra.mxu0 0.0
        %422 = vmatprep.subr.mxu0 0.0
        %423 = vmatpush1.msra.mxu0 0.0
        %424 = vmatprep.subr.mxu0 0.0
        %425 = vmatpush1.msra.mxu0 0.0
        %426 = vmatprep.subr.mxu0 0.0
        %427 = vmatpush1.msra.mxu0 0.0
        %428 = vmatprep.subr.mxu0 0.0
        %429 = vmatpush1.msra.mxu0 0.0
        %430 = vmatprep.subr.mxu0 0.0
        %431 = vmatpush1.msra.mxu0 0.0
        %432 = vmatprep.subr.mxu0 0.0
        %433 = vmatpush1.msra.mxu0 0.0
        %434 = vmatprep.subr.mxu0 0.0
        %435 = vmatpush1.msra.mxu0 0.0
        %436 = vmatprep.subr.mxu0 0.0
        %437 = vmatpush1.msra.mxu0 0.0
        %438 = vmatprep.subr.mxu0 0.0
        %439 = vmatpush1.msra.mxu0 0.0
        %440 = vmatprep.subr.mxu0 0.0
        %441 = vmatpush1.msra.mxu0 0.0
        %442 = vmatprep.subr.mxu0 0.0
        %443 = vmatpush1.msra.mxu0 0.0
        %444 = vmatprep.subr.mxu0 0.0
        %445 = vmatpush1.msra.mxu0 0.0
        %446 = vmatprep.subr.mxu0 0.0
        %447 = vmatpush1.msra.mxu0 0.0
        %448 = vmatprep.subr.mxu0 0.0
        %449 = vmatpush1.msra.mxu0 0.0
        %450 = vmatprep.subr.mxu0 0.0
        %451 = vmatpush1.msra.mxu0 0.0
        %452 = vmatprep.subr.mxu0 0.0
        %453 = vmatpush1.msra.mxu0 0.0
        %454 = vmatprep.subr.mxu0 0.0
        %455 = vmatpush1.msra.mxu0 0.0
        %456 = vmatprep.subr.mxu0 0.0
        %457 = vmatpush1.msra.mxu0 0.0
        %458 = vmatprep.mubr.f32.mxu0 0.0
        %459 = vmatmul.mubr.f32.gmra.mrb[0].mxu0 %v389
        %v460 = vpop.f32.mrb[0].mxu0
        %v461 = vadd.f32 0.0, %v460
        %v462 = vpop.f32.mrb[0].mxu0
        %463 = vdwg.mxu0
        %v465 = vsel %vm387, %v384, 0
        %v468 = vsel %vm391, %v311, 0
        %470 = vmatprep.subr.mxu0 0.0
        %471 = vmatpush1.msra.mxu0 %v468
        %472 = vmatprep.subr.mxu0 0.0
        %473 = vmatpush1.msra.mxu0 0.0
        %474 = vmatprep.subr.mxu0 0.0
        %475 = vmatpush1.msra.mxu0 0.0
        %476 = vmatprep.subr.mxu0 0.0
        %477 = vmatpush1.msra.mxu0 0.0
        %478 = vmatprep.subr.mxu0 0.0
        %479 = vmatpush1.msra.mxu0 0.0
        %480 = vmatprep.subr.mxu0 0.0
        %481 = vmatpush1.msra.mxu0 0.0
        %482 = vmatprep.subr.mxu0 0.0
        %483 = vmatpush1.msra.mxu0 0.0
        %484 = vmatprep.subr.mxu0 0.0
        %485 = vmatpush1.msra.mxu0 0.0
        %486 = vmatprep.subr.mxu0 0.0
        %487 = vmatpush1.msra.mxu0 0.0
        %488 = vmatprep.subr.mxu0 0.0
        %489 = vmatpush1.msra.mxu0 0.0
        %490 = vmatprep.subr.mxu0 0.0
        %491 = vmatpush1.msra.mxu0 0.0
        %492 = vmatprep.subr.mxu0 0.0
        %493 = vmatpush1.msra.mxu0 0.0
        %494 = vmatprep.subr.mxu0 0.0
        %495 = vmatpush1.msra.mxu0 0.0
        %496 = vmatprep.subr.mxu0 0.0
        %497 = vmatpush1.msra.mxu0 0.0
        %498 = vmatprep.subr.mxu0 0.0
        %499 = vmatpush1.msra.mxu0 0.0
        %500 = vmatprep.subr.mxu0 0.0
        %501 = vmatpush1.msra.mxu0 0.0
        %502 = vmatprep.subr.mxu0 0.0
        %503 = vmatpush1.msra.mxu0 0.0
        %504 = vmatprep.subr.mxu0 0.0
        %505 = vmatpush1.msra.mxu0 0.0
        %506 = vmatprep.subr.mxu0 0.0
        %507 = vmatpush1.msra.mxu0 0.0
        %508 = vmatprep.subr.mxu0 0.0
        %509 = vmatpush1.msra.mxu0 0.0
        %510 = vmatprep.subr.mxu0 0.0
        %511 = vmatpush1.msra.mxu0 0.0
        %512 = vmatprep.subr.mxu0 0.0
        %513 = vmatpush1.msra.mxu0 0.0
        %514 = vmatprep.subr.mxu0 0.0
        %515 = vmatpush1.msra.mxu0 0.0
        %516 = vmatprep.subr.mxu0 0.0
        %517 = vmatpush1.msra.mxu0 0.0
        %518 = vmatprep.subr.mxu0 0.0
        %519 = vmatpush1.msra.mxu0 0.0
        %520 = vmatprep.subr.mxu0 0.0
        %521 = vmatpush1.msra.mxu0 0.0
        %522 = vmatprep.subr.mxu0 0.0
        %523 = vmatpush1.msra.mxu0 0.0
        %524 = vmatprep.subr.mxu0 0.0
        %525 = vmatpush1.msra.mxu0 0.0
        %526 = vmatprep.subr.mxu0 0.0
        %527 = vmatpush1.msra.mxu0 0.0
        %528 = vmatprep.subr.mxu0 0.0
        %529 = vmatpush1.msra.mxu0 0.0
        %530 = vmatprep.subr.mxu0 0.0
        %531 = vmatpush1.msra.mxu0 0.0
        %532 = vmatprep.subr.mxu0 0.0
        %533 = vmatpush1.msra.mxu0 0.0
        %534 = vmatprep.mubr.f32.mxu0 0.0
        %535 = vmatmul.mubr.f32.gmra.mrb[0].mxu0 %v465
        %v536 = vpop.f32.mrb[0].mxu0
        %v537 = vadd.f32 %v461, %v536
        %v538 = vpop.f32.mrb[0].mxu0
        %539 = vdwg.mxu0
        %s540 = scalar_lea.vmem %s1, 16
        %v541 = vld [vmem:[%s540] sm:$0xff]
        %v543 = vsel %vm387, %v541, 0
        %v546 = vsel %vm391, %v381, 0
        %548 = vmatprep.subr.mxu0 0.0
        %549 = vmatpush1.msra.mxu0 %v546
        %550 = vmatprep.subr.mxu0 0.0
        %551 = vmatpush1.msra.mxu0 0.0
        %552 = vmatprep.subr.mxu0 0.0
        %553 = vmatpush1.msra.mxu0 0.0
        %554 = vmatprep.subr.mxu0 0.0
        %555 = vmatpush1.msra.mxu0 0.0
        %556 = vmatprep.subr.mxu0 0.0
        %557 = vmatpush1.msra.mxu0 0.0
        %558 = vmatprep.subr.mxu0 0.0
        %559 = vmatpush1.msra.mxu0 0.0
        %560 = vmatprep.subr.mxu0 0.0
        %561 = vmatpush1.msra.mxu0 0.0
        %562 = vmatprep.subr.mxu0 0.0
        %563 = vmatpush1.msra.mxu0 0.0
        %564 = vmatprep.subr.mxu0 0.0
        %565 = vmatpush1.msra.mxu0 0.0
        %566 = vmatprep.subr.mxu0 0.0
        %567 = vmatpush1.msra.mxu0 0.0
        %568 = vmatprep.subr.mxu0 0.0
        %569 = vmatpush1.msra.mxu0 0.0
        %570 = vmatprep.subr.mxu0 0.0
        %571 = vmatpush1.msra.mxu0 0.0
        %572 = vmatprep.subr.mxu0 0.0
        %573 = vmatpush1.msra.mxu0 0.0
        %574 = vmatprep.subr.mxu0 0.0
        %575 = vmatpush1.msra.mxu0 0.0
        %576 = vmatprep.subr.mxu0 0.0
        %577 = vmatpush1.msra.mxu0 0.0
        %578 = vmatprep.subr.mxu0 0.0
        %579 = vmatpush1.msra.mxu0 0.0
        %580 = vmatprep.subr.mxu0 0.0
        %581 = vmatpush1.msra.mxu0 0.0
        %582 = vmatprep.subr.mxu0 0.0
        %583 = vmatpush1.msra.mxu0 0.0
        %584 = vmatprep.subr.mxu0 0.0
        %585 = vmatpush1.msra.mxu0 0.0
        %586 = vmatprep.subr.mxu0 0.0
        %587 = vmatpush1.msra.mxu0 0.0
        %588 = vmatprep.subr.mxu0 0.0
        %589 = vmatpush1.msra.mxu0 0.0
        %590 = vmatprep.subr.mxu0 0.0
        %591 = vmatpush1.msra.mxu0 0.0
        %592 = vmatprep.subr.mxu0 0.0
        %593 = vmatpush1.msra.mxu0 0.0
        %594 = vmatprep.subr.mxu0 0.0
        %595 = vmatpush1.msra.mxu0 0.0
        %596 = vmatprep.subr.mxu0 0.0
        %597 = vmatpush1.msra.mxu0 0.0
        %598 = vmatprep.subr.mxu0 0.0
        %599 = vmatpush1.msra.mxu0 0.0
        %600 = vmatprep.subr.mxu0 0.0
        %601 = vmatpush1.msra.mxu0 0.0
        %602 = vmatprep.subr.mxu0 0.0
        %603 = vmatpush1.msra.mxu0 0.0
        %604 = vmatprep.subr.mxu0 0.0
        %605 = vmatpush1.msra.mxu0 0.0
        %606 = vmatprep.subr.mxu0 0.0
        %607 = vmatpush1.msra.mxu0 0.0
        %608 = vmatprep.subr.mxu0 0.0
        %609 = vmatpush1.msra.mxu0 0.0
        %610 = vmatprep.subr.mxu0 0.0
        %611 = vmatpush1.msra.mxu0 0.0
        %612 = vmatprep.mubr.f32.mxu0 0.0
        %613 = vmatmul.mubr.f32.gmra.mrb[0].mxu0 %v543
        %v614 = vpop.f32.mrb[0].mxu0
        %v615 = vadd.f32 0.0, %v614
        %v616 = vpop.f32.mrb[0].mxu0
        %617 = vdwg.mxu0
        %v618 = vadd.f32 %v537, %v615
        %v619 = vld [vmem:[%s2] sm:$0xff]
        %621 = vset.pattern.permute.xlu0 0
        %622 = vperm.xlu0 %621, %v619
        %v623 = vpop.permute.xlu0 %622
        %v625 = vadd.f32 %v618, %v623
        %v626 = vmax.f32 %v625, 0.0
        %v628 = vsel %vm240, %v626, 0
        %630 = vmatprep.subr.mxu0 0.0
        %631 = vmatpush1.msra.mxu0 %v231
        %632 = vmatprep.subr.mxu0 0.0
        %633 = vmatpush1.msra.mxu0 %v232
        %634 = vmatprep.subr.mxu0 0.0
        %635 = vmatpush1.msra.mxu0 0.0
        %636 = vmatprep.subr.mxu0 0.0
        %637 = vmatpush1.msra.mxu0 0.0
        %638 = vmatprep.subr.mxu0 0.0
        %639 = vmatpush1.msra.mxu0 0.0
        %640 = vmatprep.subr.mxu0 0.0
        %641 = vmatpush1.msra.mxu0 0.0
        %642 = vmatprep.subr.mxu0 0.0
        %643 = vmatpush1.msra.mxu0 0.0
        %644 = vmatprep.subr.mxu0 0.0
        %645 = vmatpush1.msra.mxu0 0.0
        %646 = vmatprep.subr.mxu0 0.0
        %647 = vmatpush1.msra.mxu0 0.0
        %648 = vmatprep.subr.mxu0 0.0
        %649 = vmatpush1.msra.mxu0 0.0
        %650 = vmatprep.subr.mxu0 0.0
        %651 = vmatpush1.msra.mxu0 0.0
        %652 = vmatprep.subr.mxu0 0.0
        %653 = vmatpush1.msra.mxu0 0.0
        %654 = vmatprep.subr.mxu0 0.0
        %655 = vmatpush1.msra.mxu0 0.0
        %656 = vmatprep.subr.mxu0 0.0
        %657 = vmatpush1.msra.mxu0 0.0
        %658 = vmatprep.subr.mxu0 0.0
        %659 = vmatpush1.msra.mxu0 0.0
        %660 = vmatprep.subr.mxu0 0.0
        %661 = vmatpush1.msra.mxu0 0.0
        %662 = vmatprep.subr.mxu0 0.0
        %663 = vmatpush1.msra.mxu0 0.0
        %664 = vmatprep.subr.mxu0 0.0
        %665 = vmatpush1.msra.mxu0 0.0
        %666 = vmatprep.subr.mxu0 0.0
        %667 = vmatpush1.msra.mxu0 0.0
        %668 = vmatprep.subr.mxu0 0.0
        %669 = vmatpush1.msra.mxu0 0.0
        %670 = vmatprep.subr.mxu0 0.0
        %671 = vmatpush1.msra.mxu0 0.0
        %672 = vmatprep.subr.mxu0 0.0
        %673 = vmatpush1.msra.mxu0 0.0
        %674 = vmatprep.subr.mxu0 0.0
        %675 = vmatpush1.msra.mxu0 0.0
        %676 = vmatprep.subr.mxu0 0.0
        %677 = vmatpush1.msra.mxu0 0.0
        %678 = vmatprep.subr.mxu0 0.0
        %679 = vmatpush1.msra.mxu0 0.0
        %680 = vmatprep.subr.mxu0 0.0
        %681 = vmatpush1.msra.mxu0 0.0
        %682 = vmatprep.subr.mxu0 0.0
        %683 = vmatpush1.msra.mxu0 0.0
        %684 = vmatprep.subr.mxu0 0.0
        %685 = vmatpush1.msra.mxu0 0.0
        %686 = vmatprep.subr.mxu0 0.0
        %687 = vmatpush1.msra.mxu0 0.0
        %688 = vmatprep.subr.mxu0 0.0
        %689 = vmatpush1.msra.mxu0 0.0
        %690 = vmatprep.subr.mxu0 0.0
        %691 = vmatpush1.msra.mxu0 0.0
        %692 = vmatprep.subr.mxu0 0.0
        %693 = vmatpush1.msra.mxu0 0.0
        %694 = vmatprep.mubr.f32.mxu0 0.0
        %695 = vmatmul.mubr.f32.gmra.mrb[0].mxu0 %v628
        %v696 = vpop.f32.mrb[0].mxu0
        %v697 = vadd.f32 0.0, %v696
        %v698 = vpop.f32.mrb[0].mxu0
        %699 = vdwg.mxu0
        %700 = vmatprep.subr.mxu0 0.0
        %701 = vmatpush1.msra.mxu0 %v238
        %702 = vmatprep.subr.mxu0 0.0
        %703 = vmatpush1.msra.mxu0 %v239
        %704 = vmatprep.subr.mxu0 0.0
        %705 = vmatpush1.msra.mxu0 0.0
        %706 = vmatprep.subr.mxu0 0.0
        %707 = vmatpush1.msra.mxu0 0.0
        %708 = vmatprep.subr.mxu0 0.0
        %709 = vmatpush1.msra.mxu0 0.0
        %710 = vmatprep.subr.mxu0 0.0
        %711 = vmatpush1.msra.mxu0 0.0
        %712 = vmatprep.subr.mxu0 0.0
        %713 = vmatpush1.msra.mxu0 0.0
        %714 = vmatprep.subr.mxu0 0.0
        %715 = vmatpush1.msra.mxu0 0.0
        %716 = vmatprep.subr.mxu0 0.0
        %717 = vmatpush1.msra.mxu0 0.0
        %718 = vmatprep.subr.mxu0 0.0
        %719 = vmatpush1.msra.mxu0 0.0
        %720 = vmatprep.subr.mxu0 0.0
        %721 = vmatpush1.msra.mxu0 0.0
        %722 = vmatprep.subr.mxu0 0.0
        %723 = vmatpush1.msra.mxu0 0.0
        %724 = vmatprep.subr.mxu0 0.0
        %725 = vmatpush1.msra.mxu0 0.0
        %726 = vmatprep.subr.mxu0 0.0
        %727 = vmatpush1.msra.mxu0 0.0
        %728 = vmatprep.subr.mxu0 0.0
        %729 = vmatpush1.msra.mxu0 0.0
        %730 = vmatprep.subr.mxu0 0.0
        %731 = vmatpush1.msra.mxu0 0.0
        %732 = vmatprep.subr.mxu0 0.0
        %733 = vmatpush1.msra.mxu0 0.0
        %734 = vmatprep.subr.mxu0 0.0
        %735 = vmatpush1.msra.mxu0 0.0
        %736 = vmatprep.subr.mxu0 0.0
        %737 = vmatpush1.msra.mxu0 0.0
        %738 = vmatprep.subr.mxu0 0.0
        %739 = vmatpush1.msra.mxu0 0.0
        %740 = vmatprep.subr.mxu0 0.0
        %741 = vmatpush1.msra.mxu0 0.0
        %742 = vmatprep.subr.mxu0 0.0
        %743 = vmatpush1.msra.mxu0 0.0
        %744 = vmatprep.subr.mxu0 0.0
        %745 = vmatpush1.msra.mxu0 0.0
        %746 = vmatprep.subr.mxu0 0.0
        %747 = vmatpush1.msra.mxu0 0.0
        %748 = vmatprep.subr.mxu0 0.0
        %749 = vmatpush1.msra.mxu0 0.0
        %750 = vmatprep.subr.mxu0 0.0
        %751 = vmatpush1.msra.mxu0 0.0
        %752 = vmatprep.subr.mxu0 0.0
        %753 = vmatpush1.msra.mxu0 0.0
        %754 = vmatprep.subr.mxu0 0.0
        %755 = vmatpush1.msra.mxu0 0.0
        %756 = vmatprep.subr.mxu0 0.0
        %757 = vmatpush1.msra.mxu0 0.0
        %758 = vmatprep.subr.mxu0 0.0
        %759 = vmatpush1.msra.mxu0 0.0
        %760 = vmatprep.subr.mxu0 0.0
        %761 = vmatpush1.msra.mxu0 0.0
        %762 = vmatprep.subr.mxu0 0.0
        %763 = vmatpush1.msra.mxu0 0.0
        %764 = vmatprep.mubr.f32.mxu0 0.0
        %765 = vmatmul.mubr.f32.gmra.mrb[0].mxu0 %v628
        %v766 = vpop.f32.mrb[0].mxu0
        %v767 = vadd.f32 0.0, %v766
        %v768 = vpop.f32.mrb[0].mxu0
        %769 = vdwg.mxu0
        %v770 = vld [vmem:[%s3] sm:$0xff]
        %s771 = scalar_lea.vmem %s3, 8
        %v772 = vld [vmem:[%s771] sm:$0xff]
        %vm773 = vcmask 64512
        %v775 = vsel %vm773, %v772, 0
        %777 = vmatprep.subr.mxu0 0.0
        %778 = vmatpush1.msra.mxu0 %v626
        %779 = vmatprep.subr.mxu0 0.0
        %780 = vmatpush1.msra.mxu0 0.0
        %781 = vmatprep.subr.mxu0 0.0
        %782 = vmatpush1.msra.mxu0 0.0
        %783 = vmatprep.subr.mxu0 0.0
        %784 = vmatpush1.msra.mxu0 0.0
        %785 = vmatprep.subr.mxu0 0.0
        %786 = vmatpush1.msra.mxu0 0.0
        %787 = vmatprep.subr.mxu0 0.0
        %788 = vmatpush1.msra.mxu0 0.0
        %789 = vmatprep.subr.mxu0 0.0
        %790 = vmatpush1.msra.mxu0 0.0
        %791 = vmatprep.subr.mxu0 0.0
        %792 = vmatpush1.msra.mxu0 0.0
        %793 = vmatprep.subr.mxu0 0.0
        %794 = vmatpush1.msra.mxu0 0.0
        %795 = vmatprep.subr.mxu0 0.0
        %796 = vmatpush1.msra.mxu0 0.0
        %797 = vmatprep.subr.mxu0 0.0
        %798 = vmatpush1.msra.mxu0 0.0
        %799 = vmatprep.subr.mxu0 0.0
        %800 = vmatpush1.msra.mxu0 0.0
        %801 = vmatprep.subr.mxu0 0.0
        %802 = vmatpush1.msra.mxu0 0.0
        %803 = vmatprep.subr.mxu0 0.0
        %804 = vmatpush1.msra.mxu0 0.0
        %805 = vmatprep.subr.mxu0 0.0
        %806 = vmatpush1.msra.mxu0 0.0
        %807 = vmatprep.subr.mxu0 0.0
        %808 = vmatpush1.msra.mxu0 0.0
        %809 = vmatprep.subr.mxu0 0.0
        %810 = vmatpush1.msra.mxu0 0.0
        %811 = vmatprep.subr.mxu0 0.0
        %812 = vmatpush1.msra.mxu0 0.0
        %813 = vmatprep.subr.mxu0 0.0
        %814 = vmatpush1.msra.mxu0 0.0
        %815 = vmatprep.subr.mxu0 0.0
        %816 = vmatpush1.msra.mxu0 0.0
        %817 = vmatprep.subr.mxu0 0.0
        %818 = vmatpush1.msra.mxu0 0.0
        %819 = vmatprep.subr.mxu0 0.0
        %820 = vmatpush1.msra.mxu0 0.0
        %821 = vmatprep.subr.mxu0 0.0
        %822 = vmatpush1.msra.mxu0 0.0
        %823 = vmatprep.subr.mxu0 0.0
        %824 = vmatpush1.msra.mxu0 0.0
        %825 = vmatprep.subr.mxu0 0.0
        %826 = vmatpush1.msra.mxu0 0.0
        %827 = vmatprep.subr.mxu0 0.0
        %828 = vmatpush1.msra.mxu0 0.0
        %829 = vmatprep.subr.mxu0 0.0
        %830 = vmatpush1.msra.mxu0 0.0
        %831 = vmatprep.subr.mxu0 0.0
        %832 = vmatpush1.msra.mxu0 0.0
        %833 = vmatprep.subr.mxu0 0.0
        %834 = vmatpush1.msra.mxu0 0.0
        %835 = vmatprep.subr.mxu0 0.0
        %836 = vmatpush1.msra.mxu0 0.0
        %837 = vmatprep.subr.mxu0 0.0
        %838 = vmatpush1.msra.mxu0 0.0
        %839 = vmatprep.subr.mxu0 0.0
        %840 = vmatpush1.msra.mxu0 0.0
        %841 = vmatprep.mubr.f32.mxu0 0.0
        %842 = vmatmul.mubr.f32.gmra.mrb[0].mxu0 %v775
        %v843 = vpop.f32.mrb[0].mxu0
        %v844 = vadd.f32 0.0, %v843
        %v845 = vpop.f32.mrb[0].mxu0
        %846 = vdwg.mxu0
        %v848 = vsel %vm773, %v770, 0
        %850 = vmatprep.subr.mxu0 0.0
        %851 = vmatpush1.msra.mxu0 %v697
        %852 = vmatprep.subr.mxu0 0.0
        %853 = vmatpush1.msra.mxu0 0.0
        %854 = vmatprep.subr.mxu0 0.0
        %855 = vmatpush1.msra.mxu0 0.0
        %856 = vmatprep.subr.mxu0 0.0
        %857 = vmatpush1.msra.mxu0 0.0
        %858 = vmatprep.subr.mxu0 0.0
        %859 = vmatpush1.msra.mxu0 0.0
        %860 = vmatprep.subr.mxu0 0.0
        %861 = vmatpush1.msra.mxu0 0.0
        %862 = vmatprep.subr.mxu0 0.0
        %863 = vmatpush1.msra.mxu0 0.0
        %864 = vmatprep.subr.mxu0 0.0
        %865 = vmatpush1.msra.mxu0 0.0
        %866 = vmatprep.subr.mxu0 0.0
        %867 = vmatpush1.msra.mxu0 0.0
        %868 = vmatprep.subr.mxu0 0.0
        %869 = vmatpush1.msra.mxu0 0.0
        %870 = vmatprep.subr.mxu0 0.0
        %871 = vmatpush1.msra.mxu0 0.0
        %872 = vmatprep.subr.mxu0 0.0
        %873 = vmatpush1.msra.mxu0 0.0
        %874 = vmatprep.subr.mxu0 0.0
        %875 = vmatpush1.msra.mxu0 0.0
        %876 = vmatprep.subr.mxu0 0.0
        %877 = vmatpush1.msra.mxu0 0.0
        %878 = vmatprep.subr.mxu0 0.0
        %879 = vmatpush1.msra.mxu0 0.0
        %880 = vmatprep.subr.mxu0 0.0
        %881 = vmatpush1.msra.mxu0 0.0
        %882 = vmatprep.subr.mxu0 0.0
        %883 = vmatpush1.msra.mxu0 0.0
        %884 = vmatprep.subr.mxu0 0.0
        %885 = vmatpush1.msra.mxu0 0.0
        %886 = vmatprep.subr.mxu0 0.0
        %887 = vmatpush1.msra.mxu0 0.0
        %888 = vmatprep.subr.mxu0 0.0
        %889 = vmatpush1.msra.mxu0 0.0
        %890 = vmatprep.subr.mxu0 0.0
        %891 = vmatpush1.msra.mxu0 0.0
        %892 = vmatprep.subr.mxu0 0.0
        %893 = vmatpush1.msra.mxu0 0.0
        %894 = vmatprep.subr.mxu0 0.0
        %895 = vmatpush1.msra.mxu0 0.0
        %896 = vmatprep.subr.mxu0 0.0
        %897 = vmatpush1.msra.mxu0 0.0
        %898 = vmatprep.subr.mxu0 0.0
        %899 = vmatpush1.msra.mxu0 0.0
        %900 = vmatprep.subr.mxu0 0.0
        %901 = vmatpush1.msra.mxu0 0.0
        %902 = vmatprep.subr.mxu0 0.0
        %903 = vmatpush1.msra.mxu0 0.0
        %904 = vmatprep.subr.mxu0 0.0
        %905 = vmatpush1.msra.mxu0 0.0
        %906 = vmatprep.subr.mxu0 0.0
        %907 = vmatpush1.msra.mxu0 0.0
        %908 = vmatprep.subr.mxu0 0.0
        %909 = vmatpush1.msra.mxu0 0.0
        %910 = vmatprep.subr.mxu0 0.0
        %911 = vmatpush1.msra.mxu0 0.0
        %912 = vmatprep.subr.mxu0 0.0
        %913 = vmatpush1.msra.mxu0 0.0
        %914 = vmatprep.mubr.f32.mxu0 0.0
        %915 = vmatmul.mubr.f32.gmra.mrb[0].mxu0 %v848
        %v916 = vpop.f32.mrb[0].mxu0
        %v917 = vadd.f32 %v844, %v916
        %v918 = vpop.f32.mrb[0].mxu0
        %919 = vdwg.mxu0
        %s920 = scalar_lea.vmem %s3, 16
        %v921 = vld [vmem:[%s920] sm:$0xff]
        %v923 = vsel %vm773, %v921, 0
        %925 = vmatprep.subr.mxu0 0.0
        %926 = vmatpush1.msra.mxu0 %v767
        %927 = vmatprep.subr.mxu0 0.0
        %928 = vmatpush1.msra.mxu0 0.0
        %929 = vmatprep.subr.mxu0 0.0
        %930 = vmatpush1.msra.mxu0 0.0
        %931 = vmatprep.subr.mxu0 0.0
        %932 = vmatpush1.msra.mxu0 0.0
        %933 = vmatprep.subr.mxu0 0.0
        %934 = vmatpush1.msra.mxu0 0.0
        %935 = vmatprep.subr.mxu0 0.0
        %936 = vmatpush1.msra.mxu0 0.0
        %937 = vmatprep.subr.mxu0 0.0
        %938 = vmatpush1.msra.mxu0 0.0
        %939 = vmatprep.subr.mxu0 0.0
        %940 = vmatpush1.msra.mxu0 0.0
        %941 = vmatprep.subr.mxu0 0.0
        %942 = vmatpush1.msra.mxu0 0.0
        %943 = vmatprep.subr.mxu0 0.0
        %944 = vmatpush1.msra.mxu0 0.0
        %945 = vmatprep.subr.mxu0 0.0
        %946 = vmatpush1.msra.mxu0 0.0
        %947 = vmatprep.subr.mxu0 0.0
        %948 = vmatpush1.msra.mxu0 0.0
        %949 = vmatprep.subr.mxu0 0.0
        %950 = vmatpush1.msra.mxu0 0.0
        %951 = vmatprep.subr.mxu0 0.0
        %952 = vmatpush1.msra.mxu0 0.0
        %953 = vmatprep.subr.mxu0 0.0
        %954 = vmatpush1.msra.mxu0 0.0
        %955 = vmatprep.subr.mxu0 0.0
        %956 = vmatpush1.msra.mxu0 0.0
        %957 = vmatprep.subr.mxu0 0.0
        %958 = vmatpush1.msra.mxu0 0.0
        %959 = vmatprep.subr.mxu0 0.0
        %960 = vmatpush1.msra.mxu0 0.0
        %961 = vmatprep.subr.mxu0 0.0
        %962 = vmatpush1.msra.mxu0 0.0
        %963 = vmatprep.subr.mxu0 0.0
        %964 = vmatpush1.msra.mxu0 0.0
        %965 = vmatprep.subr.mxu0 0.0
        %966 = vmatpush1.msra.mxu0 0.0
        %967 = vmatprep.subr.mxu0 0.0
        %968 = vmatpush1.msra.mxu0 0.0
        %969 = vmatprep.subr.mxu0 0.0
        %970 = vmatpush1.msra.mxu0 0.0
        %971 = vmatprep.subr.mxu0 0.0
        %972 = vmatpush1.msra.mxu0 0.0
        %973 = vmatprep.subr.mxu0 0.0
        %974 = vmatpush1.msra.mxu0 0.0
        %975 = vmatprep.subr.mxu0 0.0
        %976 = vmatpush1.msra.mxu0 0.0
        %977 = vmatprep.subr.mxu0 0.0
        %978 = vmatpush1.msra.mxu0 0.0
        %979 = vmatprep.subr.mxu0 0.0
        %980 = vmatpush1.msra.mxu0 0.0
        %981 = vmatprep.subr.mxu0 0.0
        %982 = vmatpush1.msra.mxu0 0.0
        %983 = vmatprep.subr.mxu0 0.0
        %984 = vmatpush1.msra.mxu0 0.0
        %985 = vmatprep.subr.mxu0 0.0
        %986 = vmatpush1.msra.mxu0 0.0
        %987 = vmatprep.subr.mxu0 0.0
        %988 = vmatpush1.msra.mxu0 0.0
        %989 = vmatprep.mubr.f32.mxu0 0.0
        %990 = vmatmul.mubr.f32.gmra.mrb[0].mxu0 %v923
        %v991 = vpop.f32.mrb[0].mxu0
        %v992 = vadd.f32 0.0, %v991
        %v993 = vpop.f32.mrb[0].mxu0
        %994 = vdwg.mxu0
        %v995 = vadd.f32 %v917, %v992
        %v996 = vld [vmem:[%s4] sm:$0xff]
        %998 = vset.pattern.permute.xlu0 0
        %999 = vperm.xlu0 %998, %v996
        %v1000 = vpop.permute.xlu0 %999
        %v1002 = vadd.f32 %v995, %v1000
        %v1003 = vmax.f32 %v1002, 0.0
        %1004 = vst.msk [vmem:[%s215] sm:$0xff] %vm240, %v1003
        %s1005 = sand.u32 %s137, 1
        %s1006 = scalar_lea.sflag [#allocation3], %s1005
        %s1007 = sand.u32 %s137, 1
        %s1008 = smul.addr %s1007, 8
        %s1009 = scalar_lea.vmem [#allocation2], %s1008
        // Predicated region
        $region41: #{tpu_custom_call.1} parent=39 // pred_check
          %p1010 = pneg %p147
        $region42: #{tpu_custom_call.1} parent=39 // pred_check_branch
          %1012 = sbr.rel (%p1010) target = $region44
        $region43: #{tpu_custom_call.1} parent=39 // pred_region
          %s1014 = ssub.s32 128, 128
          %1015 = vsyncadd %s1006, %s1014
          %s1016 = smul.addr %s19, 128
          %s1017 = scalar_lea.hbm %s5, %s1016
          %s1019 = sshll.u32 %s1009, 4
          %s1020 = int_to_ptr.vmem [resolvable:$true] %s1019
          %1022 = dma.vmem_to_hbm [thread:$0]  %s1020, 128, %s1017, %s1006
        $region44: #{tpu_custom_call.1} parent=39 // pred_fallthru
          _
      $region40: #{tpu_custom_call.1} parent=5 // pred_fallthru
        _
      %p1023 = scmp.le.s32.totalorder 2, %s14
      // Predicated region
      $region45: #{tpu_custom_call.1} parent=5 // pred_check
        %p1024 = pneg %p1023
      $region46: #{tpu_custom_call.1} parent=5 // pred_check_branch
        %1026 = sbr.rel (%p1024) target = $region48
      $region47: #{tpu_custom_call.1} parent=5 // pred_region
        %s1027 = ssub.s32 %s14, 2
        // Predicated region
        $region49: #{tpu_custom_call.1} parent=47 // pred_check
          %p1028 = pneg %p153
        $region50: #{tpu_custom_call.1} parent=47 // pred_check_branch
          %1030 = sbr.rel (%p1028) target = $region52
        $region51: #{tpu_custom_call.1} parent=47 // pred_region
          %s1031 = sand.u32 %s138, 1
          %s1032 = scalar_lea.sflag [#allocation3], %s1031
          %s1033 = sand.u32 %s138, 1
          %s1034 = smul.addr %s1033, 8
          %s1035 = scalar_lea.vmem [#allocation2], %s1034
          %1036 = dma.done %s1032, 128
        $region52: #{tpu_custom_call.1} parent=47 // pred_fallthru
          _
      $region48: #{tpu_custom_call.1} parent=5 // pred_fallthru
        _
    $region6: #{tpu_custom_call.1} parent=1 // loop_footer
      %s18 = sadd.s32 1, %s14
    $region7: #{tpu_custom_call.1} parent=1 // loop_footer_branch
      %13 = sbr.rel target = $region3
    $region8: #{tpu_custom_call.1} parent=1 // loop_exit
      _
    %1037 = vsyncpa [#allocation3], 1
    %s1038 = scalar_lea.sflag [#allocation3], 1
    %1039 = vsyncpa %s1038, 1

// kernel: tpu_custom_call.1
$region0: #{tpu_custom_call.1}
  #allocation0 [shape = 'u32[]', space=smem, size = 0x4, offset = 0x4, fixed_abs, tag = 'smem constant byte address 0x4 - core index']
  #allocation1 [shape = 'u32[144,128]{1,0:T(1,128)}', space=vmem, size = 0x12000, scoped, tag = 'internal scratch']
  %s0 = inlined_call_operand.vmem [shape: f32[2,4,16], index: 0, kind: input, shape index: {}]
  %s1 = inlined_call_operand.vmem [shape: f32[3,8,4], index: 1, kind: input, shape index: {}]
  %s2 = inlined_call_operand.vmem [shape: f32[8,1], index: 2, kind: input, shape index: {}]
  %s3 = inlined_call_operand.vmem [shape: f32[3,8,8], index: 3, kind: input, shape index: {}]
  %s4 = inlined_call_operand.vmem [shape: f32[8,1], index: 4, kind: input, shape index: {}]
  %s5 = inlined_call_operand.hbm [shape: f32[2,8,16], index: 5, kind: output, shape index: {}]
  %s6 = sld [smem:[#allocation0]]
  $region53: #{tpu_custom_call.1} parent=0
    _
  %s8 = ssub.s32 1, %s6
  %s9 = scalar_select 0, %s8, %s6
  $region1: #{tpu_custom_call.1} parent=0
    #allocation2 [shape = 'u8[8192]{0}', space=vmem, size = 0x2000, scoped, tag = 'output window, operand 0']
    #allocation3 [shape = 's32[2]{0}', space=sflag, size = 0x8, scoped, tag = 'scoped memory for tpu_custom_call.1']
    %10 = vsyncpa [#allocation3], 0
    %s11 = scalar_lea.sflag [#allocation3], 1
    %12 = vsyncpa %s11, 0
    loop: start=0, step=1, limit=4
    $region2: #{tpu_custom_call.1} parent=1 // loop_pre_header
      _
    $region3: #{tpu_custom_call.1} parent=1 // loop_header
      %s14 = sphi 0, %s18
      %p15 = scmp.ge.s32.totalorder %s14, 4
      %s24 = sphi 0, %s26
      %s27 = sphi 0, %s24
      %s28 = sphi 0, %s27
      %s44 = sphi 0, %s28
      %s48 = sphi 0, %s48
      %s50 = sphi 0, %s48
      %s51 = sphi 0, %s50
      %s65 = sphi 0, %s51
      %s69 = sphi 0, %s69
      %s71 = sphi 0, %s69
      %s72 = sphi 0, %s71
      %s86 = sphi 0, %s72
      %s90 = sphi 0, %s90
      %s92 = sphi 0, %s90
      %s93 = sphi 0, %s92
      %s107 = sphi 0, %s93
      %s111 = sphi 0, %s111
      %s113 = sphi 0, %s111
      %s114 = sphi 0, %s113
      %s128 = sphi 0, %s114
      %s134 = sphi 0, %s136
      %s137 = sphi 0, %s134
      %s138 = sphi 0, %s137
      %s154 = sphi 0, %s138
    $region4: #{tpu_custom_call.1} parent=1 // loop_header_branch
      %17 = sbr.rel (%p15) target = $region8
    $region5: #{tpu_custom_call.1} parent=1 // loop_body
      %s19 = ssub.s32 %s14, 1
      %s20 = ssub.s32 %s14, 2
      %s21 = sadd.s32 %s14, 1
      %s22 = ssub.s32 %s14, %s21
      %p23 = scmp.eq.s32.totalorder %s22, 0
      %s25 = sadd.s32 %s24, 1
      %s26 = scalar_select %p23, %s24, %s25
      %p29 = pneg %p23
      %p30 = scmp.eq.s32.totalorder %s14, 1
      %p31 = por %p29, %p30
      %p32 = scmp.ne.s32.totalorder %s24, %s27
      %p33 = scmp.eq.s32.totalorder %s14, 0
      %p34 = por %p32, %p33
      %p35 = scmp.ne.s32.totalorder %s24, %s27
      %p36 = scmp.eq.s32.totalorder %s19, 1
      %p37 = por %p35, %p36
      %p38 = scmp.ne.s32.totalorder %s27, %s28
      %p39 = scmp.eq.s32.totalorder %s19, 0
      %p40 = por %p38, %p39
      %p41 = scmp.ne.s32.totalorder %s27, %s28
      %p42 = scmp.eq.s32.totalorder %s20, 1
      %p43 = por %p41, %p42
      %p45 = scmp.ne.s32.totalorder %s28, %s44
      %p46 = scmp.eq.s32.totalorder %s20, 0
      %p47 = por %p45, %p46
      %s49 = sadd.s32 %s48, 1
      %p52 = scmp.eq.s32.totalorder %s14, 1
      %p53 = scmp.ne.s32.totalorder %s48, %s50
      %p54 = scmp.eq.s32.totalorder %s14, 0
      %p55 = por %p53, %p54
      %p56 = scmp.ne.s32.totalorder %s48, %s50
      %p57 = scmp.eq.s32.totalorder %s19, 1
      %p58 = por %p56, %p57
      %p59 = scmp.ne.s32.totalorder %s50, %s51
      %p60 = scmp.eq.s32.totalorder %s19, 0
      %p61 = por %p59, %p60
      %p62 = scmp.ne.s32.totalorder %s50, %s51
      %p63 = scmp.eq.s32.totalorder %s20, 1
      %p64 = por %p62, %p63
      %p66 = scmp.ne.s32.totalorder %s51, %s65
      %p67 = scmp.eq.s32.totalorder %s20, 0
      %p68 = por %p66, %p67
      %s70 = sadd.s32 %s69, 1
      %p73 = scmp.eq.s32.totalorder %s14, 1
      %p74 = scmp.ne.s32.totalorder %s69, %s71
      %p75 = scmp.eq.s32.totalorder %s14, 0
      %p76 = por %p74, %p75
      %p77 = scmp.ne.s32.totalorder %s69, %s71
      %p78 = scmp.eq.s32.totalorder %s19, 1
      %p79 = por %p77, %p78
      %p80 = scmp.ne.s32.totalorder %s71, %s72
      %p81 = scmp.eq.s32.totalorder %s19, 0
      %p82 = por %p80, %p81
      %p83 = scmp.ne.s32.totalorder %s71, %s72
      %p84 = scmp.eq.s32.totalorder %s20, 1
      %p85 = por %p83, %p84
      %p87 = scmp.ne.s32.totalorder %s72, %s86
      %p88 = scmp.eq.s32.totalorder %s20, 0
      %p89 = por %p87, %p88
      %s91 = sadd.s32 %s90, 1
      %p94 = scmp.eq.s32.totalorder %s14, 1
      %p95 = scmp.ne.s32.totalorder %s90, %s92
      %p96 = scmp.eq.s32.totalorder %s14, 0
      %p97 = por %p95, %p96
      %p98 = scmp.ne.s32.totalorder %s90, %s92
      %p99 = scmp.eq.s32.totalorder %s19, 1
      %p100 = por %p98, %p99
      %p101 = scmp.ne.s32.totalorder %s92, %s93
      %p102 = scmp.eq.s32.totalorder %s19, 0
      %p103 = por %p101, %p102
      %p104 = scmp.ne.s32.totalorder %s92, %s93
      %p105 = scmp.eq.s32.totalorder %s20, 1
      %p106 = por %p104, %p105
      %p108 = scmp.ne.s32.totalorder %s93, %s107
      %p109 = scmp.eq.s32.totalorder %s20, 0
      %p110 = por %p108, %p109
      %s112 = sadd.s32 %s111, 1
      %p115 = scmp.eq.s32.totalorder %s14, 1
      %p116 = scmp.ne.s32.totalorder %s111, %s113
      %p117 = scmp.eq.s32.totalorder %s14, 0
      %p118 = por %p116, %p117
      %p119 = scmp.ne.s32.totalorder %s111, %s113
      %p120 = scmp.eq.s32.totalorder %s19, 1
      %p121 = por %p119, %p120
      %p122 = scmp.ne.s32.totalorder %s113, %s114
      %p123 = scmp.eq.s32.totalorder %s19, 0
      %p124 = por %p122, %p123
      %p125 = scmp.ne.s32.totalorder %s113, %s114
      %p126 = scmp.eq.s32.totalorder %s20, 1
      %p127 = por %p125, %p126
      %p129 = scmp.ne.s32.totalorder %s114, %s128
      %p130 = scmp.eq.s32.totalorder %s20, 0
      %p131 = por %p129, %p130
      %s132 = ssub.s32 %s14, %s21
      %p133 = scmp.eq.s32.totalorder %s132, 0
      %s135 = sadd.s32 %s134, 1
      %s136 = scalar_select %p133, %s134, %s135
      %p139 = pneg %p133
      %p140 = scmp.eq.s32.totalorder %s14, 1
      %p141 = por %p139, %p140
      %p142 = scmp.ne.s32.totalorder %s134, %s137
      %p143 = scmp.eq.s32.totalorder %s14, 0
      %p144 = por %p142, %p143
      %p145 = scmp.ne.s32.totalorder %s134, %s137
      %p146 = scmp.eq.s32.totalorder %s19, 1
      %p147 = por %p145, %p146
      %p148 = scmp.ne.s32.totalorder %s137, %s138
      %p149 = scmp.eq.s32.totalorder %s19, 0
      %p150 = por %p148, %p149
      %p151 = scmp.ne.s32.totalorder %s137, %s138
      %p152 = scmp.eq.s32.totalorder %s20, 1
      %p153 = por %p151, %p152
      %p155 = scmp.ne.s32.totalorder %s138, %s154
      %p156 = scmp.eq.s32.totalorder %s20, 0
      %p157 = por %p155, %p156
      %p158 = scmp.le.s32.totalorder 1, %s14
      %p159 = scmp.lt.s32.totalorder %s14, 3
      %p160 = pnand %p158, %p159
      %p161 = pneg %p160
      // Predicated region
      $region9: #{tpu_custom_call.1} parent=5 // pred_check
        _
      $region10: #{tpu_custom_call.1} parent=5 // pred_check_branch
        %163 = sbr.rel (%p160) target = $region12
      $region11: #{tpu_custom_call.1} parent=5 // pred_region
        %s164 = ssub.s32 %s14, 1
        // Predicated region
        $region13: #{tpu_custom_call.1} parent=11 // pred_check
          %p165 = pneg %p61
        $region14: #{tpu_custom_call.1} parent=11 // pred_check_branch
          %167 = sbr.rel (%p165) target = $region16
        $region15: #{tpu_custom_call.1} parent=11 // pred_region
          _
        $region16: #{tpu_custom_call.1} parent=11 // pred_fallthru
          _
        // Predicated region
        $region17: #{tpu_custom_call.1} parent=11 // pred_check
          %p168 = pneg %p82
        $region18: #{tpu_custom_call.1} parent=11 // pred_check_branch
          %170 = sbr.rel (%p168) target = $region20
        $region19: #{tpu_custom_call.1} parent=11 // pred_region
          _
        $region20: #{tpu_custom_call.1} parent=11 // pred_fallthru
          _
        // Predicated region
        $region21: #{tpu_custom_call.1} parent=11 // pred_check
          %p171 = pneg %p103
        $region22: #{tpu_custom_call.1} parent=11 // pred_check_branch
          %173 = sbr.rel (%p171) target = $region24
        $region23: #{tpu_custom_call.1} parent=11 // pred_region
          _
        $region24: #{tpu_custom_call.1} parent=11 // pred_fallthru
          _
        // Predicated region
        $region25: #{tpu_custom_call.1} parent=11 // pred_check
          %p174 = pneg %p124
        $region26: #{tpu_custom_call.1} parent=11 // pred_check_branch
          %176 = sbr.rel (%p174) target = $region28
        $region27: #{tpu_custom_call.1} parent=11 // pred_region
          _
        $region28: #{tpu_custom_call.1} parent=11 // pred_fallthru
          _
      $region12: #{tpu_custom_call.1} parent=5 // pred_fallthru
        _
      %p177 = scmp.lt.s32.totalorder %s14, 2
      // Predicated region
      $region29: #{tpu_custom_call.1} parent=5 // pred_check
        %p178 = pneg %p177
      $region30: #{tpu_custom_call.1} parent=5 // pred_check_branch
        %180 = sbr.rel (%p178) target = $region32
      $region31: #{tpu_custom_call.1} parent=5 // pred_region
        // Predicated region
        $region33: #{tpu_custom_call.1} parent=31 // pred_check
          %p181 = pneg %p34
        $region34: #{tpu_custom_call.1} parent=31 // pred_check_branch
          %183 = sbr.rel (%p181) target = $region36
        $region35: #{tpu_custom_call.1} parent=31 // pred_region
          %p184 = scmp.lt.s32.totalorder %s14, 1
          %s185 = scalar_select %p184, %s14, 1
          %s186 = smul.addr %s185, 4
          %s187 = scalar_lea.vmem %s0, %s186
        $region36: #{tpu_custom_call.1} parent=31 // pred_fallthru
          _
      $region32: #{tpu_custom_call.1} parent=5 // pred_fallthru
        _
      %p188 = scmp.le.s32.totalorder 1, %s14
      %p189 = scmp.lt.s32.totalorder %s14, 3
      %p190 = pnand %p188, %p189
      %p191 = pneg %p190
      // Predicated region
      $region37: #{tpu_custom_call.1} parent=5 // pred_check
        _
      $region38: #{tpu_custom_call.1} parent=5 // pred_check_branch
        %193 = sbr.rel (%p190) target = $region40
      $region39: #{tpu_custom_call.1} parent=5 // pred_region
        %s194 = ssub.s32 %s14, 1
        %p195 = scmp.lt.s32.totalorder %s19, 1
        %s196 = scalar_select %p195, %s19, 1
        %s197 = smul.addr %s196, 4
        %s198 = scalar_lea.vmem %s0, %s197
        %p199 = pneg %p40
        %p200 = pneg %p37
        %p201 = pneg %p61
        %p202 = pneg %p58
        %p203 = pneg %p82
        %p204 = pneg %p79
        %p205 = pneg %p103
        %p206 = pneg %p100
        %p207 = pneg %p124
        %p208 = pneg %p121
        %p209 = pneg %p150
        %p210 = pneg %p147
        %s211 = sand.u32 %s137, 1
        %s212 = scalar_lea.sflag [#allocation3], %s211
        %s213 = sand.u32 %s137, 1
        %s214 = smul.addr %s213, 8
        %s215 = scalar_lea.vmem [#allocation2], %s214
        %p216 = scmp.lt.s32.totalorder %s19, 1
        %s217 = scalar_select %p216, %s19, 1
        %s218 = smul.addr %s217, 4
        %s219 = scalar_lea.vmem %s0, %s218
        %v220 = vld [vmem:[%s219] sm:$0xf]
        %v221 = vlaneseq
        %v222 = vshrl.u32 %v221, 7
        %v223 = vadd.s32 %v222, 8
        %v224 = vlaneseq
        %v225 = vand.u32 %v224, 127
        %v226 = vsub.s32 %v225, 1
        %vm227 = vcmp.eq.s32.totalorder %v222, %v226
        %vm228 = vcmp.eq.s32.totalorder %v223, %v226
        %v229 = vsel %vm227, 1, 0
        %v230 = vsel %vm228, 1, 0
        %v231 = vcvt.s32.f32 %v229
        %v232 = vcvt.s32.f32 %v230
        %v233 = vadd.s32 %v225, 1
        %vm234 = vcmp.eq.s32.totalorder %v222, %v233
        %vm235 = vcmp.eq.s32.totalorder %v223, %v233
        %v236 = vsel %vm234, 1, 0
        %v237 = vsel %vm235, 1, 0
        %v238 = vcvt.s32.f32 %v236
        %v239 = vcvt.s32.f32 %v237
        %vm240 = vcmask 130048
        %v242 = vsel %vm240, %v220, 0
        %244 = vmatprep.subr.mxu0 0.0
        %245 = vmatpush1.msra.mxu0 %v231
        %246 = vmatprep.subr.mxu0 0.0
        %247 = vmatpush1.msra.mxu0 %v232
        %248 = vmatprep.subr.mxu0 0.0
        %249 = vmatpush1.msra.mxu0 0.0
        %250 = vmatprep.subr.mxu0 0.0
        %251 = vmatpush1.msra.mxu0 0.0
        %252 = vmatprep.subr.mxu0 0.0
        %253 = vmatpush1.msra.mxu0 0.0
        %254 = vmatprep.subr.mxu0 0.0
        %255 = vmatpush1.msra.mxu0 0.0
        %256 = vmatprep.subr.mxu0 0.0
        %257 = vmatpush1.msra.mxu0 0.0
        %258 = vmatprep.subr.mxu0 0.0
        %259 = vmatpush1.msra.mxu0 0.0
        %260 = vmatprep.subr.mxu0 0.0
        %261 = vmatpush1.msra.mxu0 0.0
        %262 = vmatprep.subr.mxu0 0.0
        %263 = vmatpush1.msra.mxu0 0.0
        %264 = vmatprep.subr.mxu0 0.0
        %265 = vmatpush1.msra.mxu0 0.0
        %266 = vmatprep.subr.mxu0 0.0
        %267 = vmatpush1.msra.mxu0 0.0
        %268 = vmatprep.subr.mxu0 0.0
        %269 = vmatpush1.msra.mxu0 0.0
        %270 = vmatprep.subr.mxu0 0.0
        %271 = vmatpush1.msra.mxu0 0.0
        %272 = vmatprep.subr.mxu0 0.0
        %273 = vmatpush1.msra.mxu0 0.0
        %274 = vmatprep.subr.mxu0 0.0
        %275 = vmatpush1.msra.mxu0 0.0
        %276 = vmatprep.subr.mxu0 0.0
        %277 = vmatpush1.msra.mxu0 0.0
        %278 = vmatprep.subr.mxu0 0.0
        %279 = vmatpush1.msra.mxu0 0.0
        %280 = vmatprep.subr.mxu0 0.0
        %281 = vmatpush1.msra.mxu0 0.0
        %282 = vmatprep.subr.mxu0 0.0
        %283 = vmatpush1.msra.mxu0 0.0
        %284 = vmatprep.subr.mxu0 0.0
        %285 = vmatpush1.msra.mxu0 0.0
        %286 = vmatprep.subr.mxu0 0.0
        %287 = vmatpush1.msra.mxu0 0.0
        %288 = vmatprep.subr.mxu0 0.0
        %289 = vmatpush1.msra.mxu0 0.0
        %290 = vmatprep.subr.mxu0 0.0
        %291 = vmatpush1.msra.mxu0 0.0
        %292 = vmatprep.subr.mxu0 0.0
        %293 = vmatpush1.msra.mxu0 0.0
        %294 = vmatprep.subr.mxu0 0.0
        %295 = vmatpush1.msra.mxu0 0.0
        %296 = vmatprep.subr.mxu0 0.0
        %297 = vmatpush1.msra.mxu0 0.0
        %298 = vmatprep.subr.mxu0 0.0
        %299 = vmatpush1.msra.mxu0 0.0
        %300 = vmatprep.subr.mxu0 0.0
        %301 = vmatpush1.msra.mxu0 0.0
        %302 = vmatprep.subr.mxu0 0.0
        %303 = vmatpush1.msra.mxu0 0.0
        %304 = vmatprep.subr.mxu0 0.0
        %305 = vmatpush1.msra.mxu0 0.0
        %306 = vmatprep.subr.mxu0 0.0
        %307 = vmatpush1.msra.mxu0 0.0
        %308 = vmatprep.mubr.f32.mxu0 0.0
        %309 = vmatmul.mubr.f32.gmra.mrb[0].mxu0 %v242
        %v310 = vpop.f32.mrb[0].mxu0
        %v311 = vadd.f32 0.0, %v310
        %v312 = vpop.f32.mrb[0].mxu0
        %313 = vdwg.mxu0
        %314 = vmatprep.subr.mxu0 0.0
        %315 = vmatpush1.msra.mxu0 %v238
        %316 = vmatprep.subr.mxu0 0.0
        %317 = vmatpush1.msra.mxu0 %v239
        %318 = vmatprep.subr.mxu0 0.0
        %319 = vmatpush1.msra.mxu0 0.0
        %320 = vmatprep.subr.mxu0 0.0
        %321 = vmatpush1.msra.mxu0 0.0
        %322 = vmatprep.subr.mxu0 0.0
        %323 = vmatpush1.msra.mxu0 0.0
        %324 = vmatprep.subr.mxu0 0.0
        %325 = vmatpush1.msra.mxu0 0.0
        %326 = vmatprep.subr.mxu0 0.0
        %327 = vmatpush1.msra.mxu0 0.0
        %328 = vmatprep.subr.mxu0 0.0
        %329 = vmatpush1.msra.mxu0 0.0
        %330 = vmatprep.subr.mxu0 0.0
        %331 = vmatpush1.msra.mxu0 0.0
        %332 = vmatprep.subr.mxu0 0.0
        %333 = vmatpush1.msra.mxu0 0.0
        %334 = vmatprep.subr.mxu0 0.0
        %335 = vmatpush1.msra.mxu0 0.0
        %336 = vmatprep.subr.mxu0 0.0
        %337 = vmatpush1.msra.mxu0 0.0
        %338 = vmatprep.subr.mxu0 0.0
        %339 = vmatpush1.msra.mxu0 0.0
        %340 = vmatprep.subr.mxu0 0.0
        %341 = vmatpush1.msra.mxu0 0.0
        %342 = vmatprep.subr.mxu0 0.0
        %343 = vmatpush1.msra.mxu0 0.0
        %344 = vmatprep.subr.mxu0 0.0
        %345 = vmatpush1.msra.mxu0 0.0
        %346 = vmatprep.subr.mxu0 0.0
        %347 = vmatpush1.msra.mxu0 0.0
        %348 = vmatprep.subr.mxu0 0.0
        %349 = vmatpush1.msra.mxu0 0.0
        %350 = vmatprep.subr.mxu0 0.0
        %351 = vmatpush1.msra.mxu0 0.0
        %352 = vmatprep.subr.mxu0 0.0
        %353 = vmatpush1.msra.mxu0 0.0
        %354 = vmatprep.subr.mxu0 0.0
        %355 = vmatpush1.msra.mxu0 0.0
        %356 = vmatprep.subr.mxu0 0.0
        %357 = vmatpush1.msra.mxu0 0.0
        %358 = vmatprep.subr.mxu0 0.0
        %359 = vmatpush1.msra.mxu0 0.0
        %360 = vmatprep.subr.mxu0 0.0
        %361 = vmatpush1.msra.mxu0 0.0
        %362 = vmatprep.subr.mxu0 0.0
        %363 = vmatpush1.msra.mxu0 0.0
        %364 = vmatprep.subr.mxu0 0.0
        %365 = vmatpush1.msra.mxu0 0.0
        %366 = vmatprep.subr.mxu0 0.0
        %367 = vmatpush1.msra.mxu0 0.0
        %368 = vmatprep.subr.mxu0 0.0
        %369 = vmatpush1.msra.mxu0 0.0
        %370 = vmatprep.subr.mxu0 0.0
        %371 = vmatpush1.msra.mxu0 0.0
        %372 = vmatprep.subr.mxu0 0.0
        %373 = vmatpush1.msra.mxu0 0.0
        %374 = vmatprep.subr.mxu0 0.0
        %375 = vmatpush1.msra.mxu0 0.0
        %376 = vmatprep.subr.mxu0 0.0
        %377 = vmatpush1.msra.mxu0 0.0
        %378 = vmatprep.mubr.f32.mxu0 0.0
        %379 = vmatmul.mubr.f32.gmra.mrb[0].mxu0 %v242
        %v380 = vpop.f32.mrb[0].mxu0
        %v381 = vadd.f32 0.0, %v380
        %v382 = vpop.f32.mrb[0].mxu0
        %383 = vdwg.mxu0
        %v384 = vld [vmem:[%s1] sm:$0xff]
        %s385 = scalar_lea.vmem %s1, 8
        %v386 = vld [vmem:[%s385] sm:$0xff]
        %vm387 = vcmask 31744
        %v389 = vsel %vm387, %v386, 0
        %vm391 = vcmask 1043456
        %v392 = vsel %vm391, %v220, 0
        %394 = vmatprep.subr.mxu0 0.0
        %395 = vmatpush1.msra.mxu0 %v392
        %396 = vmatprep.subr.mxu0 0.0
        %397 = vmatpush1.msra.mxu0 0.0
        %398 = vmatprep.subr.mxu0 0.0
        %399 = vmatpush1.msra.mxu0 0.0
        %400 = vmatprep.subr.mxu0 0.0
        %401 = vmatpush1.msra.mxu0 0.0
        %402 = vmatprep.subr.mxu0 0.0
        %403 = vmatpush1.msra.mxu0 0.0
        %404 = vmatprep.subr.mxu0 0.0
        %405 = vmatpush1.msra.mxu0 0.0
        %406 = vmatprep.subr.mxu0 0.0
        %407 = vmatpush1.msra.mxu0 0.0
        %408 = vmatprep.subr.mxu0 0.0
        %409 = vmatpush1.msra.mxu0 0.0
        %410 = vmatprep.subr.mxu0 0.0
        %411 = vmatpush1.msra.mxu0 0.0
        %412 = vmatprep.subr.mxu0 0.0
        %413 = vmatpush1.msra.mxu0 0.0
        %414 = vmatprep.subr.mxu0 0.0
        %415 = vmatpush1.msra.mxu0 0.0
        %416 = vmatprep.subr.mxu0 0.0
        %417 = vmatpush1.msra.mxu0 0.0
        %418 = vmatprep.subr.mxu0 0.0
        %419 = vmatpush1.msra.mxu0 0.0
        %420 = vmatprep.subr.mxu0 0.0
        %421 = vmatpush1.msra.mxu0 0.0
        %422 = vmatprep.subr.mxu0 0.0
        %423 = vmatpush1.msra.mxu0 0.0
        %424 = vmatprep.subr.mxu0 0.0
        %425 = vmatpush1.msra.mxu0 0.0
        %426 = vmatprep.subr.mxu0 0.0
        %427 = vmatpush1.msra.mxu0 0.0
        %428 = vmatprep.subr.mxu0 0.0
        %429 = vmatpush1.msra.mxu0 0.0
        %430 = vmatprep.subr.mxu0 0.0
        %431 = vmatpush1.msra.mxu0 0.0
        %432 = vmatprep.subr.mxu0 0.0
        %433 = vmatpush1.msra.mxu0 0.0
        %434 = vmatprep.subr.mxu0 0.0
        %435 = vmatpush1.msra.mxu0 0.0
        %436 = vmatprep.subr.mxu0 0.0
        %437 = vmatpush1.msra.mxu0 0.0
        %438 = vmatprep.subr.mxu0 0.0
        %439 = vmatpush1.msra.mxu0 0.0
        %440 = vmatprep.subr.mxu0 0.0
        %441 = vmatpush1.msra.mxu0 0.0
        %442 = vmatprep.subr.mxu0 0.0
        %443 = vmatpush1.msra.mxu0 0.0
        %444 = vmatprep.subr.mxu0 0.0
        %445 = vmatpush1.msra.mxu0 0.0
        %446 = vmatprep.subr.mxu0 0.0
        %447 = vmatpush1.msra.mxu0 0.0
        %448 = vmatprep.subr.mxu0 0.0
        %449 = vmatpush1.msra.mxu0 0.0
        %450 = vmatprep.subr.mxu0 0.0
        %451 = vmatpush1.msra.mxu0 0.0
        %452 = vmatprep.subr.mxu0 0.0
        %453 = vmatpush1.msra.mxu0 0.0
        %454 = vmatprep.subr.mxu0 0.0
        %455 = vmatpush1.msra.mxu0 0.0
        %456 = vmatprep.subr.mxu0 0.0
        %457 = vmatpush1.msra.mxu0 0.0
        %458 = vmatprep.mubr.f32.mxu0 0.0
        %459 = vmatmul.mubr.f32.gmra.mrb[0].mxu0 %v389
        %v460 = vpop.f32.mrb[0].mxu0
        %v461 = vadd.f32 0.0, %v460
        %v462 = vpop.f32.mrb[0].mxu0
        %463 = vdwg.mxu0
        %v465 = vsel %vm387, %v384, 0
        %v468 = vsel %vm391, %v311, 0
        %470 = vmatprep.subr.mxu0 0.0
        %471 = vmatpush1.msra.mxu0 %v468
        %472 = vmatprep.subr.mxu0 0.0
        %473 = vmatpush1.msra.mxu0 0.0
        %474 = vmatprep.subr.mxu0 0.0
        %475 = vmatpush1.msra.mxu0 0.0
        %476 = vmatprep.subr.mxu0 0.0
        %477 = vmatpush1.msra.mxu0 0.0
        %478 = vmatprep.subr.mxu0 0.0
        %479 = vmatpush1.msra.mxu0 0.0
        %480 = vmatprep.subr.mxu0 0.0
        %481 = vmatpush1.msra.mxu0 0.0
        %482 = vmatprep.subr.mxu0 0.0
        %483 = vmatpush1.msra.mxu0 0.0
        %484 = vmatprep.subr.mxu0 0.0
        %485 = vmatpush1.msra.mxu0 0.0
        %486 = vmatprep.subr.mxu0 0.0
        %487 = vmatpush1.msra.mxu0 0.0
        %488 = vmatprep.subr.mxu0 0.0
        %489 = vmatpush1.msra.mxu0 0.0
        %490 = vmatprep.subr.mxu0 0.0
        %491 = vmatpush1.msra.mxu0 0.0
        %492 = vmatprep.subr.mxu0 0.0
        %493 = vmatpush1.msra.mxu0 0.0
        %494 = vmatprep.subr.mxu0 0.0
        %495 = vmatpush1.msra.mxu0 0.0
        %496 = vmatprep.subr.mxu0 0.0
        %497 = vmatpush1.msra.mxu0 0.0
        %498 = vmatprep.subr.mxu0 0.0
        %499 = vmatpush1.msra.mxu0 0.0
        %500 = vmatprep.subr.mxu0 0.0
        %501 = vmatpush1.msra.mxu0 0.0
        %502 = vmatprep.subr.mxu0 0.0
        %503 = vmatpush1.msra.mxu0 0.0
        %504 = vmatprep.subr.mxu0 0.0
        %505 = vmatpush1.msra.mxu0 0.0
        %506 = vmatprep.subr.mxu0 0.0
        %507 = vmatpush1.msra.mxu0 0.0
        %508 = vmatprep.subr.mxu0 0.0
        %509 = vmatpush1.msra.mxu0 0.0
        %510 = vmatprep.subr.mxu0 0.0
        %511 = vmatpush1.msra.mxu0 0.0
        %512 = vmatprep.subr.mxu0 0.0
        %513 = vmatpush1.msra.mxu0 0.0
        %514 = vmatprep.subr.mxu0 0.0
        %515 = vmatpush1.msra.mxu0 0.0
        %516 = vmatprep.subr.mxu0 0.0
        %517 = vmatpush1.msra.mxu0 0.0
        %518 = vmatprep.subr.mxu0 0.0
        %519 = vmatpush1.msra.mxu0 0.0
        %520 = vmatprep.subr.mxu0 0.0
        %521 = vmatpush1.msra.mxu0 0.0
        %522 = vmatprep.subr.mxu0 0.0
        %523 = vmatpush1.msra.mxu0 0.0
        %524 = vmatprep.subr.mxu0 0.0
        %525 = vmatpush1.msra.mxu0 0.0
        %526 = vmatprep.subr.mxu0 0.0
        %527 = vmatpush1.msra.mxu0 0.0
        %528 = vmatprep.subr.mxu0 0.0
        %529 = vmatpush1.msra.mxu0 0.0
        %530 = vmatprep.subr.mxu0 0.0
        %531 = vmatpush1.msra.mxu0 0.0
        %532 = vmatprep.subr.mxu0 0.0
        %533 = vmatpush1.msra.mxu0 0.0
        %534 = vmatprep.mubr.f32.mxu0 0.0
        %535 = vmatmul.mubr.f32.gmra.mrb[0].mxu0 %v465
        %v536 = vpop.f32.mrb[0].mxu0
        %v537 = vadd.f32 %v461, %v536
        %v538 = vpop.f32.mrb[0].mxu0
        %539 = vdwg.mxu0
        %s540 = scalar_lea.vmem %s1, 16
        %v541 = vld [vmem:[%s540] sm:$0xff]
        %v543 = vsel %vm387, %v541, 0
        %v546 = vsel %vm391, %v381, 0
        %548 = vmatprep.subr.mxu0 0.0
        %549 = vmatpush1.msra.mxu0 %v546
        %550 = vmatprep.subr.mxu0 0.0
        %551 = vmatpush1.msra.mxu0 0.0
        %552 = vmatprep.subr.mxu0 0.0
        %553 = vmatpush1.msra.mxu0 0.0
        %554 = vmatprep.subr.mxu0 0.0
        %555 = vmatpush1.msra.mxu0 0.0
        %556 = vmatprep.subr.mxu0 0.0
        %557 = vmatpush1.msra.mxu0 0.0
        %558 = vmatprep.subr.mxu0 0.0
        %559 = vmatpush1.msra.mxu0 0.0
        %560 = vmatprep.subr.mxu0 0.0
        %561 = vmatpush1.msra.mxu0 0.0
        %562 = vmatprep.subr.mxu0 0.0
        %563 = vmatpush1.msra.mxu0 0.0
        %564 = vmatprep.subr.mxu0 0.0
        %565 = vmatpush1.msra.mxu0 0.0
        %566 = vmatprep.subr.mxu0 0.0
        %567 = vmatpush1.msra.mxu0 0.0
        %568 = vmatprep.subr.mxu0 0.0
        %569 = vmatpush1.msra.mxu0 0.0
        %570 = vmatprep.subr.mxu0 0.0
        %571 = vmatpush1.msra.mxu0 0.0
        %572 = vmatprep.subr.mxu0 0.0
        %573 = vmatpush1.msra.mxu0 0.0
        %574 = vmatprep.subr.mxu0 0.0
        %575 = vmatpush1.msra.mxu0 0.0
        %576 = vmatprep.subr.mxu0 0.0
        %577 = vmatpush1.msra.mxu0 0.0
        %578 = vmatprep.subr.mxu0 0.0
        %579 = vmatpush1.msra.mxu0 0.0
        %580 = vmatprep.subr.mxu0 0.0
        %581 = vmatpush1.msra.mxu0 0.0
        %582 = vmatprep.subr.mxu0 0.0
        %583 = vmatpush1.msra.mxu0 0.0
        %584 = vmatprep.subr.mxu0 0.0
        %585 = vmatpush1.msra.mxu0 0.0
        %586 = vmatprep.subr.mxu0 0.0
        %587 = vmatpush1.msra.mxu0 0.0
        %588 = vmatprep.subr.mxu0 0.0
        %589 = vmatpush1.msra.mxu0 0.0
        %590 = vmatprep.subr.mxu0 0.0
        %591 = vmatpush1.msra.mxu0 0.0
        %592 = vmatprep.subr.mxu0 0.0
        %593 = vmatpush1.msra.mxu0 0.0
        %594 = vmatprep.subr.mxu0 0.0
        %595 = vmatpush1.msra.mxu0 0.0
        %596 = vmatprep.subr.mxu0 0.0
        %597 = vmatpush1.msra.mxu0 0.0
        %598 = vmatprep.subr.mxu0 0.0
        %599 = vmatpush1.msra.mxu0 0.0
        %600 = vmatprep.subr.mxu0 0.0
        %601 = vmatpush1.msra.mxu0 0.0
        %602 = vmatprep.subr.mxu0 0.0
        %603 = vmatpush1.msra.mxu0 0.0
        %604 = vmatprep.subr.mxu0 0.0
        %605 = vmatpush1.msra.mxu0 0.0
        %606 = vmatprep.subr.mxu0 0.0
        %607 = vmatpush1.msra.mxu0 0.0
        %608 = vmatprep.subr.mxu0 0.0
        %609 = vmatpush1.msra.mxu0 0.0
        %610 = vmatprep.subr.mxu0 0.0
        %611 = vmatpush1.msra.mxu0 0.0
        %612 = vmatprep.mubr.f32.mxu0 0.0
        %613 = vmatmul.mubr.f32.gmra.mrb[0].mxu0 %v543
        %v614 = vpop.f32.mrb[0].mxu0
        %v615 = vadd.f32 0.0, %v614
        %v616 = vpop.f32.mrb[0].mxu0
        %617 = vdwg.mxu0
        %v618 = vadd.f32 %v537, %v615
        %v619 = vld [vmem:[%s2] sm:$0xff]
        %621 = vset.pattern.permute.xlu0 0
        %622 = vperm.xlu0 %621, %v619
        %v623 = vpop.permute.xlu0 %622
        %v625 = vadd.f32 %v618, %v623
        %v626 = vmax.f32 %v625, 0.0
        %v628 = vsel %vm240, %v626, 0
        %630 = vmatprep.subr.mxu0 0.0
        %631 = vmatpush1.msra.mxu0 %v231
        %632 = vmatprep.subr.mxu0 0.0
        %633 = vmatpush1.msra.mxu0 %v232
        %634 = vmatprep.subr.mxu0 0.0
        %635 = vmatpush1.msra.mxu0 0.0
        %636 = vmatprep.subr.mxu0 0.0
        %637 = vmatpush1.msra.mxu0 0.0
        %638 = vmatprep.subr.mxu0 0.0
        %639 = vmatpush1.msra.mxu0 0.0
        %640 = vmatprep.subr.mxu0 0.0
        %641 = vmatpush1.msra.mxu0 0.0
        %642 = vmatprep.subr.mxu0 0.0
        %643 = vmatpush1.msra.mxu0 0.0
        %644 = vmatprep.subr.mxu0 0.0
        %645 = vmatpush1.msra.mxu0 0.0
        %646 = vmatprep.subr.mxu0 0.0
        %647 = vmatpush1.msra.mxu0 0.0
        %648 = vmatprep.subr.mxu0 0.0
        %649 = vmatpush1.msra.mxu0 0.0
        %650 = vmatprep.subr.mxu0 0.0
        %651 = vmatpush1.msra.mxu0 0.0
        %652 = vmatprep.subr.mxu0 0.0
        %653 = vmatpush1.msra.mxu0 0.0
        %654 = vmatprep.subr.mxu0 0.0
        %655 = vmatpush1.msra.mxu0 0.0
        %656 = vmatprep.subr.mxu0 0.0
        %657 = vmatpush1.msra.mxu0 0.0
        %658 = vmatprep.subr.mxu0 0.0
        %659 = vmatpush1.msra.mxu0 0.0
        %660 = vmatprep.subr.mxu0 0.0
        %661 = vmatpush1.msra.mxu0 0.0
        %662 = vmatprep.subr.mxu0 0.0
        %663 = vmatpush1.msra.mxu0 0.0
        %664 = vmatprep.subr.mxu0 0.0
        %665 = vmatpush1.msra.mxu0 0.0
        %666 = vmatprep.subr.mxu0 0.0
        %667 = vmatpush1.msra.mxu0 0.0
        %668 = vmatprep.subr.mxu0 0.0
        %669 = vmatpush1.msra.mxu0 0.0
        %670 = vmatprep.subr.mxu0 0.0
        %671 = vmatpush1.msra.mxu0 0.0
        %672 = vmatprep.subr.mxu0 0.0
        %673 = vmatpush1.msra.mxu0 0.0
        %674 = vmatprep.subr.mxu0 0.0
        %675 = vmatpush1.msra.mxu0 0.0
        %676 = vmatprep.subr.mxu0 0.0
        %677 = vmatpush1.msra.mxu0 0.0
        %678 = vmatprep.subr.mxu0 0.0
        %679 = vmatpush1.msra.mxu0 0.0
        %680 = vmatprep.subr.mxu0 0.0
        %681 = vmatpush1.msra.mxu0 0.0
        %682 = vmatprep.subr.mxu0 0.0
        %683 = vmatpush1.msra.mxu0 0.0
        %684 = vmatprep.subr.mxu0 0.0
        %685 = vmatpush1.msra.mxu0 0.0
        %686 = vmatprep.subr.mxu0 0.0
        %687 = vmatpush1.msra.mxu0 0.0
        %688 = vmatprep.subr.mxu0 0.0
        %689 = vmatpush1.msra.mxu0 0.0
        %690 = vmatprep.subr.mxu0 0.0
        %691 = vmatpush1.msra.mxu0 0.0
        %692 = vmatprep.subr.mxu0 0.0
        %693 = vmatpush1.msra.mxu0 0.0
        %694 = vmatprep.mubr.f32.mxu0 0.0
        %695 = vmatmul.mubr.f32.gmra.mrb[0].mxu0 %v628
        %v696 = vpop.f32.mrb[0].mxu0
        %v697 = vadd.f32 0.0, %v696
        %v698 = vpop.f32.mrb[0].mxu0
        %699 = vdwg.mxu0
        %700 = vmatprep.subr.mxu0 0.0
        %701 = vmatpush1.msra.mxu0 %v238
        %702 = vmatprep.subr.mxu0 0.0
        %703 = vmatpush1.msra.mxu0 %v239
        %704 = vmatprep.subr.mxu0 0.0
        %705 = vmatpush1.msra.mxu0 0.0
        %706 = vmatprep.subr.mxu0 0.0
        %707 = vmatpush1.msra.mxu0 0.0
        %708 = vmatprep.subr.mxu0 0.0
        %709 = vmatpush1.msra.mxu0 0.0
        %710 = vmatprep.subr.mxu0 0.0
        %711 = vmatpush1.msra.mxu0 0.0
        %712 = vmatprep.subr.mxu0 0.0
        %713 = vmatpush1.msra.mxu0 0.0
        %714 = vmatprep.subr.mxu0 0.0
        %715 = vmatpush1.msra.mxu0 0.0
        %716 = vmatprep.subr.mxu0 0.0
        %717 = vmatpush1.msra.mxu0 0.0
        %718 = vmatprep.subr.mxu0 0.0
        %719 = vmatpush1.msra.mxu0 0.0
        %720 = vmatprep.subr.mxu0 0.0
        %721 = vmatpush1.msra.mxu0 0.0
        %722 = vmatprep.subr.mxu0 0.0
        %723 = vmatpush1.msra.mxu0 0.0
        %724 = vmatprep.subr.mxu0 0.0
        %725 = vmatpush1.msra.mxu0 0.0
        %726 = vmatprep.subr.mxu0 0.0
        %727 = vmatpush1.msra.mxu0 0.0
        %728 = vmatprep.subr.mxu0 0.0
        %729 = vmatpush1.msra.mxu0 0.0
        %730 = vmatprep.subr.mxu0 0.0
        %731 = vmatpush1.msra.mxu0 0.0
        %732 = vmatprep.subr.mxu0 0.0
        %733 = vmatpush1.msra.mxu0 0.0
        %734 = vmatprep.subr.mxu0 0.0
        %735 = vmatpush1.msra.mxu0 0.0
        %736 = vmatprep.subr.mxu0 0.0
        %737 = vmatpush1.msra.mxu0 0.0
        %738 = vmatprep.subr.mxu0 0.0
        %739 = vmatpush1.msra.mxu0 0.0
        %740 = vmatprep.subr.mxu0 0.0
        %741 = vmatpush1.msra.mxu0 0.0
        %742 = vmatprep.subr.mxu0 0.0
        %743 = vmatpush1.msra.mxu0 0.0
        %744 = vmatprep.subr.mxu0 0.0
        %745 = vmatpush1.msra.mxu0 0.0
        %746 = vmatprep.subr.mxu0 0.0
        %747 = vmatpush1.msra.mxu0 0.0
        %748 = vmatprep.subr.mxu0 0.0
        %749 = vmatpush1.msra.mxu0 0.0
        %750 = vmatprep.subr.mxu0 0.0
        %751 = vmatpush1.msra.mxu0 0.0
        %752 = vmatprep.subr.mxu0 0.0
        %753 = vmatpush1.msra.mxu0 0.0
        %754 = vmatprep.subr.mxu0 0.0
        %755 = vmatpush1.msra.mxu0 0.0
        %756 = vmatprep.subr.mxu0 0.0
        %757 = vmatpush1.msra.mxu0 0.0
        %758 = vmatprep.subr.mxu0 0.0
        %759 = vmatpush1.msra.mxu0 0.0
        %760 = vmatprep.subr.mxu0 0.0
        %761 = vmatpush1.msra.mxu0 0.0
        %762 = vmatprep.subr.mxu0 0.0
        %763 = vmatpush1.msra.mxu0 0.0
        %764 = vmatprep.mubr.f32.mxu0 0.0
        %765 = vmatmul.mubr.f32.gmra.mrb[0].mxu0 %v628
        %v766 = vpop.f32.mrb[0].mxu0
        %v767 = vadd.f32 0.0, %v766
        %v768 = vpop.f32.mrb[0].mxu0
        %769 = vdwg.mxu0
        %v770 = vld [vmem:[%s3] sm:$0xff]
        %s771 = scalar_lea.vmem %s3, 8
        %v772 = vld [vmem:[%s771] sm:$0xff]
        %vm773 = vcmask 64512
        %v775 = vsel %vm773, %v772, 0
        %777 = vmatprep.subr.mxu0 0.0
        %778 = vmatpush1.msra.mxu0 %v626
        %779 = vmatprep.subr.mxu0 0.0
        %780 = vmatpush1.msra.mxu0 0.0
        %781 = vmatprep.subr.mxu0 0.0
        %782 = vmatpush1.msra.mxu0 0.0
        %783 = vmatprep.subr.mxu0 0.0
        %784 = vmatpush1.msra.mxu0 0.0
        %785 = vmatprep.subr.mxu0 0.0
        %786 = vmatpush1.msra.mxu0 0.0
        %787 = vmatprep.subr.mxu0 0.0
        %788 = vmatpush1.msra.mxu0 0.0
        %789 = vmatprep.subr.mxu0 0.0
        %790 = vmatpush1.msra.mxu0 0.0
        %791 = vmatprep.subr.mxu0 0.0
        %792 = vmatpush1.msra.mxu0 0.0
        %793 = vmatprep.subr.mxu0 0.0
        %794 = vmatpush1.msra.mxu0 0.0
        %795 = vmatprep.subr.mxu0 0.0
        %796 = vmatpush1.msra.mxu0 0.0
        %797 = vmatprep.subr.mxu0 0.0
        %798 = vmatpush1.msra.mxu0 0.0
        %799 = vmatprep.subr.mxu0 0.0
        %800 = vmatpush1.msra.mxu0 0.0
        %801 = vmatprep.subr.mxu0 0.0
        %802 = vmatpush1.msra.mxu0 0.0
        %803 = vmatprep.subr.mxu0 0.0
        %804 = vmatpush1.msra.mxu0 0.0
        %805 = vmatprep.subr.mxu0 0.0
        %806 = vmatpush1.msra.mxu0 0.0
        %807 = vmatprep.subr.mxu0 0.0
        %808 = vmatpush1.msra.mxu0 0.0
        %809 = vmatprep.subr.mxu0 0.0
        %810 = vmatpush1.msra.mxu0 0.0
        %811 = vmatprep.subr.mxu0 0.0
        %812 = vmatpush1.msra.mxu0 0.0
        %813 = vmatprep.subr.mxu0 0.0
        %814 = vmatpush1.msra.mxu0 0.0
        %815 = vmatprep.subr.mxu0 0.0
        %816 = vmatpush1.msra.mxu0 0.0
        %817 = vmatprep.subr.mxu0 0.0
        %818 = vmatpush1.msra.mxu0 0.0
        %819 = vmatprep.subr.mxu0 0.0
        %820 = vmatpush1.msra.mxu0 0.0
        %821 = vmatprep.subr.mxu0 0.0
        %822 = vmatpush1.msra.mxu0 0.0
        %823 = vmatprep.subr.mxu0 0.0
        %824 = vmatpush1.msra.mxu0 0.0
        %825 = vmatprep.subr.mxu0 0.0
        %826 = vmatpush1.msra.mxu0 0.0
        %827 = vmatprep.subr.mxu0 0.0
        %828 = vmatpush1.msra.mxu0 0.0
        %829 = vmatprep.subr.mxu0 0.0
        %830 = vmatpush1.msra.mxu0 0.0
        %831 = vmatprep.subr.mxu0 0.0
        %832 = vmatpush1.msra.mxu0 0.0
        %833 = vmatprep.subr.mxu0 0.0
        %834 = vmatpush1.msra.mxu0 0.0
        %835 = vmatprep.subr.mxu0 0.0
        %836 = vmatpush1.msra.mxu0 0.0
        %837 = vmatprep.subr.mxu0 0.0
        %838 = vmatpush1.msra.mxu0 0.0
        %839 = vmatprep.subr.mxu0 0.0
        %840 = vmatpush1.msra.mxu0 0.0
        %841 = vmatprep.mubr.f32.mxu0 0.0
        %842 = vmatmul.mubr.f32.gmra.mrb[0].mxu0 %v775
        %v843 = vpop.f32.mrb[0].mxu0
        %v844 = vadd.f32 0.0, %v843
        %v845 = vpop.f32.mrb[0].mxu0
        %846 = vdwg.mxu0
        %v848 = vsel %vm773, %v770, 0
        %850 = vmatprep.subr.mxu0 0.0
        %851 = vmatpush1.msra.mxu0 %v697
        %852 = vmatprep.subr.mxu0 0.0
        %853 = vmatpush1.msra.mxu0 0.0
        %854 = vmatprep.subr.mxu0 0.0
        %855 = vmatpush1.msra.mxu0 0.0
        %856 = vmatprep.subr.mxu0 0.0
        %857 = vmatpush1.msra.mxu0 0.0
        %858 = vmatprep.subr.mxu0 0.0
        %859 = vmatpush1.msra.mxu0 0.0
        %860 = vmatprep.subr.mxu0 0.0
        %861 = vmatpush1.msra.mxu0 0.0
        %862 = vmatprep.subr.mxu0 0.0
        %863 = vmatpush1.msra.mxu0 0.0
        %864 = vmatprep.subr.mxu0 0.0
        %865 = vmatpush1.msra.mxu0 0.0
        %866 = vmatprep.subr.mxu0 0.0
        %867 = vmatpush1.msra.mxu0 0.0
        %868 = vmatprep.subr.mxu0 0.0
        %869 = vmatpush1.msra.mxu0 0.0
        %870 = vmatprep.subr.mxu0 0.0
        %871 = vmatpush1.msra.mxu0 0.0
        %872 = vmatprep.subr.mxu0 0.0
        %873 = vmatpush1.msra.mxu0 0.0
        %874 = vmatprep.subr.mxu0 0.0
        %875 = vmatpush1.msra.mxu0 0.0
        %876 = vmatprep.subr.mxu0 0.0
        %877 = vmatpush1.msra.mxu0 0.0
        %878 = vmatprep.subr.mxu0 0.0
        %879 = vmatpush1.msra.mxu0 0.0
        %880 = vmatprep.subr.mxu0 0.0
        %881 = vmatpush1.msra.mxu0 0.0
        %882 = vmatprep.subr.mxu0 0.0
        %883 = vmatpush1.msra.mxu0 0.0
        %884 = vmatprep.subr.mxu0 0.0
        %885 = vmatpush1.msra.mxu0 0.0
        %886 = vmatprep.subr.mxu0 0.0
        %887 = vmatpush1.msra.mxu0 0.0
        %888 = vmatprep.subr.mxu0 0.0
        %889 = vmatpush1.msra.mxu0 0.0
        %890 = vmatprep.subr.mxu0 0.0
        %891 = vmatpush1.msra.mxu0 0.0
        %892 = vmatprep.subr.mxu0 0.0
        %893 = vmatpush1.msra.mxu0 0.0
        %894 = vmatprep.subr.mxu0 0.0
        %895 = vmatpush1.msra.mxu0 0.0
        %896 = vmatprep.subr.mxu0 0.0
        %897 = vmatpush1.msra.mxu0 0.0
        %898 = vmatprep.subr.mxu0 0.0
        %899 = vmatpush1.msra.mxu0 0.0
        %900 = vmatprep.subr.mxu0 0.0
        %901 = vmatpush1.msra.mxu0 0.0
        %902 = vmatprep.subr.mxu0 0.0
        %903 = vmatpush1.msra.mxu0 0.0
        %904 = vmatprep.subr.mxu0 0.0
        %905 = vmatpush1.msra.mxu0 0.0
        %906 = vmatprep.subr.mxu0 0.0
        %907 = vmatpush1.msra.mxu0 0.0
        %908 = vmatprep.subr.mxu0 0.0
        %909 = vmatpush1.msra.mxu0 0.0
        %910 = vmatprep.subr.mxu0 0.0
        %911 = vmatpush1.msra.mxu0 0.0
        %912 = vmatprep.subr.mxu0 0.0
        %913 = vmatpush1.msra.mxu0 0.0
        %914 = vmatprep.mubr.f32.mxu0 0.0
        %915 = vmatmul.mubr.f32.gmra.mrb[0].mxu0 %v848
        %v916 = vpop.f32.mrb[0].mxu0
        %v917 = vadd.f32 %v844, %v916
        %v918 = vpop.f32.mrb[0].mxu0
        %919 = vdwg.mxu0
        %s920 = scalar_lea.vmem %s3, 16
        %v921 = vld [vmem:[%s920] sm:$0xff]
        %v923 = vsel %vm773, %v921, 0
        %925 = vmatprep.subr.mxu0 0.0
        %926 = vmatpush1.msra.mxu0 %v767
        %927 = vmatprep.subr.mxu0 0.0
        %928 = vmatpush1.msra.mxu0 0.0
        %929 = vmatprep.subr.mxu0 0.0
        %930 = vmatpush1.msra.mxu0 0.0
        %931 = vmatprep.subr.mxu0 0.0
        %932 = vmatpush1.msra.mxu0 0.0
        %933 = vmatprep.subr.mxu0 0.0
        %934 = vmatpush1.msra.mxu0 0.0
        %935 = vmatprep.subr.mxu0 0.0
        %936 = vmatpush1.msra.mxu0 0.0
        %937 = vmatprep.subr.mxu0 0.0
        %938 = vmatpush1.msra.mxu0 0.0
        %939 = vmatprep.subr.mxu0 0.0
        %940 = vmatpush1.msra.mxu0 0.0
        %941 = vmatprep.subr.mxu0 0.0
        %942 = vmatpush1.msra.mxu0 0.0
        %943 = vmatprep.subr.mxu0 0.0
        %944 = vmatpush1.msra.mxu0 0.0
        %945 = vmatprep.subr.mxu0 0.0
        %946 = vmatpush1.msra.mxu0 0.0
        %947 = vmatprep.subr.mxu0 0.0
        %948 = vmatpush1.msra.mxu0 0.0
        %949 = vmatprep.subr.mxu0 0.0
        %950 = vmatpush1.msra.mxu0 0.0
        %951 = vmatprep.subr.mxu0 0.0
        %952 = vmatpush1.msra.mxu0 0.0
        %953 = vmatprep.subr.mxu0 0.0
        %954 = vmatpush1.msra.mxu0 0.0
        %955 = vmatprep.subr.mxu0 0.0
        %956 = vmatpush1.msra.mxu0 0.0
        %957 = vmatprep.subr.mxu0 0.0
        %958 = vmatpush1.msra.mxu0 0.0
        %959 = vmatprep.subr.mxu0 0.0
        %960 = vmatpush1.msra.mxu0 0.0
        %961 = vmatprep.subr.mxu0 0.0
        %962 = vmatpush1.msra.mxu0 0.0
        %963 = vmatprep.subr.mxu0 0.0
        %964 = vmatpush1.msra.mxu0 0.0
        %965 = vmatprep.subr.mxu0 0.0
        %966 = vmatpush1.msra.mxu0 0.0
        %967 = vmatprep.subr.mxu0 0.0
        %968 = vmatpush1.msra.mxu0 0.0
        %969 = vmatprep.subr.mxu0 0.0
        %970 = vmatpush1.msra.mxu0 0.0
        %971 = vmatprep.subr.mxu0 0.0
        %972 = vmatpush1.msra.mxu0 0.0
        %973 = vmatprep.subr.mxu0 0.0
        %974 = vmatpush1.msra.mxu0 0.0
        %975 = vmatprep.subr.mxu0 0.0
        %976 = vmatpush1.msra.mxu0 0.0
        %977 = vmatprep.subr.mxu0 0.0
        %978 = vmatpush1.msra.mxu0 0.0
        %979 = vmatprep.subr.mxu0 0.0
        %980 = vmatpush1.msra.mxu0 0.0
        %981 = vmatprep.subr.mxu0 0.0
        %982 = vmatpush1.msra.mxu0 0.0
        %983 = vmatprep.subr.mxu0 0.0
        %984 = vmatpush1.msra.mxu0 0.0
        %985 = vmatprep.subr.mxu0 0.0
        %986 = vmatpush1.msra.mxu0 0.0
        %987 = vmatprep.subr.mxu0 0.0
        %988 = vmatpush1.msra.mxu0 0.0
        %989 = vmatprep.mubr.f32.mxu0 0.0
        %990 = vmatmul.mubr.f32.gmra.mrb[0].mxu0 %v923
        %v991 = vpop.f32.mrb[0].mxu0
        %v992 = vadd.f32 0.0, %v991
        %v993 = vpop.f32.mrb[0].mxu0
        %994 = vdwg.mxu0
        %v995 = vadd.f32 %v917, %v992
        %v996 = vld [vmem:[%s4] sm:$0xff]
        %998 = vset.pattern.permute.xlu0 0
        %999 = vperm.xlu0 %998, %v996
        %v1000 = vpop.permute.xlu0 %999
        %v1002 = vadd.f32 %v995, %v1000
        %v1003 = vmax.f32 %v1002, 0.0
        %1004 = vst.msk [vmem:[%s215] sm:$0xff] %vm240, %v1003
        %s1005 = sand.u32 %s137, 1
        %s1006 = scalar_lea.sflag [#allocation3], %s1005
        %s1007 = sand.u32 %s137, 1
        %s1008 = smul.addr %s1007, 8
        %s1009 = scalar_lea.vmem [#allocation2], %s1008
        // Predicated region
        $region41: #{tpu_custom_call.1} parent=39 // pred_check
          %p1010 = pneg %p147
        $region42: #{tpu_custom_call.1} parent=39 // pred_check_branch
          %1012 = sbr.rel (%p1010) target = $region44
        $region43: #{tpu_custom_call.1} parent=39 // pred_region
          %s1014 = ssub.s32 128, 128
          %1015 = vsyncadd %s1006, %s1014
          %s1016 = smul.addr %s19, 128
          %s1017 = scalar_lea.hbm %s5, %s1016
          %s1019 = sshll.u32 %s1009, 4
          %s1020 = int_to_ptr.vmem [resolvable:$true] %s1019
          %1022 = dma.vmem_to_hbm [thread:$0]  %s1020, 128, %s1017, %s1006
        $region44: #{tpu_custom_call.1} parent=39 // pred_fallthru
          _
      $region40: #{tpu_custom_call.1} parent=5 // pred_fallthru
        _
      %p1023 = scmp.le.s32.totalorder 2, %s14
      // Predicated region
      $region45: #{tpu_custom_call.1} parent=5 // pred_check
        %p1024 = pneg %p1023
      $region46: #{tpu_custom_call.1} parent=5 // pred_check_branch
        %1026 = sbr.rel (%p1024) target = $region48
      $region47: #{tpu_custom_call.1} parent=5 // pred_region
        %s1027 = ssub.s32 %s14, 2
        // Predicated region
        $region49: #{tpu_custom_call.1} parent=47 // pred_check
          %p1028 = pneg %p153
        $region50: #{tpu_custom_call.1} parent=47 // pred_check_branch
          %1030 = sbr.rel (%p1028) target = $region52
        $region51: #{tpu_custom_call.1} parent=47 // pred_region
          %s1031 = sand.u32 %s138, 1
          %s1032 = scalar_lea.sflag [#allocation3], %s1031
          %s1033 = sand.u32 %s138, 1
          %s1034 = smul.addr %s1033, 8
          %s1035 = scalar_lea.vmem [#allocation2], %s1034
          %1036 = dma.done %s1032, 128
        $region52: #{tpu_custom_call.1} parent=47 // pred_fallthru
          _
      $region48: #{tpu_custom_call.1} parent=5 // pred_fallthru
        _
    $region6: #{tpu_custom_call.1} parent=1 // loop_footer
      %s18 = sadd.s32 1, %s14
    $region7: #{tpu_custom_call.1} parent=1 // loop_footer_branch
      %13 = sbr.rel target = $region3
    $region8: #{tpu_custom_call.1} parent=1 // loop_exit
      _
    %1037 = vsyncpa [#allocation3], 1
    %s1038 = scalar_lea.sflag [#allocation3], 1
    %1039 = vsyncpa %s1038, 1

</llo_original>
